<compile_context>
chip_gen: v6e
topology: v6e:2x2x1
jax: 0.10.0
libtpu: 0.0.40
codegen_flags: <defaults>
</compile_context>

<pallas_src>
import functools

import jax
import jax.numpy as jnp
from jax import lax
from jax.experimental import pallas as pl
from jax.experimental.pallas import tpu as pltpu

_LANE = 128       # lane tile (last-dim padding)
_MIB = 1 << 20


def _round_up(x, m):
    return (x + m - 1) // m * m


# ---------------------------------------------------------------------------
# Per-generation knobs (trace-time device query; safe fallbacks if unknown).
# ---------------------------------------------------------------------------
def _tpu_kind():
    try:
        d = jax.devices()[0]
        return d.device_kind.lower() if d.platform == "tpu" else ""
    except Exception:
        return ""


def _hw_config():
    """Returns (vmem budget for block sizing, vmem_limit_bytes, gate math dtype)."""
    kind = _tpu_kind()
    if "v7" in kind:            # 64 MiB physical VMEM/TC, bf16 EUP
        return 40 * _MIB, 56 * _MIB, jnp.bfloat16
    if "v6" in kind:            # 128 MiB VMEM, bf16 VPU/EUP
        return 88 * _MIB, 112 * _MIB, jnp.bfloat16
    if "v5" in kind or "v4" in kind:   # no bf16 EUP path -> keep f32 gate math
        return 88 * _MIB, 112 * _MIB, jnp.float32
    return 32 * _MIB, 64 * _MIB, jnp.float32       # unknown: conservative


def _pad_batch(B):
    """Pad batch to a sublane/bf16-friendly size and pick the batch block bc.
    For B > 16 we guarantee >= 2 batch blocks so the 'parallel' grid axis can
    split across TensorCores (v7x megacore)."""
    if B <= 16:
        return 16, 16
    Bp = _round_up(B, 32)
    if Bp <= 256:
        return Bp, Bp // 2            # bc is a multiple of 16 and divides Bp
    Bp = _round_up(B, 128)
    return Bp, 128


def _pick_chunk(T, bc, layer_dims, budget_bytes):
    """Largest time-chunk (<= 64) such that every layer's blocks + scratch fit
    in the per-generation VMEM budget (double-buffered inputs, bf16 gx scratch,
    and the transient f32 matmul result are all accounted for)."""
    def fits(chunk):
        for ip, hp in layer_dims:
            per_t = bc * (4 * ip        # x block, bf16, double buffered
                          + 4 * hp      # h_out block, bf16, double buffered
                          + 8 * hp      # gx scratch, bf16
                          + 16 * hp)    # transient f32 projection result
            fixed = 2 * (ip * 4 * hp * 2 + hp * 4 * hp * 2)   # W_ih + W_hh, bf16
            fixed += 2 * 4 * hp * 4                            # bias, f32
            fixed += 2 * bc * hp * 4                           # h, c state, f32
            if fixed + chunk * per_t > budget_bytes:
                return False
        return True

    chunk = max(1, min(T, 64))
    while chunk > 1 and not fits(chunk):
        chunk //= 2
    # TODO(synk): if even chunk == 1 does not fit (very large layers), the
    # resident W_ih / W_hh would need in-kernel K/N tiling.
    return chunk


# ---------------------------------------------------------------------------
# Fused LSTM layer kernel.
#   Per grid step (one batch block x one time chunk):
#     1) gx = x_chunk @ W_ih^T + bias   -- single MXU matmul into VMEM scratch
#     2) serial recurrence over the chunk: gates = h_{t-1} @ W_hh^T + gx[t]
#   h/c state lives in f32 VMEM scratch and persists across time-chunk steps.
#   Gate layout is per-gate lane-padded: [ i | f | g | o ], each hp wide.
# ---------------------------------------------------------------------------
def _lstm_layer_kernel(x_ref, wih_ref, whh_ref, bias_ref, h_out_ref,
                       h_scr, c_scr, gx_scr, *, hp, chunk, gate_dtype):
    # Reset h/c at the first time-chunk of each batch block.
    @pl.when(pl.program_id(1) == 0)
    def _():
        h_scr[...] = jnp.zeros_like(h_scr)
        c_scr[...] = jnp.zeros_like(c_scr)

    bc = h_scr.shape[0]
    ip = x_ref.shape[-1]

    # ---- fused input projection for the whole time chunk (one MXU call) ----
    x2d = x_ref[...].reshape(chunk * bc, ip)                      # bf16
    gx = jnp.dot(x2d, wih_ref[...], preferred_element_type=jnp.float32)
    gx = gx + bias_ref[...]
    gx_scr[...] = gx.reshape(chunk, bc, 4 * hp).astype(gx_scr.dtype)  # bf16 in VMEM

    # ---- serial recurrence over the chunk ----
    def step(t, carry):
        h_prev = h_scr[...]                                       # (bc, hp) f32
        gates = (jnp.dot(h_prev.astype(jnp.bfloat16), whh_ref[...],
                         preferred_element_type=jnp.float32)
                 + gx_scr[t].astype(jnp.float32))                 # (bc, 4hp) f32
        # bf16 EUP path on v6e/v7x, f32 on v5e/unknown; slices are lane-aligned.
        g_act = gates.astype(gate_dtype)
        # slice -> activate -> consume sequentially to keep the live vreg set small
        i_g = jax.nn.sigmoid(g_act[:, 0 * hp:1 * hp]).astype(jnp.float32)
        g_g = jnp.tanh(g_act[:, 2 * hp:3 * hp]).astype(jnp.float32)
        ig = i_g * g_g
        f_g = jax.nn.sigmoid(g_act[:, 1 * hp:2 * hp]).astype(jnp.float32)
        c_new = f_g * c_scr[...] + ig                             # f32 state math
        o_g = jax.nn.sigmoid(g_act[:, 3 * hp:4 * hp]).astype(jnp.float32)
        h_new = o_g * jnp.tanh(c_new)
        c_scr[...] = c_new
        h_scr[...] = h_new
        h_out_ref[t] = h_new.astype(h_out_ref.dtype)
        return carry

    lax.fori_loop(0, chunk, step, 0,
                  unroll=(chunk if chunk <= 8 else 4))


def _lstm_layer(x_tm, wih_t, whh_t, bias, *, hp, chunk, bc, vmem_limit, gate_dtype):
    """x_tm: (T_pad, B_pad, ip) bf16 -> (T_pad, B_pad, hp) bf16 hidden sequence."""
    T_pad, B_pad, ip = x_tm.shape
    kernel = functools.partial(_lstm_layer_kernel, hp=hp, chunk=chunk,
                               gate_dtype=gate_dtype)
    return pl.pallas_call(
        kernel,
        out_shape=jax.ShapeDtypeStruct((T_pad, B_pad, hp), jnp.bfloat16),
        grid_spec=pltpu.PrefetchScalarGridSpec(
            num_scalar_prefetch=0,
            grid=(B_pad // bc, T_pad // chunk),
            in_specs=[
                pl.BlockSpec((chunk, bc, ip), lambda b, c: (c, b, 0)),   # x
                pl.BlockSpec((ip, 4 * hp), lambda b, c: (0, 0)),         # W_ih^T
                pl.BlockSpec((hp, 4 * hp), lambda b, c: (0, 0)),         # W_hh^T
                pl.BlockSpec((1, 4 * hp), lambda b, c: (0, 0)),          # bias
            ],
            out_specs=pl.BlockSpec((chunk, bc, hp), lambda b, c: (c, b, 0)),
            scratch_shapes=[
                pltpu.VMEM((bc, hp), jnp.float32),              # h state
                pltpu.VMEM((bc, hp), jnp.float32),              # c state
                pltpu.VMEM((chunk, bc, 4 * hp), jnp.bfloat16),  # fused gx chunk
            ],
        ),
        compiler_params=pltpu.CompilerParams(
            dimension_semantics=("parallel", "arbitrary"),
            vmem_limit_bytes=vmem_limit),
    )(x_tm, wih_t, whh_t, bias)


# ---------------------------------------------------------------------------
# Small tiled matmul + bias for the Linear head:  (N, K) @ (K, M) + (1, M).
# ---------------------------------------------------------------------------
def _matmul_bias_kernel(x_ref, w_ref, b_ref, o_ref):
    acc = jnp.dot(x_ref[...], w_ref[...], preferred_element_type=jnp.float32)
    o_ref[...] = (acc + b_ref[...]).astype(o_ref.dtype)


def _matmul_bias(x2d, w_t, bias, out_dtype, vmem_limit, tile_n=512):
    """x2d: (N, K) bf16, w_t: (K, M) bf16, bias: (1, M) f32 -> (N, M).
    N is a multiple of 16; K and M are lane-padded.  The row tile is chosen to
    divide N so there is no pad + slice copy of the output.
    TODO(synk): K/M reduction tiling with an f32 accumulator for very large K*M
    (not needed here: this path only serves the small Linear head)."""
    N, K = x2d.shape
    M = w_t.shape[1]
    tn = min(tile_n, N)
    while N % tn:
        tn //= 2
    return pl.pallas_call(
        _matmul_bias_kernel,
        out_shape=jax.ShapeDtypeStruct((N, M), out_dtype),
        grid=(N // tn,),
        in_specs=[pl.BlockSpec((tn, K), lambda i: (i, 0)),
                  pl.BlockSpec((K, M), lambda i: (0, 0)),
                  pl.BlockSpec((1, M), lambda i: (0, 0))],
        out_specs=pl.BlockSpec((tn, M), lambda i: (i, 0)),
        compiler_params=pltpu.CompilerParams(
            dimension_semantics=("parallel",),
            vmem_limit_bytes=vmem_limit),
    )(x2d, w_t, bias)


# ---------------------------------------------------------------------------
# Weight packing: PyTorch nn.LSTM layout (gate order [i, f, g, o]) -> transposed,
# per-gate lane-padded matrices in bf16, combined bias in f32.  Padded gate lanes
# get zero weights + zero bias, so padded h/c lanes stay exactly 0.
# ---------------------------------------------------------------------------
def _pack_lstm_weights(w_ih, w_hh, b_ih, b_hh):
    four_h, in_sz = w_ih.shape
    H = four_h // 4
    # TODO(synk): for H < 128 the per-gate 128-lane padding does up to 4x extra
    # in-VMEM elementwise/MXU work on zero lanes; kept because it guarantees
    # lane-aligned gate slices (the gx HBM round trip it used to inflate is gone
    # now that the input projection is fused into the recurrent kernel).
    hp = _round_up(H, _LANE)
    ip = _round_up(in_sz, _LANE)
    wih_t = jnp.zeros((ip, 4 * hp), jnp.float32)
    whh_t = jnp.zeros((hp, 4 * hp), jnp.float32)
    bias = jnp.zeros((1, 4 * hp), jnp.float32)
    for g in range(4):
        wih_t = wih_t.at[:in_sz, g * hp:g * hp + H].set(w_ih[g * H:(g + 1) * H, :].T)
        whh_t = whh_t.at[:H, g * hp:g * hp + H].set(w_hh[g * H:(g + 1) * H, :].T)
        bias = bias.at[0, g * hp:g * hp + H].set(
            (b_ih[g * H:(g + 1) * H] + b_hh[g * H:(g + 1) * H]).astype(jnp.float32))
    return wih_t.astype(jnp.bfloat16), whh_t.astype(jnp.bfloat16), bias, hp, ip


# ---------------------------------------------------------------------------
# LSTM_nn forward (stacked unidirectional LSTMs + final Linear).
# nn.Dropout is identity at inference; the module never passes `bidirectional`
# to nn.LSTM, so every layer is unidirectional.
# ---------------------------------------------------------------------------
def lstm_nn_forward(params, x):
    """x: (B, T, input_size) -> (B, T, output_size), matching the PyTorch module."""
    # TODO(synk): training-mode dropout between layers not applied (inference only).
    B, T, in_sz = x.shape
    budget, vmem_limit, gate_dtype = _hw_config()
    B_pad, bc = _pad_batch(B)

    packed, dims = [], []
    for lp in params["lstm"]:
        wih_t, whh_t, bias, hp, ip = _pack_lstm_weights(
            lp["w_ih"], lp["w_hh"], lp["b_ih"], lp["b_hh"])
        packed.append((wih_t, whh_t, bias, hp, ip))
        dims.append((ip, hp))

    chunk = _pick_chunk(T, bc, dims, budget)
    T_pad = _round_up(T, chunk)

    x_tm = jnp.transpose(x, (1, 0, 2)).astype(jnp.float32)            # (T, B, I)
    x_tm = jnp.pad(x_tm, ((0, T_pad - T), (0, B_pad - B), (0, 0)))
    cur = x_tm.astype(jnp.bfloat16)                                   # (T_pad, B_pad, I)

    for wih_t, whh_t, bias, hp, ip in packed:
        k = cur.shape[-1]
        if k < ip:                                                    # lane-pad features
            cur = jnp.pad(cur, ((0, 0), (0, 0), (0, ip - k)))
        cur = _lstm_layer(cur, wih_t, whh_t, bias, hp=hp, chunk=chunk, bc=bc,
                          vmem_limit=vmem_limit, gate_dtype=gate_dtype)

    # Final Linear over every (t, b) position, lane-padded output columns.
    hp_last = cur.shape[-1]
    fc_w, fc_b = params["fc_w"], params["fc_b"]
    O, h_real = fc_w.shape
    op = _round_up(O, _LANE)
    fc_wt = (jnp.zeros((hp_last, op), jnp.float32)
             .at[:h_real, :O].set(fc_w.T).astype(jnp.bfloat16))
    fc_b2 = jnp.zeros((1, op), jnp.float32).at[0, :O].set(fc_b)
    out = _matmul_bias(cur.reshape(T_pad * B_pad, hp_last), fc_wt, fc_b2,
                       out_dtype=jnp.float32, vmem_limit=vmem_limit)
    out = out.reshape(T_pad, B_pad, op)[:T, :B, :O]
    return jnp.transpose(out, (1, 0, 2))                              # (B, T, O)


# ---------------------------------------------------------------------------
# Deterministic parameter init (PyTorch-style U(-1/sqrt(H), 1/sqrt(H))).
# ---------------------------------------------------------------------------
def init_params(key, input_size, hidden_sizes, output_size):
    params = {"lstm": []}
    in_sz = input_size
    for h in hidden_sizes:
        k = 1.0 / float(jnp.sqrt(jnp.float32(h)))
        key, k1, k2, k3, k4 = jax.random.split(key, 5)
        params["lstm"].append({
            "w_ih": jax.random.uniform(k1, (4 * h, in_sz), jnp.float32, -k, k),
            "w_hh": jax.random.uniform(k2, (4 * h, h), jnp.float32, -k, k),
            "b_ih": jax.random.uniform(k3, (4 * h,), jnp.float32, -k, k),
            "b_hh": jax.random.uniform(k4, (4 * h,), jnp.float32, -k, k),
        })
        in_sz = h
    kf = 1.0 / float(jnp.sqrt(jnp.float32(hidden_sizes[-1])))
    key, k1, k2 = jax.random.split(key, 3)
    params["fc_w"] = jax.random.uniform(k1, (output_size, hidden_sizes[-1]),
                                        jnp.float32, -kf, kf)
    params["fc_b"] = jax.random.uniform(k2, (output_size,), jnp.float32, -kf, kf)
    return params


# ---------------------------------------------------------------------------
# Pure-JAX f32 reference (lax.scan) for correctness checking.
# ---------------------------------------------------------------------------
def _ref_lstm_layer(x, w_ih, w_hh, b_ih, b_hh):
    B, T, _ = x.shape
    H = w_hh.shape[1]

    def step(carry, x_t):
        h, c = carry
        gates = x_t @ w_ih.T + h @ w_hh.T + b_ih + b_hh
        i, f, g, o = jnp.split(gates, 4, axis=-1)
        i, f, o = jax.nn.sigmoid(i), jax.nn.sigmoid(f), jax.nn.sigmoid(o)
        g = jnp.tanh(g)
        c = f * c + i * g
        h = o * jnp.tanh(c)
        return (h, c), h

    init = (jnp.zeros((B, H), jnp.float32), jnp.zeros((B, H), jnp.float32))
    _, hs = lax.scan(step, init, jnp.transpose(x, (1, 0, 2)))
    return jnp.transpose(hs, (1, 0, 2))


def _ref_forward(params, x):
    h = x.astype(jnp.float32)
    for lp in params["lstm"]:
        h = _ref_lstm_layer(h, lp["w_ih"], lp["w_hh"], lp["b_ih"], lp["b_hh"])
    return h @ params["fc_w"].T + params["fc_b"]


if __name__ == "__main__":
    # Small, deterministic problem consistent with the module's forward:
    # x: (batch=2, seq=8, input_size=16); hidden_sizes=[32, 32]; output_size=5.
    B, T, IN = 2, 8, 16
    HIDDEN_SIZES = [32, 32]
    OUT = 5

    key = jax.random.PRNGKey(0)
    key, kx, kp = jax.random.split(key, 3)
    x = jax.random.normal(kx, (B, T, IN), jnp.float32)
    params = init_params(kp, IN, HIDDEN_SIZES, OUT)

    fwd = jax.jit(lstm_nn_forward)
    out = jax.block_until_ready(fwd(params, x))
    assert out.shape == (B, T, OUT), out.shape

    ref = jax.block_until_ready(_ref_forward(params, x))
    # bf16 MXU operands, bf16 VMEM-resident gate pre-activations (and bf16 gate
    # nonlinearities on v6e/v7x) with f32 accumulation and f32 h/c state ->
    # looser tolerance than the pure-f32 reference.
    assert jnp.allclose(out, ref, atol=5e-2, rtol=5e-2), \
        float(jnp.max(jnp.abs(out - ref)))

    print("KERNEL_OK")
</pallas_src>

<mosaic_0001>
module attributes {stable_mosaic.version = 11 : i64} {
  func.func @_matmul_bias_kernel(%arg0: i32, %arg1: memref<128x128xbf16, #tpu.memory_space<vmem>>, %arg2: memref<128x128xbf16, #tpu.memory_space<vmem>>, %arg3: memref<1x128xf32, #tpu.memory_space<vmem>>, %arg4: memref<128x128xf32, #tpu.memory_space<vmem>>) attributes {dimension_semantics = [#tpu.dimension_semantics<parallel>], iteration_bounds = array<i64: 1>, scalar_prefetch = 0 : i64, scratch_operands = 0 : i64, tpu.core_type = #tpu.core_type<tc>, window_params = [{transform_indices = @transform_0, window_bounds = array<i64: 128, 128>}, {pipeline_mode = #tpu.pipeline_mode<synchronous>, transform_indices = @transform_1, window_bounds = array<i64: 128, 128>}, {pipeline_mode = #tpu.pipeline_mode<synchronous>, transform_indices = @transform_2, window_bounds = array<i64: 1, 128>}, {transform_indices = @transform_3, window_bounds = array<i64: 128, 128>}]} {
    %c0 = arith.constant 0 : index
    %c0_0 = arith.constant 0 : index
    %0 = vector.load %arg1[%c0, %c0_0] : memref<128x128xbf16, #tpu.memory_space<vmem>>, vector<128x128xbf16>
    %c0_1 = arith.constant 0 : index
    %c0_2 = arith.constant 0 : index
    %1 = vector.load %arg2[%c0_1, %c0_2] : memref<128x128xbf16, #tpu.memory_space<vmem>>, vector<128x128xbf16>
    %cst = arith.constant dense<0.000000e+00> : vector<128x128xf32>
    %2 = tpu.matmul %0, %1, %cst {dimension_numbers = #tpu.dot_dimension_numbers<[1], [0], [0], [1], [0, 0, 1, 1], [], []>} : vector<128x128xbf16>, vector<128x128xbf16>, vector<128x128xf32> -> vector<128x128xf32>
    %c0_3 = arith.constant 0 : index
    %c0_4 = arith.constant 0 : index
    %3 = vector.load %arg3[%c0_3, %c0_4] : memref<1x128xf32, #tpu.memory_space<vmem>>, vector<1x128xf32>
    %4 = vector.broadcast %3 : vector<1x128xf32> to vector<128x128xf32>
    %5 = arith.addf %2, %4 : vector<128x128xf32>
    %c0_5 = arith.constant 0 : index
    %c0_6 = arith.constant 0 : index
    %6 = vector.load %arg4[%c0_5, %c0_6] : memref<128x128xf32, #tpu.memory_space<vmem>>, vector<128x128xf32>
    tpu.vector_store %arg4[%c0_5, %c0_6], %5 {strides = array<i32>} : memref<128x128xf32, #tpu.memory_space<vmem>>, vector<128x128xf32>,
    return
  }
  func.func @transform_0(%arg0: i32) -> (i32, i32) {
    %c0_i32 = arith.constant 0 : i32
    %c0_i32_0 = arith.constant 0 : i32
    return %arg0, %c0_i32 : i32, i32
  }
  func.func @transform_1(%arg0: i32) -> (i32, i32) {
    %c0_i32 = arith.constant 0 : i32
    %c0_i32_0 = arith.constant 0 : i32
    %c0_i32_1 = arith.constant 0 : i32
    return %c0_i32, %c0_i32_0 : i32, i32
  }
  func.func @transform_2(%arg0: i32) -> (i32, i32) {
    %c0_i32 = arith.constant 0 : i32
    %c0_i32_0 = arith.constant 0 : i32
    %c0_i32_1 = arith.constant 0 : i32
    return %c0_i32, %c0_i32_0 : i32, i32
  }
  func.func @transform_3(%arg0: i32) -> (i32, i32) {
    %c0_i32 = arith.constant 0 : i32
    %c0_i32_0 = arith.constant 0 : i32
    return %arg0, %c0_i32 : i32, i32
  }
}

module attributes {stable_mosaic.version = 11 : i64} {
  func.func @_lstm_layer_kernel(%arg0: i32, %arg1: i32, %arg2: memref<8x16x128xbf16, #tpu.memory_space<vmem>>, %arg3: memref<128x512xbf16, #tpu.memory_space<vmem>>, %arg4: memref<128x512xbf16, #tpu.memory_space<vmem>>, %arg5: memref<1x512xf32, #tpu.memory_space<vmem>>, %arg6: memref<8x16x128xbf16, #tpu.memory_space<vmem>>, %arg7: memref<16x128xf32, #tpu.memory_space<vmem>>, %arg8: memref<16x128xf32, #tpu.memory_space<vmem>>, %arg9: memref<8x16x512xbf16, #tpu.memory_space<vmem>>) attributes {dimension_semantics = [#tpu.dimension_semantics<parallel>, #tpu.dimension_semantics<arbitrary>], iteration_bounds = array<i64: 1, 1>, scalar_prefetch = 0 : i64, scratch_operands = 3 : i64, tpu.core_type = #tpu.core_type<tc>, window_params = [{transform_indices = @transform_0, window_bounds = array<i64: 8, 16, 128>}, {pipeline_mode = #tpu.pipeline_mode<synchronous>, transform_indices = @transform_1, window_bounds = array<i64: 128, 512>}, {pipeline_mode = #tpu.pipeline_mode<synchronous>, transform_indices = @transform_2, window_bounds = array<i64: 128, 512>}, {pipeline_mode = #tpu.pipeline_mode<synchronous>, transform_indices = @transform_3, window_bounds = array<i64: 1, 512>}, {transform_indices = @transform_4, window_bounds = array<i64: 8, 16, 128>}]} {
    %c0_i32 = arith.constant 0 : i32
    %0 = arith.cmpi eq, %arg1, %c0_i32 : i32
    %1 = arith.extui %0 : i1 to i32
    %c0_i32_0 = arith.constant 0 : i32
    %2 = arith.cmpi ne, %1, %c0_i32_0 : i32
    scf.if %2 {
      %cst_155 = arith.constant 0.000000e+00 : f32
      %349 = vector.broadcast %cst_155 : f32 to vector<16x128xf32>
      %c0_156 = arith.constant 0 : index
      %c0_157 = arith.constant 0 : index
      %350 = vector.load %arg7[%c0_156, %c0_157] : memref<16x128xf32, #tpu.memory_space<vmem>>, vector<16x128xf32>
      tpu.vector_store %arg7[%c0_156, %c0_157], %349 {strides = array<i32>} : memref<16x128xf32, #tpu.memory_space<vmem>>, vector<16x128xf32>,
      %cst_158 = arith.constant 0.000000e+00 : f32
      %351 = vector.broadcast %cst_158 : f32 to vector<16x128xf32>
      %c0_159 = arith.constant 0 : index
      %c0_160 = arith.constant 0 : index
      %352 = vector.load %arg8[%c0_159, %c0_160] : memref<16x128xf32, #tpu.memory_space<vmem>>, vector<16x128xf32>
      tpu.vector_store %arg8[%c0_159, %c0_160], %351 {strides = array<i32>} : memref<16x128xf32, #tpu.memory_space<vmem>>, vector<16x128xf32>,
    } else {
    }
    %c0 = arith.constant 0 : index
    %c0_1 = arith.constant 0 : index
    %c0_2 = arith.constant 0 : index
    %3 = vector.load %arg2[%c0, %c0_1, %c0_2] : memref<8x16x128xbf16, #tpu.memory_space<vmem>>, vector<8x16x128xbf16>
    %4 = vector.shape_cast %3 : vector<8x16x128xbf16> to vector<128x128xbf16>
    %c0_3 = arith.constant 0 : index
    %c0_4 = arith.constant 0 : index
    %5 = vector.load %arg3[%c0_3, %c0_4] : memref<128x512xbf16, #tpu.memory_space<vmem>>, vector<128x512xbf16>
    %cst = arith.constant dense<0.000000e+00> : vector<128x512xf32>
    %6 = tpu.matmul %4, %5, %cst {dimension_numbers = #tpu.dot_dimension_numbers<[1], [0], [0], [1], [0, 0, 1, 1], [], []>} : vector<128x128xbf16>, vector<128x512xbf16>, vector<128x512xf32> -> vector<128x512xf32>
    %c0_5 = arith.constant 0 : index
    %c0_6 = arith.constant 0 : index
    %7 = vector.load %arg5[%c0_5, %c0_6] : memref<1x512xf32, #tpu.memory_space<vmem>>, vector<1x512xf32>
    %8 = vector.broadcast %7 : vector<1x512xf32> to vector<128x512xf32>
    %9 = arith.addf %6, %8 : vector<128x512xf32>
    %10 = vector.shape_cast %9 : vector<128x512xf32> to vector<8x16x512xf32>
    %11 = arith.truncf %10 : vector<8x16x512xf32> to vector<8x16x512xbf16>
    %c0_7 = arith.constant 0 : index
    %c0_8 = arith.constant 0 : index
    %c0_9 = arith.constant 0 : index
    %12 = vector.load %arg9[%c0_7, %c0_8, %c0_9] : memref<8x16x512xbf16, #tpu.memory_space<vmem>>, vector<8x16x512xbf16>
    tpu.vector_store %arg9[%c0_7, %c0_8, %c0_9], %11 {strides = array<i32>} : memref<8x16x512xbf16, #tpu.memory_space<vmem>>, vector<8x16x512xbf16>,
    %c0_i32_10 = arith.constant 0 : i32
    %c0_11 = arith.constant 0 : index
    %c0_12 = arith.constant 0 : index
    %13 = vector.load %arg7[%c0_11, %c0_12] : memref<16x128xf32, #tpu.memory_space<vmem>>, vector<16x128xf32>
    %14 = arith.truncf %13 : vector<16x128xf32> to vector<16x128xbf16>
    %c0_13 = arith.constant 0 : index
    %c0_14 = arith.constant 0 : index
    %15 = vector.load %arg4[%c0_13, %c0_14] : memref<128x512xbf16, #tpu.memory_space<vmem>>, vector<128x512xbf16>
    %cst_15 = arith.constant dense<0.000000e+00> : vector<16x512xf32>
    %16 = tpu.matmul %14, %15, %cst_15 {dimension_numbers = #tpu.dot_dimension_numbers<[1], [0], [0], [1], [0, 0, 1, 1], [], []>} : vector<16x128xbf16>, vector<128x512xbf16>, vector<16x512xf32> -> vector<16x512xf32>
    %17 = arith.index_cast %c0_i32_10 : i32 to index
    %c0_16 = arith.constant 0 : index
    %c0_17 = arith.constant 0 : index
    %18 = vector.load %arg9[%17, %c0_16, %c0_17] : memref<8x16x512xbf16, #tpu.memory_space<vmem>>, vector<1x16x512xbf16>
    %19 = vector.shape_cast %18 : vector<1x16x512xbf16> to vector<16x512xbf16>
    %20 = arith.extf %19 : vector<16x512xbf16> to vector<16x512xf32>
    %21 = arith.addf %16, %20 : vector<16x512xf32>
    %22 = vector.extract_strided_slice %21 {offsets = [0, 0], sizes = [16, 128], strides = [1, 1]} : vector<16x512xf32> to vector<16x128xf32>
    %23 = arith.negf %22 : vector<16x128xf32>
    %24 = math.exp %23 : vector<16x128xf32>
    %cst_18 = arith.constant 1.000000e+00 : f32
    %25 = vector.broadcast %cst_18 : f32 to vector<16x128xf32>
    %26 = arith.addf %25, %24 : vector<16x128xf32>
    %27 = arith.divf %25, %26 : vector<16x128xf32>
    %28 = vector.extract_strided_slice %21 {offsets = [0, 256], sizes = [16, 128], strides = [1, 1]} : vector<16x512xf32> to vector<16x128xf32>
    %29 = math.tanh %28 : vector<16x128xf32>
    %30 = arith.mulf %27, %29 : vector<16x128xf32>
    %31 = vector.extract_strided_slice %21 {offsets = [0, 128], sizes = [16, 128], strides = [1, 1]} : vector<16x512xf32> to vector<16x128xf32>
    %32 = arith.negf %31 : vector<16x128xf32>
    %33 = math.exp %32 : vector<16x128xf32>
    %cst_19 = arith.constant 1.000000e+00 : f32
    %34 = vector.broadcast %cst_19 : f32 to vector<16x128xf32>
    %35 = arith.addf %34, %33 : vector<16x128xf32>
    %36 = arith.divf %34, %35 : vector<16x128xf32>
    %c0_20 = arith.constant 0 : index
    %c0_21 = arith.constant 0 : index
    %37 = vector.load %arg8[%c0_20, %c0_21] : memref<16x128xf32, #tpu.memory_space<vmem>>, vector<16x128xf32>
    %38 = arith.mulf %36, %37 : vector<16x128xf32>
    %39 = arith.addf %38, %30 : vector<16x128xf32>
    %40 = vector.extract_strided_slice %21 {offsets = [0, 384], sizes = [16, 128], strides = [1, 1]} : vector<16x512xf32> to vector<16x128xf32>
    %41 = arith.negf %40 : vector<16x128xf32>
    %42 = math.exp %41 : vector<16x128xf32>
    %cst_22 = arith.constant 1.000000e+00 : f32
    %43 = vector.broadcast %cst_22 : f32 to vector<16x128xf32>
    %44 = arith.addf %43, %42 : vector<16x128xf32>
    %45 = arith.divf %43, %44 : vector<16x128xf32>
    %46 = math.tanh %39 : vector<16x128xf32>
    %47 = arith.mulf %45, %46 : vector<16x128xf32>
    %c0_23 = arith.constant 0 : index
    %c0_24 = arith.constant 0 : index
    %48 = vector.load %arg8[%c0_23, %c0_24] : memref<16x128xf32, #tpu.memory_space<vmem>>, vector<16x128xf32>
    tpu.vector_store %arg8[%c0_23, %c0_24], %39 {strides = array<i32>} : memref<16x128xf32, #tpu.memory_space<vmem>>, vector<16x128xf32>,
    %c0_25 = arith.constant 0 : index
    %c0_26 = arith.constant 0 : index
    %49 = vector.load %arg7[%c0_25, %c0_26] : memref<16x128xf32, #tpu.memory_space<vmem>>, vector<16x128xf32>
    tpu.vector_store %arg7[%c0_25, %c0_26], %47 {strides = array<i32>} : memref<16x128xf32, #tpu.memory_space<vmem>>, vector<16x128xf32>,
    %50 = arith.truncf %47 : vector<16x128xf32> to vector<16x128xbf16>
    %51 = arith.index_cast %c0_i32_10 : i32 to index
    %c0_27 = arith.constant 0 : index
    %c0_28 = arith.constant 0 : index
    %52 = vector.load %arg6[%51, %c0_27, %c0_28] : memref<8x16x128xbf16, #tpu.memory_space<vmem>>, vector<1x16x128xbf16>
    %53 = vector.shape_cast %52 : vector<1x16x128xbf16> to vector<16x128xbf16>
    %54 = vector.shape_cast %50 : vector<16x128xbf16> to vector<1x16x128xbf16>
    tpu.vector_store %arg6[%51, %c0_27, %c0_28], %54 {strides = array<i32>} : memref<8x16x128xbf16, #tpu.memory_space<vmem>>, vector<1x16x128xbf16>,
    %c1_i32 = arith.constant 1 : i32
    %c0_29 = arith.constant 0 : index
    %c0_30 = arith.constant 0 : index
    %55 = vector.load %arg7[%c0_29, %c0_30] : memref<16x128xf32, #tpu.memory_space<vmem>>, vector<16x128xf32>
    %56 = arith.truncf %55 : vector<16x128xf32> to vector<16x128xbf16>
    %c0_31 = arith.constant 0 : index
    %c0_32 = arith.constant 0 : index
    %57 = vector.load %arg4[%c0_31, %c0_32] : memref<128x512xbf16, #tpu.memory_space<vmem>>, vector<128x512xbf16>
    %cst_33 = arith.constant dense<0.000000e+00> : vector<16x512xf32>
    %58 = tpu.matmul %56, %57, %cst_33 {dimension_numbers = #tpu.dot_dimension_numbers<[1], [0], [0], [1], [0, 0, 1, 1], [], []>} : vector<16x128xbf16>, vector<128x512xbf16>, vector<16x512xf32> -> vector<16x512xf32>
    %59 = arith.index_cast %c1_i32 : i32 to index
    %c0_34 = arith.constant 0 : index
    %c0_35 = arith.constant 0 : index
    %60 = vector.load %arg9[%59, %c0_34, %c0_35] : memref<8x16x512xbf16, #tpu.memory_space<vmem>>, vector<1x16x512xbf16>
    %61 = vector.shape_cast %60 : vector<1x16x512xbf16> to vector<16x512xbf16>
    %62 = arith.extf %61 : vector<16x512xbf16> to vector<16x512xf32>
    %63 = arith.addf %58, %62 : vector<16x512xf32>
    %64 = vector.extract_strided_slice %63 {offsets = [0, 0], sizes = [16, 128], strides = [1, 1]} : vector<16x512xf32> to vector<16x128xf32>
    %65 = arith.negf %64 : vector<16x128xf32>
    %66 = math.exp %65 : vector<16x128xf32>
    %cst_36 = arith.constant 1.000000e+00 : f32
    %67 = vector.broadcast %cst_36 : f32 to vector<16x128xf32>
    %68 = arith.addf %67, %66 : vector<16x128xf32>
    %69 = arith.divf %67, %68 : vector<16x128xf32>
    %70 = vector.extract_strided_slice %63 {offsets = [0, 256], sizes = [16, 128], strides = [1, 1]} : vector<16x512xf32> to vector<16x128xf32>
    %71 = math.tanh %70 : vector<16x128xf32>
    %72 = arith.mulf %69, %71 : vector<16x128xf32>
    %73 = vector.extract_strided_slice %63 {offsets = [0, 128], sizes = [16, 128], strides = [1, 1]} : vector<16x512xf32> to vector<16x128xf32>
    %74 = arith.negf %73 : vector<16x128xf32>
    %75 = math.exp %74 : vector<16x128xf32>
    %cst_37 = arith.constant 1.000000e+00 : f32
    %76 = vector.broadcast %cst_37 : f32 to vector<16x128xf32>
    %77 = arith.addf %76, %75 : vector<16x128xf32>
    %78 = arith.divf %76, %77 : vector<16x128xf32>
    %c0_38 = arith.constant 0 : index
    %c0_39 = arith.constant 0 : index
    %79 = vector.load %arg8[%c0_38, %c0_39] : memref<16x128xf32, #tpu.memory_space<vmem>>, vector<16x128xf32>
    %80 = arith.mulf %78, %79 : vector<16x128xf32>
    %81 = arith.addf %80, %72 : vector<16x128xf32>
    %82 = vector.extract_strided_slice %63 {offsets = [0, 384], sizes = [16, 128], strides = [1, 1]} : vector<16x512xf32> to vector<16x128xf32>
    %83 = arith.negf %82 : vector<16x128xf32>
    %84 = math.exp %83 : vector<16x128xf32>
    %cst_40 = arith.constant 1.000000e+00 : f32
    %85 = vector.broadcast %cst_40 : f32 to vector<16x128xf32>
    %86 = arith.addf %85, %84 : vector<16x128xf32>
    %87 = arith.divf %85, %86 : vector<16x128xf32>
    %88 = math.tanh %81 : vector<16x128xf32>
    %89 = arith.mulf %87, %88 : vector<16x128xf32>
    %c0_41 = arith.constant 0 : index
    %c0_42 = arith.constant 0 : index
    %90 = vector.load %arg8[%c0_41, %c0_42] : memref<16x128xf32, #tpu.memory_space<vmem>>, vector<16x128xf32>
    tpu.vector_store %arg8[%c0_41, %c0_42], %81 {strides = array<i32>} : memref<16x128xf32, #tpu.memory_space<vmem>>, vector<16x128xf32>,
    %c0_43 = arith.constant 0 : index
    %c0_44 = arith.constant 0 : index
    %91 = vector.load %arg7[%c0_43, %c0_44] : memref<16x128xf32, #tpu.memory_space<vmem>>, vector<16x128xf32>
    tpu.vector_store %arg7[%c0_43, %c0_44], %89 {strides = array<i32>} : memref<16x128xf32, #tpu.memory_space<vmem>>, vector<16x128xf32>,
    %92 = arith.truncf %89 : vector<16x128xf32> to vector<16x128xbf16>
    %93 = arith.index_cast %c1_i32 : i32 to index
    %c0_45 = arith.constant 0 : index
    %c0_46 = arith.constant 0 : index
    %94 = vector.load %arg6[%93, %c0_45, %c0_46] : memref<8x16x128xbf16, #tpu.memory_space<vmem>>, vector<1x16x128xbf16>
    %95 = vector.shape_cast %94 : vector<1x16x128xbf16> to vector<16x128xbf16>
    %96 = vector.shape_cast %92 : vector<16x128xbf16> to vector<1x16x128xbf16>
    tpu.vector_store %arg6[%93, %c0_45, %c0_46], %96 {strides = array<i32>} : memref<8x16x128xbf16, #tpu.memory_space<vmem>>, vector<1x16x128xbf16>,
    %c2_i32 = arith.constant 2 : i32
    %c0_47 = arith.constant 0 : index
    %c0_48 = arith.constant 0 : index
    %97 = vector.load %arg7[%c0_47, %c0_48] : memref<16x128xf32, #tpu.memory_space<vmem>>, vector<16x128xf32>
    %98 = arith.truncf %97 : vector<16x128xf32> to vector<16x128xbf16>
    %c0_49 = arith.constant 0 : index
    %c0_50 = arith.constant 0 : index
    %99 = vector.load %arg4[%c0_49, %c0_50] : memref<128x512xbf16, #tpu.memory_space<vmem>>, vector<128x512xbf16>
    %cst_51 = arith.constant dense<0.000000e+00> : vector<16x512xf32>
    %100 = tpu.matmul %98, %99, %cst_51 {dimension_numbers = #tpu.dot_dimension_numbers<[1], [0], [0], [1], [0, 0, 1, 1], [], []>} : vector<16x128xbf16>, vector<128x512xbf16>, vector<16x512xf32> -> vector<16x512xf32>
    %101 = arith.index_cast %c2_i32 : i32 to index
    %c0_52 = arith.constant 0 : index
    %c0_53 = arith.constant 0 : index
    %102 = vector.load %arg9[%101, %c0_52, %c0_53] : memref<8x16x512xbf16, #tpu.memory_space<vmem>>, vector<1x16x512xbf16>
    %103 = vector.shape_cast %102 : vector<1x16x512xbf16> to vector<16x512xbf16>
    %104 = arith.extf %103 : vector<16x512xbf16> to vector<16x512xf32>
    %105 = arith.addf %100, %104 : vector<16x512xf32>
    %106 = vector.extract_strided_slice %105 {offsets = [0, 0], sizes = [16, 128], strides = [1, 1]} : vector<16x512xf32> to vector<16x128xf32>
    %107 = arith.negf %106 : vector<16x128xf32>
    %108 = math.exp %107 : vector<16x128xf32>
    %cst_54 = arith.constant 1.000000e+00 : f32
    %109 = vector.broadcast %cst_54 : f32 to vector<16x128xf32>
    %110 = arith.addf %109, %108 : vector<16x128xf32>
    %111 = arith.divf %109, %110 : vector<16x128xf32>
    %112 = vector.extract_strided_slice %105 {offsets = [0, 256], sizes = [16, 128], strides = [1, 1]} : vector<16x512xf32> to vector<16x128xf32>
    %113 = math.tanh %112 : vector<16x128xf32>
    %114 = arith.mulf %111, %113 : vector<16x128xf32>
    %115 = vector.extract_strided_slice %105 {offsets = [0, 128], sizes = [16, 128], strides = [1, 1]} : vector<16x512xf32> to vector<16x128xf32>
    %116 = arith.negf %115 : vector<16x128xf32>
    %117 = math.exp %116 : vector<16x128xf32>
    %cst_55 = arith.constant 1.000000e+00 : f32
    %118 = vector.broadcast %cst_55 : f32 to vector<16x128xf32>
    %119 = arith.addf %118, %117 : vector<16x128xf32>
    %120 = arith.divf %118, %119 : vector<16x128xf32>
    %c0_56 = arith.constant 0 : index
    %c0_57 = arith.constant 0 : index
    %121 = vector.load %arg8[%c0_56, %c0_57] : memref<16x128xf32, #tpu.memory_space<vmem>>, vector<16x128xf32>
    %122 = arith.mulf %120, %121 : vector<16x128xf32>
    %123 = arith.addf %122, %114 : vector<16x128xf32>
    %124 = vector.extract_strided_slice %105 {offsets = [0, 384], sizes = [16, 128], strides = [1, 1]} : vector<16x512xf32> to vector<16x128xf32>
    %125 = arith.negf %124 : vector<16x128xf32>
    %126 = math.exp %125 : vector<16x128xf32>
    %cst_58 = arith.constant 1.000000e+00 : f32
    %127 = vector.broadcast %cst_58 : f32 to vector<16x128xf32>
    %128 = arith.addf %127, %126 : vector<16x128xf32>
    %129 = arith.divf %127, %128 : vector<16x128xf32>
    %130 = math.tanh %123 : vector<16x128xf32>
    %131 = arith.mulf %129, %130 : vector<16x128xf32>
    %c0_59 = arith.constant 0 : index
    %c0_60 = arith.constant 0 : index
    %132 = vector.load %arg8[%c0_59, %c0_60] : memref<16x128xf32, #tpu.memory_space<vmem>>, vector<16x128xf32>
    tpu.vector_store %arg8[%c0_59, %c0_60], %123 {strides = array<i32>} : memref<16x128xf32, #tpu.memory_space<vmem>>, vector<16x128xf32>,
    %c0_61 = arith.constant 0 : index
    %c0_62 = arith.constant 0 : index
    %133 = vector.load %arg7[%c0_61, %c0_62] : memref<16x128xf32, #tpu.memory_space<vmem>>, vector<16x128xf32>
    tpu.vector_store %arg7[%c0_61, %c0_62], %131 {strides = array<i32>} : memref<16x128xf32, #tpu.memory_space<vmem>>, vector<16x128xf32>,
    %134 = arith.truncf %131 : vector<16x128xf32> to vector<16x128xbf16>
    %135 = arith.index_cast %c2_i32 : i32 to index
    %c0_63 = arith.constant 0 : index
    %c0_64 = arith.constant 0 : index
    %136 = vector.load %arg6[%135, %c0_63, %c0_64] : memref<8x16x128xbf16, #tpu.memory_space<vmem>>, vector<1x16x128xbf16>
    %137 = vector.shape_cast %136 : vector<1x16x128xbf16> to vector<16x128xbf16>
    %138 = vector.shape_cast %134 : vector<16x128xbf16> to vector<1x16x128xbf16>
    tpu.vector_store %arg6[%135, %c0_63, %c0_64], %138 {strides = array<i32>} : memref<8x16x128xbf16, #tpu.memory_space<vmem>>, vector<1x16x128xbf16>,
    %c3_i32 = arith.constant 3 : i32
    %c0_65 = arith.constant 0 : index
    %c0_66 = arith.constant 0 : index
    %139 = vector.load %arg7[%c0_65, %c0_66] : memref<16x128xf32, #tpu.memory_space<vmem>>, vector<16x128xf32>
    %140 = arith.truncf %139 : vector<16x128xf32> to vector<16x128xbf16>
    %c0_67 = arith.constant 0 : index
    %c0_68 = arith.constant 0 : index
    %141 = vector.load %arg4[%c0_67, %c0_68] : memref<128x512xbf16, #tpu.memory_space<vmem>>, vector<128x512xbf16>
    %cst_69 = arith.constant dense<0.000000e+00> : vector<16x512xf32>
    %142 = tpu.matmul %140, %141, %cst_69 {dimension_numbers = #tpu.dot_dimension_numbers<[1], [0], [0], [1], [0, 0, 1, 1], [], []>} : vector<16x128xbf16>, vector<128x512xbf16>, vector<16x512xf32> -> vector<16x512xf32>
    %143 = arith.index_cast %c3_i32 : i32 to index
    %c0_70 = arith.constant 0 : index
    %c0_71 = arith.constant 0 : index
    %144 = vector.load %arg9[%143, %c0_70, %c0_71] : memref<8x16x512xbf16, #tpu.memory_space<vmem>>, vector<1x16x512xbf16>
    %145 = vector.shape_cast %144 : vector<1x16x512xbf16> to vector<16x512xbf16>
    %146 = arith.extf %145 : vector<16x512xbf16> to vector<16x512xf32>
    %147 = arith.addf %142, %146 : vector<16x512xf32>
    %148 = vector.extract_strided_slice %147 {offsets = [0, 0], sizes = [16, 128], strides = [1, 1]} : vector<16x512xf32> to vector<16x128xf32>
    %149 = arith.negf %148 : vector<16x128xf32>
    %150 = math.exp %149 : vector<16x128xf32>
    %cst_72 = arith.constant 1.000000e+00 : f32
    %151 = vector.broadcast %cst_72 : f32 to vector<16x128xf32>
    %152 = arith.addf %151, %150 : vector<16x128xf32>
    %153 = arith.divf %151, %152 : vector<16x128xf32>
    %154 = vector.extract_strided_slice %147 {offsets = [0, 256], sizes = [16, 128], strides = [1, 1]} : vector<16x512xf32> to vector<16x128xf32>
    %155 = math.tanh %154 : vector<16x128xf32>
    %156 = arith.mulf %153, %155 : vector<16x128xf32>
    %157 = vector.extract_strided_slice %147 {offsets = [0, 128], sizes = [16, 128], strides = [1, 1]} : vector<16x512xf32> to vector<16x128xf32>
    %158 = arith.negf %157 : vector<16x128xf32>
    %159 = math.exp %158 : vector<16x128xf32>
    %cst_73 = arith.constant 1.000000e+00 : f32
    %160 = vector.broadcast %cst_73 : f32 to vector<16x128xf32>
    %161 = arith.addf %160, %159 : vector<16x128xf32>
    %162 = arith.divf %160, %161 : vector<16x128xf32>
    %c0_74 = arith.constant 0 : index
    %c0_75 = arith.constant 0 : index
    %163 = vector.load %arg8[%c0_74, %c0_75] : memref<16x128xf32, #tpu.memory_space<vmem>>, vector<16x128xf32>
    %164 = arith.mulf %162, %163 : vector<16x128xf32>
    %165 = arith.addf %164, %156 : vector<16x128xf32>
    %166 = vector.extract_strided_slice %147 {offsets = [0, 384], sizes = [16, 128], strides = [1, 1]} : vector<16x512xf32> to vector<16x128xf32>
    %167 = arith.negf %166 : vector<16x128xf32>
    %168 = math.exp %167 : vector<16x128xf32>
    %cst_76 = arith.constant 1.000000e+00 : f32
    %169 = vector.broadcast %cst_76 : f32 to vector<16x128xf32>
    %170 = arith.addf %169, %168 : vector<16x128xf32>
    %171 = arith.divf %169, %170 : vector<16x128xf32>
    %172 = math.tanh %165 : vector<16x128xf32>
    %173 = arith.mulf %171, %172 : vector<16x128xf32>
    %c0_77 = arith.constant 0 : index
    %c0_78 = arith.constant 0 : index
    %174 = vector.load %arg8[%c0_77, %c0_78] : memref<16x128xf32, #tpu.memory_space<vmem>>, vector<16x128xf32>
    tpu.vector_store %arg8[%c0_77, %c0_78], %165 {strides = array<i32>} : memref<16x128xf32, #tpu.memory_space<vmem>>, vector<16x128xf32>,
    %c0_79 = arith.constant 0 : index
    %c0_80 = arith.constant 0 : index
    %175 = vector.load %arg7[%c0_79, %c0_80] : memref<16x128xf32, #tpu.memory_space<vmem>>, vector<16x128xf32>
    tpu.vector_store %arg7[%c0_79, %c0_80], %173 {strides = array<i32>} : memref<16x128xf32, #tpu.memory_space<vmem>>, vector<16x128xf32>,
    %176 = arith.truncf %173 : vector<16x128xf32> to vector<16x128xbf16>
    %177 = arith.index_cast %c3_i32 : i32 to index
    %c0_81 = arith.constant 0 : index
    %c0_82 = arith.constant 0 : index
    %178 = vector.load %arg6[%177, %c0_81, %c0_82] : memref<8x16x128xbf16, #tpu.memory_space<vmem>>, vector<1x16x128xbf16>
    %179 = vector.shape_cast %178 : vector<1x16x128xbf16> to vector<16x128xbf16>
    %180 = vector.shape_cast %176 : vector<16x128xbf16> to vector<1x16x128xbf16>
    tpu.vector_store %arg6[%177, %c0_81, %c0_82], %180 {strides = array<i32>} : memref<8x16x128xbf16, #tpu.memory_space<vmem>>, vector<1x16x128xbf16>,
    %c4_i32 = arith.constant 4 : i32
    %c0_83 = arith.constant 0 : index
    %c0_84 = arith.constant 0 : index
    %181 = vector.load %arg7[%c0_83, %c0_84] : memref<16x128xf32, #tpu.memory_space<vmem>>, vector<16x128xf32>
    %182 = arith.truncf %181 : vector<16x128xf32> to vector<16x128xbf16>
    %c0_85 = arith.constant 0 : index
    %c0_86 = arith.constant 0 : index
    %183 = vector.load %arg4[%c0_85, %c0_86] : memref<128x512xbf16, #tpu.memory_space<vmem>>, vector<128x512xbf16>
    %cst_87 = arith.constant dense<0.000000e+00> : vector<16x512xf32>
    %184 = tpu.matmul %182, %183, %cst_87 {dimension_numbers = #tpu.dot_dimension_numbers<[1], [0], [0], [1], [0, 0, 1, 1], [], []>} : vector<16x128xbf16>, vector<128x512xbf16>, vector<16x512xf32> -> vector<16x512xf32>
    %185 = arith.index_cast %c4_i32 : i32 to index
    %c0_88 = arith.constant 0 : index
    %c0_89 = arith.constant 0 : index
    %186 = vector.load %arg9[%185, %c0_88, %c0_89] : memref<8x16x512xbf16, #tpu.memory_space<vmem>>, vector<1x16x512xbf16>
    %187 = vector.shape_cast %186 : vector<1x16x512xbf16> to vector<16x512xbf16>
    %188 = arith.extf %187 : vector<16x512xbf16> to vector<16x512xf32>
    %189 = arith.addf %184, %188 : vector<16x512xf32>
    %190 = vector.extract_strided_slice %189 {offsets = [0, 0], sizes = [16, 128], strides = [1, 1]} : vector<16x512xf32> to vector<16x128xf32>
    %191 = arith.negf %190 : vector<16x128xf32>
    %192 = math.exp %191 : vector<16x128xf32>
    %cst_90 = arith.constant 1.000000e+00 : f32
    %193 = vector.broadcast %cst_90 : f32 to vector<16x128xf32>
    %194 = arith.addf %193, %192 : vector<16x128xf32>
    %195 = arith.divf %193, %194 : vector<16x128xf32>
    %196 = vector.extract_strided_slice %189 {offsets = [0, 256], sizes = [16, 128], strides = [1, 1]} : vector<16x512xf32> to vector<16x128xf32>
    %197 = math.tanh %196 : vector<16x128xf32>
    %198 = arith.mulf %195, %197 : vector<16x128xf32>
    %199 = vector.extract_strided_slice %189 {offsets = [0, 128], sizes = [16, 128], strides = [1, 1]} : vector<16x512xf32> to vector<16x128xf32>
    %200 = arith.negf %199 : vector<16x128xf32>
    %201 = math.exp %200 : vector<16x128xf32>
    %cst_91 = arith.constant 1.000000e+00 : f32
    %202 = vector.broadcast %cst_91 : f32 to vector<16x128xf32>
    %203 = arith.addf %202, %201 : vector<16x128xf32>
    %204 = arith.divf %202, %203 : vector<16x128xf32>
    %c0_92 = arith.constant 0 : index
    %c0_93 = arith.constant 0 : index
    %205 = vector.load %arg8[%c0_92, %c0_93] : memref<16x128xf32, #tpu.memory_space<vmem>>, vector<16x128xf32>
    %206 = arith.mulf %204, %205 : vector<16x128xf32>
    %207 = arith.addf %206, %198 : vector<16x128xf32>
    %208 = vector.extract_strided_slice %189 {offsets = [0, 384], sizes = [16, 128], strides = [1, 1]} : vector<16x512xf32> to vector<16x128xf32>
    %209 = arith.negf %208 : vector<16x128xf32>
    %210 = math.exp %209 : vector<16x128xf32>
    %cst_94 = arith.constant 1.000000e+00 : f32
    %211 = vector.broadcast %cst_94 : f32 to vector<16x128xf32>
    %212 = arith.addf %211, %210 : vector<16x128xf32>
    %213 = arith.divf %211, %212 : vector<16x128xf32>
    %214 = math.tanh %207 : vector<16x128xf32>
    %215 = arith.mulf %213, %214 : vector<16x128xf32>
    %c0_95 = arith.constant 0 : index
    %c0_96 = arith.constant 0 : index
    %216 = vector.load %arg8[%c0_95, %c0_96] : memref<16x128xf32, #tpu.memory_space<vmem>>, vector<16x128xf32>
    tpu.vector_store %arg8[%c0_95, %c0_96], %207 {strides = array<i32>} : memref<16x128xf32, #tpu.memory_space<vmem>>, vector<16x128xf32>,
    %c0_97 = arith.constant 0 : index
    %c0_98 = arith.constant 0 : index
    %217 = vector.load %arg7[%c0_97, %c0_98] : memref<16x128xf32, #tpu.memory_space<vmem>>, vector<16x128xf32>
    tpu.vector_store %arg7[%c0_97, %c0_98], %215 {strides = array<i32>} : memref<16x128xf32, #tpu.memory_space<vmem>>, vector<16x128xf32>,
    %218 = arith.truncf %215 : vector<16x128xf32> to vector<16x128xbf16>
    %219 = arith.index_cast %c4_i32 : i32 to index
    %c0_99 = arith.constant 0 : index
    %c0_100 = arith.constant 0 : index
    %220 = vector.load %arg6[%219, %c0_99, %c0_100] : memref<8x16x128xbf16, #tpu.memory_space<vmem>>, vector<1x16x128xbf16>
    %221 = vector.shape_cast %220 : vector<1x16x128xbf16> to vector<16x128xbf16>
    %222 = vector.shape_cast %218 : vector<16x128xbf16> to vector<1x16x128xbf16>
    tpu.vector_store %arg6[%219, %c0_99, %c0_100], %222 {strides = array<i32>} : memref<8x16x128xbf16, #tpu.memory_space<vmem>>, vector<1x16x128xbf16>,
    %c5_i32 = arith.constant 5 : i32
    %c0_101 = arith.constant 0 : index
    %c0_102 = arith.constant 0 : index
    %223 = vector.load %arg7[%c0_101, %c0_102] : memref<16x128xf32, #tpu.memory_space<vmem>>, vector<16x128xf32>
    %224 = arith.truncf %223 : vector<16x128xf32> to vector<16x128xbf16>
    %c0_103 = arith.constant 0 : index
    %c0_104 = arith.constant 0 : index
    %225 = vector.load %arg4[%c0_103, %c0_104] : memref<128x512xbf16, #tpu.memory_space<vmem>>, vector<128x512xbf16>
    %cst_105 = arith.constant dense<0.000000e+00> : vector<16x512xf32>
    %226 = tpu.matmul %224, %225, %cst_105 {dimension_numbers = #tpu.dot_dimension_numbers<[1], [0], [0], [1], [0, 0, 1, 1], [], []>} : vector<16x128xbf16>, vector<128x512xbf16>, vector<16x512xf32> -> vector<16x512xf32>
    %227 = arith.index_cast %c5_i32 : i32 to index
    %c0_106 = arith.constant 0 : index
    %c0_107 = arith.constant 0 : index
    %228 = vector.load %arg9[%227, %c0_106, %c0_107] : memref<8x16x512xbf16, #tpu.memory_space<vmem>>, vector<1x16x512xbf16>
    %229 = vector.shape_cast %228 : vector<1x16x512xbf16> to vector<16x512xbf16>
    %230 = arith.extf %229 : vector<16x512xbf16> to vector<16x512xf32>
    %231 = arith.addf %226, %230 : vector<16x512xf32>
    %232 = vector.extract_strided_slice %231 {offsets = [0, 0], sizes = [16, 128], strides = [1, 1]} : vector<16x512xf32> to vector<16x128xf32>
    %233 = arith.negf %232 : vector<16x128xf32>
    %234 = math.exp %233 : vector<16x128xf32>
    %cst_108 = arith.constant 1.000000e+00 : f32
    %235 = vector.broadcast %cst_108 : f32 to vector<16x128xf32>
    %236 = arith.addf %235, %234 : vector<16x128xf32>
    %237 = arith.divf %235, %236 : vector<16x128xf32>
    %238 = vector.extract_strided_slice %231 {offsets = [0, 256], sizes = [16, 128], strides = [1, 1]} : vector<16x512xf32> to vector<16x128xf32>
    %239 = math.tanh %238 : vector<16x128xf32>
    %240 = arith.mulf %237, %239 : vector<16x128xf32>
    %241 = vector.extract_strided_slice %231 {offsets = [0, 128], sizes = [16, 128], strides = [1, 1]} : vector<16x512xf32> to vector<16x128xf32>
    %242 = arith.negf %241 : vector<16x128xf32>
    %243 = math.exp %242 : vector<16x128xf32>
    %cst_109 = arith.constant 1.000000e+00 : f32
    %244 = vector.broadcast %cst_109 : f32 to vector<16x128xf32>
    %245 = arith.addf %244, %243 : vector<16x128xf32>
    %246 = arith.divf %244, %245 : vector<16x128xf32>
    %c0_110 = arith.constant 0 : index
    %c0_111 = arith.constant 0 : index
    %247 = vector.load %arg8[%c0_110, %c0_111] : memref<16x128xf32, #tpu.memory_space<vmem>>, vector<16x128xf32>
    %248 = arith.mulf %246, %247 : vector<16x128xf32>
    %249 = arith.addf %248, %240 : vector<16x128xf32>
    %250 = vector.extract_strided_slice %231 {offsets = [0, 384], sizes = [16, 128], strides = [1, 1]} : vector<16x512xf32> to vector<16x128xf32>
    %251 = arith.negf %250 : vector<16x128xf32>
    %252 = math.exp %251 : vector<16x128xf32>
    %cst_112 = arith.constant 1.000000e+00 : f32
    %253 = vector.broadcast %cst_112 : f32 to vector<16x128xf32>
    %254 = arith.addf %253, %252 : vector<16x128xf32>
    %255 = arith.divf %253, %254 : vector<16x128xf32>
    %256 = math.tanh %249 : vector<16x128xf32>
    %257 = arith.mulf %255, %256 : vector<16x128xf32>
    %c0_113 = arith.constant 0 : index
    %c0_114 = arith.constant 0 : index
    %258 = vector.load %arg8[%c0_113, %c0_114] : memref<16x128xf32, #tpu.memory_space<vmem>>, vector<16x128xf32>
    tpu.vector_store %arg8[%c0_113, %c0_114], %249 {strides = array<i32>} : memref<16x128xf32, #tpu.memory_space<vmem>>, vector<16x128xf32>,
    %c0_115 = arith.constant 0 : index
    %c0_116 = arith.constant 0 : index
    %259 = vector.load %arg7[%c0_115, %c0_116] : memref<16x128xf32, #tpu.memory_space<vmem>>, vector<16x128xf32>
    tpu.vector_store %arg7[%c0_115, %c0_116], %257 {strides = array<i32>} : memref<16x128xf32, #tpu.memory_space<vmem>>, vector<16x128xf32>,
    %260 = arith.truncf %257 : vector<16x128xf32> to vector<16x128xbf16>
    %261 = arith.index_cast %c5_i32 : i32 to index
    %c0_117 = arith.constant 0 : index
    %c0_118 = arith.constant 0 : index
    %262 = vector.load %arg6[%261, %c0_117, %c0_118] : memref<8x16x128xbf16, #tpu.memory_space<vmem>>, vector<1x16x128xbf16>
    %263 = vector.shape_cast %262 : vector<1x16x128xbf16> to vector<16x128xbf16>
    %264 = vector.shape_cast %260 : vector<16x128xbf16> to vector<1x16x128xbf16>
    tpu.vector_store %arg6[%261, %c0_117, %c0_118], %264 {strides = array<i32>} : memref<8x16x128xbf16, #tpu.memory_space<vmem>>, vector<1x16x128xbf16>,
    %c6_i32 = arith.constant 6 : i32
    %c0_119 = arith.constant 0 : index
    %c0_120 = arith.constant 0 : index
    %265 = vector.load %arg7[%c0_119, %c0_120] : memref<16x128xf32, #tpu.memory_space<vmem>>, vector<16x128xf32>
    %266 = arith.truncf %265 : vector<16x128xf32> to vector<16x128xbf16>
    %c0_121 = arith.constant 0 : index
    %c0_122 = arith.constant 0 : index
    %267 = vector.load %arg4[%c0_121, %c0_122] : memref<128x512xbf16, #tpu.memory_space<vmem>>, vector<128x512xbf16>
    %cst_123 = arith.constant dense<0.000000e+00> : vector<16x512xf32>
    %268 = tpu.matmul %266, %267, %cst_123 {dimension_numbers = #tpu.dot_dimension_numbers<[1], [0], [0], [1], [0, 0, 1, 1], [], []>} : vector<16x128xbf16>, vector<128x512xbf16>, vector<16x512xf32> -> vector<16x512xf32>
    %269 = arith.index_cast %c6_i32 : i32 to index
    %c0_124 = arith.constant 0 : index
    %c0_125 = arith.constant 0 : index
    %270 = vector.load %arg9[%269, %c0_124, %c0_125] : memref<8x16x512xbf16, #tpu.memory_space<vmem>>, vector<1x16x512xbf16>
    %271 = vector.shape_cast %270 : vector<1x16x512xbf16> to vector<16x512xbf16>
    %272 = arith.extf %271 : vector<16x512xbf16> to vector<16x512xf32>
    %273 = arith.addf %268, %272 : vector<16x512xf32>
    %274 = vector.extract_strided_slice %273 {offsets = [0, 0], sizes = [16, 128], strides = [1, 1]} : vector<16x512xf32> to vector<16x128xf32>
    %275 = arith.negf %274 : vector<16x128xf32>
    %276 = math.exp %275 : vector<16x128xf32>
    %cst_126 = arith.constant 1.000000e+00 : f32
    %277 = vector.broadcast %cst_126 : f32 to vector<16x128xf32>
    %278 = arith.addf %277, %276 : vector<16x128xf32>
    %279 = arith.divf %277, %278 : vector<16x128xf32>
    %280 = vector.extract_strided_slice %273 {offsets = [0, 256], sizes = [16, 128], strides = [1, 1]} : vector<16x512xf32> to vector<16x128xf32>
    %281 = math.tanh %280 : vector<16x128xf32>
    %282 = arith.mulf %279, %281 : vector<16x128xf32>
    %283 = vector.extract_strided_slice %273 {offsets = [0, 128], sizes = [16, 128], strides = [1, 1]} : vector<16x512xf32> to vector<16x128xf32>
    %284 = arith.negf %283 : vector<16x128xf32>
    %285 = math.exp %284 : vector<16x128xf32>
    %cst_127 = arith.constant 1.000000e+00 : f32
    %286 = vector.broadcast %cst_127 : f32 to vector<16x128xf32>
    %287 = arith.addf %286, %285 : vector<16x128xf32>
    %288 = arith.divf %286, %287 : vector<16x128xf32>
    %c0_128 = arith.constant 0 : index
    %c0_129 = arith.constant 0 : index
    %289 = vector.load %arg8[%c0_128, %c0_129] : memref<16x128xf32, #tpu.memory_space<vmem>>, vector<16x128xf32>
    %290 = arith.mulf %288, %289 : vector<16x128xf32>
    %291 = arith.addf %290, %282 : vector<16x128xf32>
    %292 = vector.extract_strided_slice %273 {offsets = [0, 384], sizes = [16, 128], strides = [1, 1]} : vector<16x512xf32> to vector<16x128xf32>
    %293 = arith.negf %292 : vector<16x128xf32>
    %294 = math.exp %293 : vector<16x128xf32>
    %cst_130 = arith.constant 1.000000e+00 : f32
    %295 = vector.broadcast %cst_130 : f32 to vector<16x128xf32>
    %296 = arith.addf %295, %294 : vector<16x128xf32>
    %297 = arith.divf %295, %296 : vector<16x128xf32>
    %298 = math.tanh %291 : vector<16x128xf32>
    %299 = arith.mulf %297, %298 : vector<16x128xf32>
    %c0_131 = arith.constant 0 : index
    %c0_132 = arith.constant 0 : index
    %300 = vector.load %arg8[%c0_131, %c0_132] : memref<16x128xf32, #tpu.memory_space<vmem>>, vector<16x128xf32>
    tpu.vector_store %arg8[%c0_131, %c0_132], %291 {strides = array<i32>} : memref<16x128xf32, #tpu.memory_space<vmem>>, vector<16x128xf32>,
    %c0_133 = arith.constant 0 : index
    %c0_134 = arith.constant 0 : index
    %301 = vector.load %arg7[%c0_133, %c0_134] : memref<16x128xf32, #tpu.memory_space<vmem>>, vector<16x128xf32>
    tpu.vector_store %arg7[%c0_133, %c0_134], %299 {strides = array<i32>} : memref<16x128xf32, #tpu.memory_space<vmem>>, vector<16x128xf32>,
    %302 = arith.truncf %299 : vector<16x128xf32> to vector<16x128xbf16>
    %303 = arith.index_cast %c6_i32 : i32 to index
    %c0_135 = arith.constant 0 : index
    %c0_136 = arith.constant 0 : index
    %304 = vector.load %arg6[%303, %c0_135, %c0_136] : memref<8x16x128xbf16, #tpu.memory_space<vmem>>, vector<1x16x128xbf16>
    %305 = vector.shape_cast %304 : vector<1x16x128xbf16> to vector<16x128xbf16>
    %306 = vector.shape_cast %302 : vector<16x128xbf16> to vector<1x16x128xbf16>
    tpu.vector_store %arg6[%303, %c0_135, %c0_136], %306 {strides = array<i32>} : memref<8x16x128xbf16, #tpu.memory_space<vmem>>, vector<1x16x128xbf16>,
    %c7_i32 = arith.constant 7 : i32
    %c0_137 = arith.constant 0 : index
    %c0_138 = arith.constant 0 : index
    %307 = vector.load %arg7[%c0_137, %c0_138] : memref<16x128xf32, #tpu.memory_space<vmem>>, vector<16x128xf32>
    %308 = arith.truncf %307 : vector<16x128xf32> to vector<16x128xbf16>
    %c0_139 = arith.constant 0 : index
    %c0_140 = arith.constant 0 : index
    %309 = vector.load %arg4[%c0_139, %c0_140] : memref<128x512xbf16, #tpu.memory_space<vmem>>, vector<128x512xbf16>
    %cst_141 = arith.constant dense<0.000000e+00> : vector<16x512xf32>
    %310 = tpu.matmul %308, %309, %cst_141 {dimension_numbers = #tpu.dot_dimension_numbers<[1], [0], [0], [1], [0, 0, 1, 1], [], []>} : vector<16x128xbf16>, vector<128x512xbf16>, vector<16x512xf32> -> vector<16x512xf32>
    %311 = arith.index_cast %c7_i32 : i32 to index
    %c0_142 = arith.constant 0 : index
    %c0_143 = arith.constant 0 : index
    %312 = vector.load %arg9[%311, %c0_142, %c0_143] : memref<8x16x512xbf16, #tpu.memory_space<vmem>>, vector<1x16x512xbf16>
    %313 = vector.shape_cast %312 : vector<1x16x512xbf16> to vector<16x512xbf16>
    %314 = arith.extf %313 : vector<16x512xbf16> to vector<16x512xf32>
    %315 = arith.addf %310, %314 : vector<16x512xf32>
    %316 = vector.extract_strided_slice %315 {offsets = [0, 0], sizes = [16, 128], strides = [1, 1]} : vector<16x512xf32> to vector<16x128xf32>
    %317 = arith.negf %316 : vector<16x128xf32>
    %318 = math.exp %317 : vector<16x128xf32>
    %cst_144 = arith.constant 1.000000e+00 : f32
    %319 = vector.broadcast %cst_144 : f32 to vector<16x128xf32>
    %320 = arith.addf %319, %318 : vector<16x128xf32>
    %321 = arith.divf %319, %320 : vector<16x128xf32>
    %322 = vector.extract_strided_slice %315 {offsets = [0, 256], sizes = [16, 128], strides = [1, 1]} : vector<16x512xf32> to vector<16x128xf32>
    %323 = math.tanh %322 : vector<16x128xf32>
    %324 = arith.mulf %321, %323 : vector<16x128xf32>
    %325 = vector.extract_strided_slice %315 {offsets = [0, 128], sizes = [16, 128], strides = [1, 1]} : vector<16x512xf32> to vector<16x128xf32>
    %326 = arith.negf %325 : vector<16x128xf32>
    %327 = math.exp %326 : vector<16x128xf32>
    %cst_145 = arith.constant 1.000000e+00 : f32
    %328 = vector.broadcast %cst_145 : f32 to vector<16x128xf32>
    %329 = arith.addf %328, %327 : vector<16x128xf32>
    %330 = arith.divf %328, %329 : vector<16x128xf32>
    %c0_146 = arith.constant 0 : index
    %c0_147 = arith.constant 0 : index
    %331 = vector.load %arg8[%c0_146, %c0_147] : memref<16x128xf32, #tpu.memory_space<vmem>>, vector<16x128xf32>
    %332 = arith.mulf %330, %331 : vector<16x128xf32>
    %333 = arith.addf %332, %324 : vector<16x128xf32>
    %334 = vector.extract_strided_slice %315 {offsets = [0, 384], sizes = [16, 128], strides = [1, 1]} : vector<16x512xf32> to vector<16x128xf32>
    %335 = arith.negf %334 : vector<16x128xf32>
    %336 = math.exp %335 : vector<16x128xf32>
    %cst_148 = arith.constant 1.000000e+00 : f32
    %337 = vector.broadcast %cst_148 : f32 to vector<16x128xf32>
    %338 = arith.addf %337, %336 : vector<16x128xf32>
    %339 = arith.divf %337, %338 : vector<16x128xf32>
    %340 = math.tanh %333 : vector<16x128xf32>
    %341 = arith.mulf %339, %340 : vector<16x128xf32>
    %c0_149 = arith.constant 0 : index
    %c0_150 = arith.constant 0 : index
    %342 = vector.load %arg8[%c0_149, %c0_150] : memref<16x128xf32, #tpu.memory_space<vmem>>, vector<16x128xf32>
    tpu.vector_store %arg8[%c0_149, %c0_150], %333 {strides = array<i32>} : memref<16x128xf32, #tpu.memory_space<vmem>>, vector<16x128xf32>,
    %c0_151 = arith.constant 0 : index
    %c0_152 = arith.constant 0 : index
    %343 = vector.load %arg7[%c0_151, %c0_152] : memref<16x128xf32, #tpu.memory_space<vmem>>, vector<16x128xf32>
    tpu.vector_store %arg7[%c0_151, %c0_152], %341 {strides = array<i32>} : memref<16x128xf32, #tpu.memory_space<vmem>>, vector<16x128xf32>,
    %344 = arith.truncf %341 : vector<16x128xf32> to vector<16x128xbf16>
    %345 = arith.index_cast %c7_i32 : i32 to index
    %c0_153 = arith.constant 0 : index
    %c0_154 = arith.constant 0 : index
    %346 = vector.load %arg6[%345, %c0_153, %c0_154] : memref<8x16x128xbf16, #tpu.memory_space<vmem>>, vector<1x16x128xbf16>
    %347 = vector.shape_cast %346 : vector<1x16x128xbf16> to vector<16x128xbf16>
    %348 = vector.shape_cast %344 : vector<16x128xbf16> to vector<1x16x128xbf16>
    tpu.vector_store %arg6[%345, %c0_153, %c0_154], %348 {strides = array<i32>} : memref<8x16x128xbf16, #tpu.memory_space<vmem>>, vector<1x16x128xbf16>,
    %c8_i32 = arith.constant 8 : i32
    return
  }
  func.func @transform_0(%arg0: i32, %arg1: i32) -> (i32, i32, i32) {
    %c0_i32 = arith.constant 0 : i32
    %c0_i32_0 = arith.constant 0 : i32
    return %arg1, %arg0, %c0_i32 : i32, i32, i32
  }
  func.func @transform_1(%arg0: i32, %arg1: i32) -> (i32, i32) {
    %c0_i32 = arith.constant 0 : i32
    %c0_i32_0 = arith.constant 0 : i32
    %c0_i32_1 = arith.constant 0 : i32
    return %c0_i32, %c0_i32_0 : i32, i32
  }
  func.func @transform_2(%arg0: i32, %arg1: i32) -> (i32, i32) {
    %c0_i32 = arith.constant 0 : i32
    %c0_i32_0 = arith.constant 0 : i32
    %c0_i32_1 = arith.constant 0 : i32
    return %c0_i32, %c0_i32_0 : i32, i32
  }
  func.func @transform_3(%arg0: i32, %arg1: i32) -> (i32, i32) {
    %c0_i32 = arith.constant 0 : i32
    %c0_i32_0 = arith.constant 0 : i32
    %c0_i32_1 = arith.constant 0 : i32
    return %c0_i32, %c0_i32_0 : i32, i32
  }
  func.func @transform_4(%arg0: i32, %arg1: i32) -> (i32, i32, i32) {
    %c0_i32 = arith.constant 0 : i32
    %c0_i32_0 = arith.constant 0 : i32
    return %arg1, %arg0, %c0_i32 : i32, i32, i32
  }
}

</mosaic_0001>

<llo_original>
// kernel: lstm_nn_forward.5
$region0: #{lstm_nn_forward.5}
  #allocation0 [shape = 'u32[]', space=smem, size = 0x4, offset = 0x4, fixed_abs, tag = 'smem constant byte address 0x4 - core index']
  #allocation1 [shape = 'u32[144,128]{1,0:T(1,128)}', space=vmem, size = 0x12000, scoped, tag = 'internal scratch']
  %s0 = inlined_call_operand.vmem [shape: bf16[128,128], index: 0, kind: input, shape index: {}]
  %s1 = inlined_call_operand.vmem [shape: bf16[128,128], index: 1, kind: input, shape index: {}]
  %s2 = inlined_call_operand.vmem [shape: f32[1,128], index: 2, kind: input, shape index: {}]
  %s3 = inlined_call_operand.vmem [shape: f32[128,128], index: 3, kind: output, shape index: {}]
  %s4 = sld [smem:[#allocation0]]
  $region22: #{lstm_nn_forward.5} parent=0
    _
  %s6 = ssub.s32 1, %s4
  %s7 = scalar_select 0, %s6, %s4
  // Predicated region
  $region2: #{lstm_nn_forward.5} parent=0 // pred_check
    _
  $region3: #{lstm_nn_forward.5} parent=0 // pred_check_branch
    %9 = sbr.rel (0) target = $region5
  $region4: #{lstm_nn_forward.5} parent=0 // pred_region
    _
  $region5: #{lstm_nn_forward.5} parent=0 // pred_fallthru
    _
  // Predicated region
  $region6: #{lstm_nn_forward.5} parent=0 // pred_check
    _
  $region7: #{lstm_nn_forward.5} parent=0 // pred_check_branch
    %11 = sbr.rel (0) target = $region9
  $region8: #{lstm_nn_forward.5} parent=0 // pred_region
    _
  $region9: #{lstm_nn_forward.5} parent=0 // pred_fallthru
    _
  // Predicated region
  $region10: #{lstm_nn_forward.5} parent=0 // pred_check
    _
  $region11: #{lstm_nn_forward.5} parent=0 // pred_check_branch
    %13 = sbr.rel (0) target = $region13
  $region12: #{lstm_nn_forward.5} parent=0 // pred_region
    _
  $region13: #{lstm_nn_forward.5} parent=0 // pred_fallthru
    _
  %v15 = vld [vmem:[%s0] sm:$0xf]
  %v16 = vld [vmem:[%s0 + $0x4] sm:$0xf]
  %v17 = vld [vmem:[%s0 + $0x8] sm:$0xf]
  %v18 = vld [vmem:[%s0 + $0xc] sm:$0xf]
  %v19 = vld [vmem:[%s0 + $0x10] sm:$0xf]
  %v20 = vld [vmem:[%s0 + $0x14] sm:$0xf]
  %v21 = vld [vmem:[%s0 + $0x18] sm:$0xf]
  %v22 = vld [vmem:[%s0 + $0x1c] sm:$0xf]
  %v23 = vld [vmem:[%s0 + $0x20] sm:$0xf]
  %v24 = vld [vmem:[%s0 + $0x24] sm:$0xf]
  %v25 = vld [vmem:[%s0 + $0x28] sm:$0xf]
  %v26 = vld [vmem:[%s0 + $0x2c] sm:$0xf]
  %v27 = vld [vmem:[%s0 + $0x30] sm:$0xf]
  %v28 = vld [vmem:[%s0 + $0x34] sm:$0xf]
  %v29 = vld [vmem:[%s0 + $0x38] sm:$0xf]
  %v30 = vld [vmem:[%s0 + $0x3c] sm:$0xf]
  %v31 = vld [vmem:[%s1] sm:$0xf]
  %v32 = vld [vmem:[%s1 + $0x4] sm:$0xf]
  %v33 = vld [vmem:[%s1 + $0x8] sm:$0xf]
  %v34 = vld [vmem:[%s1 + $0xc] sm:$0xf]
  %v35 = vld [vmem:[%s1 + $0x10] sm:$0xf]
  %v36 = vld [vmem:[%s1 + $0x14] sm:$0xf]
  %v37 = vld [vmem:[%s1 + $0x18] sm:$0xf]
  %v38 = vld [vmem:[%s1 + $0x1c] sm:$0xf]
  %v39 = vld [vmem:[%s1 + $0x20] sm:$0xf]
  %v40 = vld [vmem:[%s1 + $0x24] sm:$0xf]
  %v41 = vld [vmem:[%s1 + $0x28] sm:$0xf]
  %v42 = vld [vmem:[%s1 + $0x2c] sm:$0xf]
  %v43 = vld [vmem:[%s1 + $0x30] sm:$0xf]
  %v44 = vld [vmem:[%s1 + $0x34] sm:$0xf]
  %v45 = vld [vmem:[%s1 + $0x38] sm:$0xf]
  %v46 = vld [vmem:[%s1 + $0x3c] sm:$0xf]
  %v47 = vld [vmem:[%s2] sm:$0x1]
  %v49 = vlaneseq
  %v50 = vshrl.u32 %v49, 7
  %v51 = vsub.s32 0, %v50
  %v52 = vrot.slane %v47, %v51
  %v70 = vunpack.c.l.b16 %v15
  %v71 = vunpack.c.l.b16 %v16
  %v72 = vunpack.c.l.b16 %v17
  %v73 = vunpack.c.l.b16 %v18
  %v74 = vunpack.c.l.b16 %v19
  %v75 = vunpack.c.l.b16 %v20
  %v76 = vunpack.c.l.b16 %v21
  %v77 = vunpack.c.l.b16 %v22
  %v78 = vunpack.c.l.b16 %v23
  %v79 = vunpack.c.l.b16 %v24
  %v80 = vunpack.c.l.b16 %v25
  %v81 = vunpack.c.l.b16 %v26
  %v82 = vunpack.c.l.b16 %v27
  %v83 = vunpack.c.l.b16 %v28
  %v84 = vunpack.c.l.b16 %v29
  %v85 = vunpack.c.l.b16 %v30
  %v86 = vpack.c.b16 %v71, %v70
  %v87 = vpack.c.b16 %v73, %v72
  %v88 = vpack.c.b16 %v75, %v74
  %v89 = vpack.c.b16 %v77, %v76
  %v90 = vpack.c.b16 %v79, %v78
  %v91 = vpack.c.b16 %v81, %v80
  %v92 = vpack.c.b16 %v83, %v82
  %v93 = vpack.c.b16 %v85, %v84
  %v118 = vunpack.c.l.b16 %v31
  %v119 = vunpack.c.l.b16 %v32
  %v120 = vunpack.c.l.b16 %v33
  %v121 = vunpack.c.l.b16 %v34
  %v122 = vunpack.c.l.b16 %v35
  %v123 = vunpack.c.l.b16 %v36
  %v124 = vunpack.c.l.b16 %v37
  %v125 = vunpack.c.l.b16 %v38
  %v126 = vunpack.c.l.b16 %v39
  %v127 = vunpack.c.l.b16 %v40
  %v128 = vunpack.c.l.b16 %v41
  %v129 = vunpack.c.l.b16 %v42
  %v130 = vunpack.c.l.b16 %v43
  %v131 = vunpack.c.l.b16 %v44
  %v132 = vunpack.c.l.b16 %v45
  %v133 = vunpack.c.l.b16 %v46
  %v134 = vpack.c.b16 %v119, %v118
  %v135 = vpack.c.b16 %v121, %v120
  %v136 = vpack.c.b16 %v123, %v122
  %v137 = vpack.c.b16 %v125, %v124
  %v138 = vpack.c.b16 %v127, %v126
  %v139 = vpack.c.b16 %v129, %v128
  %v140 = vpack.c.b16 %v131, %v130
  %v141 = vpack.c.b16 %v133, %v132
  %150 = vmatprep.subr.bf16.mxu0 0
  %151 = vmatpush1.bf16.msra.mxu0 %v141
  %152 = vmatprep.subr.bf16.mxu0 0
  %153 = vmatpush1.bf16.msra.mxu0 %v140
  %154 = vmatprep.subr.bf16.mxu0 0
  %155 = vmatpush1.bf16.msra.mxu0 %v139
  %156 = vmatprep.subr.bf16.mxu0 0
  %157 = vmatpush1.bf16.msra.mxu0 %v138
  %158 = vmatprep.subr.bf16.mxu0 0
  %159 = vmatpush1.bf16.msra.mxu0 %v137
  %160 = vmatprep.subr.bf16.mxu0 0
  %161 = vmatpush1.bf16.msra.mxu0 %v136
  %162 = vmatprep.subr.bf16.mxu0 0
  %163 = vmatpush1.bf16.msra.mxu0 %v135
  %164 = vmatprep.subr.bf16.mxu0 0
  %165 = vmatpush1.bf16.msra.mxu0 %v134
  %166 = vmatprep.subr.bf16.mxu0 0
  %167 = vmatpush2.bf16.msra.mxu0 0
  %168 = vmatprep.subr.bf16.mxu0 0
  %169 = vmatpush2.bf16.msra.mxu0 0
  %170 = vmatprep.subr.bf16.mxu0 0
  %171 = vmatpush2.bf16.msra.mxu0 0
  %172 = vmatprep.subr.bf16.mxu0 0
  %173 = vmatpush2.bf16.msra.mxu0 0
  %174 = vmatprep.subr.bf16.mxu0 0
  %175 = vmatpush2.bf16.msra.mxu0 0
  %176 = vmatprep.subr.bf16.mxu0 0
  %177 = vmatpush2.bf16.msra.mxu0 0
  %178 = vmatprep.subr.bf16.mxu0 0
  %179 = vmatpush2.bf16.msra.mxu0 0
  %180 = vmatprep.subr.bf16.mxu0 0
  %181 = vmatpush2.bf16.msra.mxu0 0
  %182 = vmatprep.mubr.bf16.mxu0 0
  %183 = vmatmul.mubr.bf16.gmra.mxu0 %v86
  %v184 = vpop.f32.mrf.mxu0
  %v185 = vadd.f32 %v52, %v184
  %v186 = vpop.f32.mrf.mxu0
  %v187 = vpop.f32.mrf.mxu0
  %v188 = vadd.f32 %v52, %v187
  %v189 = vpop.f32.mrf.mxu0
  %190 = vmatprep.mubr.bf16.mxu0 0
  %191 = vmatmul.mubr.bf16.gmra.mxu0 %v87
  %v192 = vpop.f32.mrf.mxu0
  %v193 = vadd.f32 %v52, %v192
  %v194 = vpop.f32.mrf.mxu0
  %v195 = vpop.f32.mrf.mxu0
  %v196 = vadd.f32 %v52, %v195
  %v197 = vpop.f32.mrf.mxu0
  %198 = vmatprep.mubr.bf16.mxu0 0
  %199 = vmatmul.mubr.bf16.gmra.mxu0 %v88
  %v200 = vpop.f32.mrf.mxu0
  %v201 = vadd.f32 %v52, %v200
  %v202 = vpop.f32.mrf.mxu0
  %v203 = vpop.f32.mrf.mxu0
  %v204 = vadd.f32 %v52, %v203
  %v205 = vpop.f32.mrf.mxu0
  %206 = vmatprep.mubr.bf16.mxu0 0
  %207 = vmatmul.mubr.bf16.gmra.mxu0 %v89
  %v208 = vpop.f32.mrf.mxu0
  %v209 = vadd.f32 %v52, %v208
  %v210 = vpop.f32.mrf.mxu0
  %v211 = vpop.f32.mrf.mxu0
  %v212 = vadd.f32 %v52, %v211
  %v213 = vpop.f32.mrf.mxu0
  %214 = vmatprep.mubr.bf16.mxu0 0
  %215 = vmatmul.mubr.bf16.gmra.mxu0 %v90
  %v216 = vpop.f32.mrf.mxu0
  %v217 = vadd.f32 %v52, %v216
  %v218 = vpop.f32.mrf.mxu0
  %v219 = vpop.f32.mrf.mxu0
  %v220 = vadd.f32 %v52, %v219
  %v221 = vpop.f32.mrf.mxu0
  %222 = vmatprep.mubr.bf16.mxu0 0
  %223 = vmatmul.mubr.bf16.gmra.mxu0 %v91
  %v224 = vpop.f32.mrf.mxu0
  %v225 = vadd.f32 %v52, %v224
  %v226 = vpop.f32.mrf.mxu0
  %v227 = vpop.f32.mrf.mxu0
  %v228 = vadd.f32 %v52, %v227
  %v229 = vpop.f32.mrf.mxu0
  %230 = vmatprep.mubr.bf16.mxu0 0
  %231 = vmatmul.mubr.bf16.gmra.mxu0 %v92
  %v232 = vpop.f32.mrf.mxu0
  %v233 = vadd.f32 %v52, %v232
  %v234 = vpop.f32.mrf.mxu0
  %v235 = vpop.f32.mrf.mxu0
  %v236 = vadd.f32 %v52, %v235
  %v237 = vpop.f32.mrf.mxu0
  %238 = vmatprep.mubr.bf16.mxu0 0
  %239 = vmatmul.mubr.bf16.gmra.mxu0 %v93
  %v240 = vpop.f32.mrf.mxu0
  %v241 = vadd.f32 %v52, %v240
  %v242 = vpop.f32.mrf.mxu0
  %v243 = vpop.f32.mrf.mxu0
  %v244 = vadd.f32 %v52, %v243
  %v245 = vpop.f32.mrf.mxu0
  %246 = vdwg.mxu0
  %247 = vst [vmem:[%s3] sm:$0xff] %v185
  %248 = vst [vmem:[%s3 + $0x8] sm:$0xff] %v188
  %249 = vst [vmem:[%s3 + $0x10] sm:$0xff] %v193
  %250 = vst [vmem:[%s3 + $0x18] sm:$0xff] %v196
  %251 = vst [vmem:[%s3 + $0x20] sm:$0xff] %v201
  %252 = vst [vmem:[%s3 + $0x28] sm:$0xff] %v204
  %253 = vst [vmem:[%s3 + $0x30] sm:$0xff] %v209
  %254 = vst [vmem:[%s3 + $0x38] sm:$0xff] %v212
  %255 = vst [vmem:[%s3 + $0x40] sm:$0xff] %v217
  %256 = vst [vmem:[%s3 + $0x48] sm:$0xff] %v220
  %257 = vst [vmem:[%s3 + $0x50] sm:$0xff] %v225
  %258 = vst [vmem:[%s3 + $0x58] sm:$0xff] %v228
  %259 = vst [vmem:[%s3 + $0x60] sm:$0xff] %v233
  %260 = vst [vmem:[%s3 + $0x68] sm:$0xff] %v236
  %261 = vst [vmem:[%s3 + $0x70] sm:$0xff] %v241
  %262 = vst [vmem:[%s3 + $0x78] sm:$0xff] %v244
  // Predicated region
  $region14: #{lstm_nn_forward.5} parent=0 // pred_check
    _
  $region15: #{lstm_nn_forward.5} parent=0 // pred_check_branch
    %264 = sbr.rel (0) target = $region17
  $region16: #{lstm_nn_forward.5} parent=0 // pred_region
    _
  $region17: #{lstm_nn_forward.5} parent=0 // pred_fallthru
    _
  // Predicated region
  $region18: #{lstm_nn_forward.5} parent=0 // pred_check
    _
  $region19: #{lstm_nn_forward.5} parent=0 // pred_check_branch
    %266 = sbr.rel (0) target = $region21
  $region20: #{lstm_nn_forward.5} parent=0 // pred_region
    _
  $region21: #{lstm_nn_forward.5} parent=0 // pred_fallthru
    _

// kernel: lstm_nn_forward.3
$region0: #{lstm_nn_forward.3}
  #allocation0 [shape = 'u32[]', space=smem, size = 0x4, offset = 0x4, fixed_abs, tag = 'smem constant byte address 0x4 - core index']
  #allocation1 [shape = 'u32[144,128]{1,0:T(1,128)}', space=vmem, size = 0x12000, scoped, tag = 'internal scratch']
  #allocation2 [shape = 'f32[16,128]{1,0:T(8,128)}', space=vmem, size = 0x2000, scoped, tag = 'scratch operand']
  #allocation3 [shape = 'f32[16,128]{1,0:T(8,128)}', space=vmem, size = 0x2000, scoped, tag = 'scratch operand']
  #allocation4 [shape = 'bf16[8,16,512]{2,1,0:T(8,128)(2,1)}', space=vmem, size = 0x20000, scoped, tag = 'scratch operand']
  %s0 = inlined_call_operand.vmem [shape: bf16[8,16,128], index: 0, kind: input, shape index: {}]
  %s1 = inlined_call_operand.vmem [shape: bf16[128,512], index: 1, kind: input, shape index: {}]
  %s2 = inlined_call_operand.vmem [shape: bf16[128,512], index: 2, kind: input, shape index: {}]
  %s3 = inlined_call_operand.vmem [shape: f32[1,512], index: 3, kind: input, shape index: {}]
  %s4 = inlined_call_operand.vmem [shape: bf16[8,16,128], index: 4, kind: output, shape index: {}]
  %s5 = sld [smem:[#allocation0]]
  $region30: #{lstm_nn_forward.3} parent=0
    _
  %s7 = ssub.s32 1, %s5
  %s8 = scalar_select 0, %s7, %s5
  // Predicated region
  $region2: #{lstm_nn_forward.3} parent=0 // pred_check
    _
  $region3: #{lstm_nn_forward.3} parent=0 // pred_check_branch
    %10 = sbr.rel (0) target = $region5
  $region4: #{lstm_nn_forward.3} parent=0 // pred_region
    _
  $region5: #{lstm_nn_forward.3} parent=0 // pred_fallthru
    _
  // Predicated region
  $region6: #{lstm_nn_forward.3} parent=0 // pred_check
    _
  $region7: #{lstm_nn_forward.3} parent=0 // pred_check_branch
    %12 = sbr.rel (0) target = $region9
  $region8: #{lstm_nn_forward.3} parent=0 // pred_region
    _
  $region9: #{lstm_nn_forward.3} parent=0 // pred_fallthru
    _
  // Predicated region
  $region10: #{lstm_nn_forward.3} parent=0 // pred_check
    _
  $region11: #{lstm_nn_forward.3} parent=0 // pred_check_branch
    %14 = sbr.rel (0) target = $region13
  $region12: #{lstm_nn_forward.3} parent=0 // pred_region
    _
  $region13: #{lstm_nn_forward.3} parent=0 // pred_fallthru
    _
  // Predicated region
  $region14: #{lstm_nn_forward.3} parent=0 // pred_check
    _
  $region15: #{lstm_nn_forward.3} parent=0 // pred_check_branch
    %16 = sbr.rel (0) target = $region17
  $region16: #{lstm_nn_forward.3} parent=0 // pred_region
    _
  $region17: #{lstm_nn_forward.3} parent=0 // pred_fallthru
    _
  %p18 = scmp.eq.s32.totalorder 0, 0
  // Predicated region
  $region18: #{lstm_nn_forward.3} parent=0 // pred_check
    %p19 = pneg %p18
  $region19: #{lstm_nn_forward.3} parent=0 // pred_check_branch
    %21 = sbr.rel (%p19) target = $region21
  $region20: #{lstm_nn_forward.3} parent=0 // pred_region
    %22 = vst [vmem:[#allocation2] sm:$0xff] 0.0
    %23 = vst [vmem:[#allocation2 + $0x8] sm:$0xff] 0.0
    %24 = vst [vmem:[#allocation3] sm:$0xff] 0.0
    %25 = vst [vmem:[#allocation3 + $0x8] sm:$0xff] 0.0
  $region21: #{lstm_nn_forward.3} parent=0 // pred_fallthru
    _
  %v26 = vld [vmem:[%s0] sm:$0xf]
  %v27 = vld [vmem:[%s0 + $0x4] sm:$0xf]
  %v28 = vld [vmem:[%s0 + $0x8] sm:$0xf]
  %v29 = vld [vmem:[%s0 + $0xc] sm:$0xf]
  %v30 = vld [vmem:[%s0 + $0x10] sm:$0xf]
  %v31 = vld [vmem:[%s0 + $0x14] sm:$0xf]
  %v32 = vld [vmem:[%s0 + $0x18] sm:$0xf]
  %v33 = vld [vmem:[%s0 + $0x1c] sm:$0xf]
  %v34 = vld [vmem:[%s0 + $0x20] sm:$0xf]
  %v35 = vld [vmem:[%s0 + $0x24] sm:$0xf]
  %v36 = vld [vmem:[%s0 + $0x28] sm:$0xf]
  %v37 = vld [vmem:[%s0 + $0x2c] sm:$0xf]
  %v38 = vld [vmem:[%s0 + $0x30] sm:$0xf]
  %v39 = vld [vmem:[%s0 + $0x34] sm:$0xf]
  %v40 = vld [vmem:[%s0 + $0x38] sm:$0xf]
  %v41 = vld [vmem:[%s0 + $0x3c] sm:$0xf]
  %v42 = vld [vmem:[%s1] sm:$0xff]
  %v43 = vld [vmem:[%s1 + $0x8] sm:$0xff]
  %v44 = vld [vmem:[%s1 + $0x10] sm:$0xff]
  %v45 = vld [vmem:[%s1 + $0x18] sm:$0xff]
  %v46 = vld [vmem:[%s1 + $0x20] sm:$0xff]
  %v47 = vld [vmem:[%s1 + $0x28] sm:$0xff]
  %v48 = vld [vmem:[%s1 + $0x30] sm:$0xff]
  %v49 = vld [vmem:[%s1 + $0x38] sm:$0xff]
  %v50 = vld [vmem:[%s1 + $0x40] sm:$0xff]
  %v51 = vld [vmem:[%s1 + $0x48] sm:$0xff]
  %v52 = vld [vmem:[%s1 + $0x50] sm:$0xff]
  %v53 = vld [vmem:[%s1 + $0x58] sm:$0xff]
  %v54 = vld [vmem:[%s1 + $0x60] sm:$0xff]
  %v55 = vld [vmem:[%s1 + $0x68] sm:$0xff]
  %v56 = vld [vmem:[%s1 + $0x70] sm:$0xff]
  %v57 = vld [vmem:[%s1 + $0x78] sm:$0xff]
  %v58 = vld [vmem:[%s1 + $0x80] sm:$0xff]
  %v59 = vld [vmem:[%s1 + $0x88] sm:$0xff]
  %v60 = vld [vmem:[%s1 + $0x90] sm:$0xff]
  %v61 = vld [vmem:[%s1 + $0x98] sm:$0xff]
  %v62 = vld [vmem:[%s1 + $0xa0] sm:$0xff]
  %v63 = vld [vmem:[%s1 + $0xa8] sm:$0xff]
  %v64 = vld [vmem:[%s1 + $0xb0] sm:$0xff]
  %v65 = vld [vmem:[%s1 + $0xb8] sm:$0xff]
  %v66 = vld [vmem:[%s1 + $0xc0] sm:$0xff]
  %v67 = vld [vmem:[%s1 + $0xc8] sm:$0xff]
  %v68 = vld [vmem:[%s1 + $0xd0] sm:$0xff]
  %v69 = vld [vmem:[%s1 + $0xd8] sm:$0xff]
  %v70 = vld [vmem:[%s1 + $0xe0] sm:$0xff]
  %v71 = vld [vmem:[%s1 + $0xe8] sm:$0xff]
  %v72 = vld [vmem:[%s1 + $0xf0] sm:$0xff]
  %v73 = vld [vmem:[%s1 + $0xf8] sm:$0xff]
  %v74 = vld [vmem:[%s3] sm:$0xf]
  %v76 = vlaneseq
  %v77 = vshrl.u32 %v76, 7
  %v78 = vsub.s32 0, %v77
  %v79 = vrot.slane %v74, %v78
  %v80 = vlaneseq
  %v81 = vshrl.u32 %v80, 7
  %v82 = vsub.s32 1, %v81
  %v83 = vrot.slane %v74, %v82
  %v84 = vlaneseq
  %v85 = vshrl.u32 %v84, 7
  %v86 = vsub.s32 2, %v85
  %v87 = vrot.slane %v74, %v86
  %v88 = vlaneseq
  %v89 = vshrl.u32 %v88, 7
  %v90 = vsub.s32 3, %v89
  %v91 = vrot.slane %v74, %v90
  %v112 = vunpack.c.l.b16 %v26
  %v113 = vunpack.c.l.b16 %v27
  %v114 = vunpack.c.l.b16 %v28
  %v115 = vunpack.c.l.b16 %v29
  %v116 = vunpack.c.l.b16 %v30
  %v117 = vunpack.c.l.b16 %v31
  %v118 = vunpack.c.l.b16 %v32
  %v119 = vunpack.c.l.b16 %v33
  %v120 = vunpack.c.l.b16 %v34
  %v121 = vunpack.c.l.b16 %v35
  %v122 = vunpack.c.l.b16 %v36
  %v123 = vunpack.c.l.b16 %v37
  %v124 = vunpack.c.l.b16 %v38
  %v125 = vunpack.c.l.b16 %v39
  %v126 = vunpack.c.l.b16 %v40
  %v127 = vunpack.c.l.b16 %v41
  %v128 = vpack.c.b16 %v113, %v112
  %v129 = vpack.c.b16 %v115, %v114
  %v130 = vpack.c.b16 %v117, %v116
  %v131 = vpack.c.b16 %v119, %v118
  %v132 = vpack.c.b16 %v121, %v120
  %v133 = vpack.c.b16 %v123, %v122
  %v134 = vpack.c.b16 %v125, %v124
  %v135 = vpack.c.b16 %v127, %v126
  %v176 = vunpack.c.l.b16 %v42
  %v177 = vunpack.c.h.b16 %v42
  %v178 = vunpack.c.l.b16 %v43
  %v179 = vunpack.c.h.b16 %v43
  %v180 = vunpack.c.l.b16 %v44
  %v181 = vunpack.c.h.b16 %v44
  %v182 = vunpack.c.l.b16 %v45
  %v183 = vunpack.c.h.b16 %v45
  %v184 = vunpack.c.l.b16 %v46
  %v185 = vunpack.c.h.b16 %v46
  %v186 = vunpack.c.l.b16 %v47
  %v187 = vunpack.c.h.b16 %v47
  %v188 = vunpack.c.l.b16 %v48
  %v189 = vunpack.c.h.b16 %v48
  %v190 = vunpack.c.l.b16 %v49
  %v191 = vunpack.c.h.b16 %v49
  %v192 = vunpack.c.l.b16 %v50
  %v193 = vunpack.c.h.b16 %v50
  %v194 = vunpack.c.l.b16 %v51
  %v195 = vunpack.c.h.b16 %v51
  %v196 = vunpack.c.l.b16 %v52
  %v197 = vunpack.c.h.b16 %v52
  %v198 = vunpack.c.l.b16 %v53
  %v199 = vunpack.c.h.b16 %v53
  %v200 = vunpack.c.l.b16 %v54
  %v201 = vunpack.c.h.b16 %v54
  %v202 = vunpack.c.l.b16 %v55
  %v203 = vunpack.c.h.b16 %v55
  %v204 = vunpack.c.l.b16 %v56
  %v205 = vunpack.c.h.b16 %v56
  %v206 = vunpack.c.l.b16 %v57
  %v207 = vunpack.c.h.b16 %v57
  %v208 = vunpack.c.l.b16 %v58
  %v209 = vunpack.c.h.b16 %v58
  %v210 = vunpack.c.l.b16 %v59
  %v211 = vunpack.c.h.b16 %v59
  %v212 = vunpack.c.l.b16 %v60
  %v213 = vunpack.c.h.b16 %v60
  %v214 = vunpack.c.l.b16 %v61
  %v215 = vunpack.c.h.b16 %v61
  %v216 = vunpack.c.l.b16 %v62
  %v217 = vunpack.c.h.b16 %v62
  %v218 = vunpack.c.l.b16 %v63
  %v219 = vunpack.c.h.b16 %v63
  %v220 = vunpack.c.l.b16 %v64
  %v221 = vunpack.c.h.b16 %v64
  %v222 = vunpack.c.l.b16 %v65
  %v223 = vunpack.c.h.b16 %v65
  %v224 = vunpack.c.l.b16 %v66
  %v225 = vunpack.c.h.b16 %v66
  %v226 = vunpack.c.l.b16 %v67
  %v227 = vunpack.c.h.b16 %v67
  %v228 = vunpack.c.l.b16 %v68
  %v229 = vunpack.c.h.b16 %v68
  %v230 = vunpack.c.l.b16 %v69
  %v231 = vunpack.c.h.b16 %v69
  %v232 = vunpack.c.l.b16 %v70
  %v233 = vunpack.c.h.b16 %v70
  %v234 = vunpack.c.l.b16 %v71
  %v235 = vunpack.c.h.b16 %v71
  %v236 = vunpack.c.l.b16 %v72
  %v237 = vunpack.c.h.b16 %v72
  %v238 = vunpack.c.l.b16 %v73
  %v239 = vunpack.c.h.b16 %v73
  %v240 = vpack.c.b16 %v180, %v176
  %v241 = vpack.c.b16 %v181, %v177
  %v242 = vpack.c.b16 %v182, %v178
  %v243 = vpack.c.b16 %v183, %v179
  %v244 = vpack.c.b16 %v188, %v184
  %v245 = vpack.c.b16 %v189, %v185
  %v246 = vpack.c.b16 %v190, %v186
  %v247 = vpack.c.b16 %v191, %v187
  %v248 = vpack.c.b16 %v196, %v192
  %v249 = vpack.c.b16 %v197, %v193
  %v250 = vpack.c.b16 %v198, %v194
  %v251 = vpack.c.b16 %v199, %v195
  %v252 = vpack.c.b16 %v204, %v200
  %v253 = vpack.c.b16 %v205, %v201
  %v254 = vpack.c.b16 %v206, %v202
  %v255 = vpack.c.b16 %v207, %v203
  %v256 = vpack.c.b16 %v212, %v208
  %v257 = vpack.c.b16 %v213, %v209
  %v258 = vpack.c.b16 %v214, %v210
  %v259 = vpack.c.b16 %v215, %v211
  %v260 = vpack.c.b16 %v220, %v216
  %v261 = vpack.c.b16 %v221, %v217
  %v262 = vpack.c.b16 %v222, %v218
  %v263 = vpack.c.b16 %v223, %v219
  %v264 = vpack.c.b16 %v228, %v224
  %v265 = vpack.c.b16 %v229, %v225
  %v266 = vpack.c.b16 %v230, %v226
  %v267 = vpack.c.b16 %v231, %v227
  %v268 = vpack.c.b16 %v236, %v232
  %v269 = vpack.c.b16 %v237, %v233
  %v270 = vpack.c.b16 %v238, %v234
  %v271 = vpack.c.b16 %v239, %v235
  %304 = vmatprep.subr.bf16.mxu0 %v269
  %305 = vmatpush1.bf16.msra.mxu0 %v268
  %306 = vmatprep.subr.bf16.mxu0 %v265
  %307 = vmatpush1.bf16.msra.mxu0 %v264
  %308 = vmatprep.subr.bf16.mxu0 %v261
  %309 = vmatpush1.bf16.msra.mxu0 %v260
  %310 = vmatprep.subr.bf16.mxu0 %v257
  %311 = vmatpush1.bf16.msra.mxu0 %v256
  %312 = vmatprep.subr.bf16.mxu0 %v253
  %313 = vmatpush1.bf16.msra.mxu0 %v252
  %314 = vmatprep.subr.bf16.mxu0 %v249
  %315 = vmatpush1.bf16.msra.mxu0 %v248
  %316 = vmatprep.subr.bf16.mxu0 %v245
  %317 = vmatpush1.bf16.msra.mxu0 %v244
  %318 = vmatprep.subr.bf16.mxu0 %v241
  %319 = vmatpush1.bf16.msra.mxu0 %v240
  %320 = vmatprep.subr.bf16.mxu0 0
  %321 = vmatpush2.bf16.msra.mxu0 0
  %322 = vmatprep.subr.bf16.mxu0 0
  %323 = vmatpush2.bf16.msra.mxu0 0
  %324 = vmatprep.subr.bf16.mxu0 0
  %325 = vmatpush2.bf16.msra.mxu0 0
  %326 = vmatprep.subr.bf16.mxu0 0
  %327 = vmatpush2.bf16.msra.mxu0 0
  %328 = vmatprep.subr.bf16.mxu0 0
  %329 = vmatpush2.bf16.msra.mxu0 0
  %330 = vmatprep.subr.bf16.mxu0 0
  %331 = vmatpush2.bf16.msra.mxu0 0
  %332 = vmatprep.subr.bf16.mxu0 0
  %333 = vmatpush2.bf16.msra.mxu0 0
  %334 = vmatprep.subr.bf16.mxu0 0
  %335 = vmatpush2.bf16.msra.mxu0 0
  %336 = vmatprep.mubr.bf16.mxu0 0
  %337 = vmatmul.mubr.bf16.gmra.mxu0 %v128
  %v338 = vpop.f32.mrf.mxu0
  %v339 = vadd.f32 %v79, %v338
  %v340 = vpop.f32.mrf.mxu0
  %v341 = vadd.f32 %v83, %v340
  %v342 = vpop.f32.mrf.mxu0
  %v343 = vadd.f32 %v79, %v342
  %v344 = vpop.f32.mrf.mxu0
  %v345 = vadd.f32 %v83, %v344
  %346 = vmatprep.mubr.bf16.mxu0 0
  %347 = vmatmul.mubr.bf16.gmra.mxu0 %v129
  %v348 = vpop.f32.mrf.mxu0
  %v349 = vadd.f32 %v79, %v348
  %v350 = vpop.f32.mrf.mxu0
  %v351 = vadd.f32 %v83, %v350
  %v352 = vpop.f32.mrf.mxu0
  %v353 = vadd.f32 %v79, %v352
  %v354 = vpop.f32.mrf.mxu0
  %v355 = vadd.f32 %v83, %v354
  %356 = vmatprep.mubr.bf16.mxu0 0
  %357 = vmatmul.mubr.bf16.gmra.mxu0 %v130
  %v358 = vpop.f32.mrf.mxu0
  %v359 = vadd.f32 %v79, %v358
  %v360 = vpop.f32.mrf.mxu0
  %v361 = vadd.f32 %v83, %v360
  %v362 = vpop.f32.mrf.mxu0
  %v363 = vadd.f32 %v79, %v362
  %v364 = vpop.f32.mrf.mxu0
  %v365 = vadd.f32 %v83, %v364
  %366 = vmatprep.mubr.bf16.mxu0 0
  %367 = vmatmul.mubr.bf16.gmra.mxu0 %v131
  %v368 = vpop.f32.mrf.mxu0
  %v369 = vadd.f32 %v79, %v368
  %v370 = vpop.f32.mrf.mxu0
  %v371 = vadd.f32 %v83, %v370
  %v372 = vpop.f32.mrf.mxu0
  %v373 = vadd.f32 %v79, %v372
  %v374 = vpop.f32.mrf.mxu0
  %v375 = vadd.f32 %v83, %v374
  %376 = vmatprep.mubr.bf16.mxu0 0
  %377 = vmatmul.mubr.bf16.gmra.mxu0 %v132
  %v378 = vpop.f32.mrf.mxu0
  %v379 = vadd.f32 %v79, %v378
  %v380 = vpop.f32.mrf.mxu0
  %v381 = vadd.f32 %v83, %v380
  %v382 = vpop.f32.mrf.mxu0
  %v383 = vadd.f32 %v79, %v382
  %v384 = vpop.f32.mrf.mxu0
  %v385 = vadd.f32 %v83, %v384
  %386 = vmatprep.mubr.bf16.mxu0 0
  %387 = vmatmul.mubr.bf16.gmra.mxu0 %v133
  %v388 = vpop.f32.mrf.mxu0
  %v389 = vadd.f32 %v79, %v388
  %v390 = vpop.f32.mrf.mxu0
  %v391 = vadd.f32 %v83, %v390
  %v392 = vpop.f32.mrf.mxu0
  %v393 = vadd.f32 %v79, %v392
  %v394 = vpop.f32.mrf.mxu0
  %v395 = vadd.f32 %v83, %v394
  %396 = vmatprep.mubr.bf16.mxu0 0
  %397 = vmatmul.mubr.bf16.gmra.mxu0 %v134
  %v398 = vpop.f32.mrf.mxu0
  %v399 = vadd.f32 %v79, %v398
  %v400 = vpop.f32.mrf.mxu0
  %v401 = vadd.f32 %v83, %v400
  %v402 = vpop.f32.mrf.mxu0
  %v403 = vadd.f32 %v79, %v402
  %v404 = vpop.f32.mrf.mxu0
  %v405 = vadd.f32 %v83, %v404
  %406 = vmatprep.mubr.bf16.mxu0 0
  %407 = vmatmul.mubr.bf16.gmra.mxu0 %v135
  %v408 = vpop.f32.mrf.mxu0
  %v409 = vadd.f32 %v79, %v408
  %v410 = vpop.f32.mrf.mxu0
  %v411 = vadd.f32 %v83, %v410
  %v412 = vpop.f32.mrf.mxu0
  %v413 = vadd.f32 %v79, %v412
  %v414 = vpop.f32.mrf.mxu0
  %v415 = vadd.f32 %v83, %v414
  %416 = vdwg.mxu0
  %417 = vmatprep.subr.bf16.mxu0 %v271
  %418 = vmatpush1.bf16.msra.mxu0 %v270
  %419 = vmatprep.subr.bf16.mxu0 %v267
  %420 = vmatpush1.bf16.msra.mxu0 %v266
  %421 = vmatprep.subr.bf16.mxu0 %v263
  %422 = vmatpush1.bf16.msra.mxu0 %v262
  %423 = vmatprep.subr.bf16.mxu0 %v259
  %424 = vmatpush1.bf16.msra.mxu0 %v258
  %425 = vmatprep.subr.bf16.mxu0 %v255
  %426 = vmatpush1.bf16.msra.mxu0 %v254
  %427 = vmatprep.subr.bf16.mxu0 %v251
  %428 = vmatpush1.bf16.msra.mxu0 %v250
  %429 = vmatprep.subr.bf16.mxu0 %v247
  %430 = vmatpush1.bf16.msra.mxu0 %v246
  %431 = vmatprep.subr.bf16.mxu0 %v243
  %432 = vmatpush1.bf16.msra.mxu0 %v242
  %433 = vmatprep.subr.bf16.mxu0 0
  %434 = vmatpush2.bf16.msra.mxu0 0
  %435 = vmatprep.subr.bf16.mxu0 0
  %436 = vmatpush2.bf16.msra.mxu0 0
  %437 = vmatprep.subr.bf16.mxu0 0
  %438 = vmatpush2.bf16.msra.mxu0 0
  %439 = vmatprep.subr.bf16.mxu0 0
  %440 = vmatpush2.bf16.msra.mxu0 0
  %441 = vmatprep.subr.bf16.mxu0 0
  %442 = vmatpush2.bf16.msra.mxu0 0
  %443 = vmatprep.subr.bf16.mxu0 0
  %444 = vmatpush2.bf16.msra.mxu0 0
  %445 = vmatprep.subr.bf16.mxu0 0
  %446 = vmatpush2.bf16.msra.mxu0 0
  %447 = vmatprep.subr.bf16.mxu0 0
  %448 = vmatpush2.bf16.msra.mxu0 0
  %449 = vmatprep.mubr.bf16.mxu0 0
  %450 = vmatmul.mubr.bf16.gmra.mxu0 %v128
  %v451 = vpop.f32.mrf.mxu0
  %v452 = vadd.f32 %v87, %v451
  %v453 = vpop.f32.mrf.mxu0
  %v454 = vadd.f32 %v91, %v453
  %v455 = vpop.f32.mrf.mxu0
  %v456 = vadd.f32 %v87, %v455
  %v457 = vpop.f32.mrf.mxu0
  %v458 = vadd.f32 %v91, %v457
  %459 = vmatprep.mubr.bf16.mxu0 0
  %460 = vmatmul.mubr.bf16.gmra.mxu0 %v129
  %v461 = vpop.f32.mrf.mxu0
  %v462 = vadd.f32 %v87, %v461
  %v463 = vpop.f32.mrf.mxu0
  %v464 = vadd.f32 %v91, %v463
  %v465 = vpop.f32.mrf.mxu0
  %v466 = vadd.f32 %v87, %v465
  %v467 = vpop.f32.mrf.mxu0
  %v468 = vadd.f32 %v91, %v467
  %469 = vmatprep.mubr.bf16.mxu0 0
  %470 = vmatmul.mubr.bf16.gmra.mxu0 %v130
  %v471 = vpop.f32.mrf.mxu0
  %v472 = vadd.f32 %v87, %v471
  %v473 = vpop.f32.mrf.mxu0
  %v474 = vadd.f32 %v91, %v473
  %v475 = vpop.f32.mrf.mxu0
  %v476 = vadd.f32 %v87, %v475
  %v477 = vpop.f32.mrf.mxu0
  %v478 = vadd.f32 %v91, %v477
  %479 = vmatprep.mubr.bf16.mxu0 0
  %480 = vmatmul.mubr.bf16.gmra.mxu0 %v131
  %v481 = vpop.f32.mrf.mxu0
  %v482 = vadd.f32 %v87, %v481
  %v483 = vpop.f32.mrf.mxu0
  %v484 = vadd.f32 %v91, %v483
  %v485 = vpop.f32.mrf.mxu0
  %v486 = vadd.f32 %v87, %v485
  %v487 = vpop.f32.mrf.mxu0
  %v488 = vadd.f32 %v91, %v487
  %489 = vmatprep.mubr.bf16.mxu0 0
  %490 = vmatmul.mubr.bf16.gmra.mxu0 %v132
  %v491 = vpop.f32.mrf.mxu0
  %v492 = vadd.f32 %v87, %v491
  %v493 = vpop.f32.mrf.mxu0
  %v494 = vadd.f32 %v91, %v493
  %v495 = vpop.f32.mrf.mxu0
  %v496 = vadd.f32 %v87, %v495
  %v497 = vpop.f32.mrf.mxu0
  %v498 = vadd.f32 %v91, %v497
  %499 = vmatprep.mubr.bf16.mxu0 0
  %500 = vmatmul.mubr.bf16.gmra.mxu0 %v133
  %v501 = vpop.f32.mrf.mxu0
  %v502 = vadd.f32 %v87, %v501
  %v503 = vpop.f32.mrf.mxu0
  %v504 = vadd.f32 %v91, %v503
  %v505 = vpop.f32.mrf.mxu0
  %v506 = vadd.f32 %v87, %v505
  %v507 = vpop.f32.mrf.mxu0
  %v508 = vadd.f32 %v91, %v507
  %509 = vmatprep.mubr.bf16.mxu0 0
  %510 = vmatmul.mubr.bf16.gmra.mxu0 %v134
  %v511 = vpop.f32.mrf.mxu0
  %v512 = vadd.f32 %v87, %v511
  %v513 = vpop.f32.mrf.mxu0
  %v514 = vadd.f32 %v91, %v513
  %v515 = vpop.f32.mrf.mxu0
  %v516 = vadd.f32 %v87, %v515
  %v517 = vpop.f32.mrf.mxu0
  %v518 = vadd.f32 %v91, %v517
  %519 = vmatprep.mubr.bf16.mxu0 0
  %520 = vmatmul.mubr.bf16.gmra.mxu0 %v135
  %v521 = vpop.f32.mrf.mxu0
  %v522 = vadd.f32 %v87, %v521
  %v523 = vpop.f32.mrf.mxu0
  %v524 = vadd.f32 %v91, %v523
  %v525 = vpop.f32.mrf.mxu0
  %v526 = vadd.f32 %v87, %v525
  %v527 = vpop.f32.mrf.mxu0
  %v528 = vadd.f32 %v91, %v527
  %529 = vdwg.mxu0
  %v530 = vpack.c.bf16 %v343, %v339
  %v531 = vpack.c.bf16 %v345, %v341
  %v532 = vpack.c.bf16 %v456, %v452
  %v533 = vpack.c.bf16 %v458, %v454
  %v534 = vpack.c.bf16 %v353, %v349
  %v535 = vpack.c.bf16 %v355, %v351
  %v536 = vpack.c.bf16 %v466, %v462
  %v537 = vpack.c.bf16 %v468, %v464
  %v538 = vpack.c.bf16 %v363, %v359
  %v539 = vpack.c.bf16 %v365, %v361
  %v540 = vpack.c.bf16 %v476, %v472
  %v541 = vpack.c.bf16 %v478, %v474
  %v542 = vpack.c.bf16 %v373, %v369
  %v543 = vpack.c.bf16 %v375, %v371
  %v544 = vpack.c.bf16 %v486, %v482
  %v545 = vpack.c.bf16 %v488, %v484
  %v546 = vpack.c.bf16 %v383, %v379
  %v547 = vpack.c.bf16 %v385, %v381
  %v548 = vpack.c.bf16 %v496, %v492
  %v549 = vpack.c.bf16 %v498, %v494
  %v550 = vpack.c.bf16 %v393, %v389
  %v551 = vpack.c.bf16 %v395, %v391
  %v552 = vpack.c.bf16 %v506, %v502
  %v553 = vpack.c.bf16 %v508, %v504
  %v554 = vpack.c.bf16 %v403, %v399
  %v555 = vpack.c.bf16 %v405, %v401
  %v556 = vpack.c.bf16 %v516, %v512
  %v557 = vpack.c.bf16 %v518, %v514
  %v558 = vpack.c.bf16 %v413, %v409
  %v559 = vpack.c.bf16 %v415, %v411
  %v560 = vpack.c.bf16 %v526, %v522
  %v561 = vpack.c.bf16 %v528, %v524
  %v594 = vunpack.c.l.b16 %v530
  %v595 = vunpack.c.l.b16 %v531
  %v596 = vunpack.c.l.b16 %v532
  %v597 = vunpack.c.l.b16 %v533
  %v598 = vunpack.c.h.b16 %v530
  %v599 = vunpack.c.h.b16 %v531
  %v600 = vunpack.c.h.b16 %v532
  %v601 = vunpack.c.h.b16 %v533
  %v602 = vunpack.c.l.b16 %v534
  %v603 = vunpack.c.l.b16 %v535
  %v604 = vunpack.c.l.b16 %v536
  %v605 = vunpack.c.l.b16 %v537
  %v606 = vunpack.c.h.b16 %v534
  %v607 = vunpack.c.h.b16 %v535
  %v608 = vunpack.c.h.b16 %v536
  %v609 = vunpack.c.h.b16 %v537
  %v610 = vunpack.c.l.b16 %v538
  %v611 = vunpack.c.l.b16 %v539
  %v612 = vunpack.c.l.b16 %v540
  %v613 = vunpack.c.l.b16 %v541
  %v614 = vunpack.c.h.b16 %v538
  %v615 = vunpack.c.h.b16 %v539
  %v616 = vunpack.c.h.b16 %v540
  %v617 = vunpack.c.h.b16 %v541
  %v618 = vunpack.c.l.b16 %v542
  %v619 = vunpack.c.l.b16 %v543
  %v620 = vunpack.c.l.b16 %v544
  %v621 = vunpack.c.l.b16 %v545
  %v622 = vunpack.c.h.b16 %v542
  %v623 = vunpack.c.h.b16 %v543
  %v624 = vunpack.c.h.b16 %v544
  %v625 = vunpack.c.h.b16 %v545
  %v626 = vunpack.c.l.b16 %v546
  %v627 = vunpack.c.l.b16 %v547
  %v628 = vunpack.c.l.b16 %v548
  %v629 = vunpack.c.l.b16 %v549
  %v630 = vunpack.c.h.b16 %v546
  %v631 = vunpack.c.h.b16 %v547
  %v632 = vunpack.c.h.b16 %v548
  %v633 = vunpack.c.h.b16 %v549
  %v634 = vunpack.c.l.b16 %v550
  %v635 = vunpack.c.l.b16 %v551
  %v636 = vunpack.c.l.b16 %v552
  %v637 = vunpack.c.l.b16 %v553
  %v638 = vunpack.c.h.b16 %v550
  %v639 = vunpack.c.h.b16 %v551
  %v640 = vunpack.c.h.b16 %v552
  %v641 = vunpack.c.h.b16 %v553
  %v642 = vunpack.c.l.b16 %v554
  %v643 = vunpack.c.l.b16 %v555
  %v644 = vunpack.c.l.b16 %v556
  %v645 = vunpack.c.l.b16 %v557
  %v646 = vunpack.c.h.b16 %v554
  %v647 = vunpack.c.h.b16 %v555
  %v648 = vunpack.c.h.b16 %v556
  %v649 = vunpack.c.h.b16 %v557
  %v650 = vunpack.c.l.b16 %v558
  %v651 = vunpack.c.l.b16 %v559
  %v652 = vunpack.c.l.b16 %v560
  %v653 = vunpack.c.l.b16 %v561
  %v654 = vunpack.c.h.b16 %v558
  %v655 = vunpack.c.h.b16 %v559
  %v656 = vunpack.c.h.b16 %v560
  %v657 = vunpack.c.h.b16 %v561
  %v658 = vpack.c.b16 %v595, %v594
  %v659 = vpack.c.b16 %v597, %v596
  %v660 = vpack.c.b16 %v599, %v598
  %v661 = vpack.c.b16 %v601, %v600
  %v662 = vpack.c.b16 %v603, %v602
  %v663 = vpack.c.b16 %v605, %v604
  %v664 = vpack.c.b16 %v607, %v606
  %v665 = vpack.c.b16 %v609, %v608
  %v666 = vpack.c.b16 %v611, %v610
  %v667 = vpack.c.b16 %v613, %v612
  %v668 = vpack.c.b16 %v615, %v614
  %v669 = vpack.c.b16 %v617, %v616
  %v670 = vpack.c.b16 %v619, %v618
  %v671 = vpack.c.b16 %v621, %v620
  %v672 = vpack.c.b16 %v623, %v622
  %v673 = vpack.c.b16 %v625, %v624
  %v674 = vpack.c.b16 %v627, %v626
  %v675 = vpack.c.b16 %v629, %v628
  %v676 = vpack.c.b16 %v631, %v630
  %v677 = vpack.c.b16 %v633, %v632
  %v678 = vpack.c.b16 %v635, %v634
  %v679 = vpack.c.b16 %v637, %v636
  %v680 = vpack.c.b16 %v639, %v638
  %v681 = vpack.c.b16 %v641, %v640
  %v682 = vpack.c.b16 %v643, %v642
  %v683 = vpack.c.b16 %v645, %v644
  %v684 = vpack.c.b16 %v647, %v646
  %v685 = vpack.c.b16 %v649, %v648
  %v686 = vpack.c.b16 %v651, %v650
  %v687 = vpack.c.b16 %v653, %v652
  %v688 = vpack.c.b16 %v655, %v654
  %v689 = vpack.c.b16 %v657, %v656
  %722 = vst [vmem:[#allocation4] sm:$0xff] %v658
  %723 = vst [vmem:[#allocation4 + $0x8] sm:$0xff] %v659
  %724 = vst [vmem:[#allocation4 + $0x10] sm:$0xff] %v660
  %725 = vst [vmem:[#allocation4 + $0x18] sm:$0xff] %v661
  %726 = vst [vmem:[#allocation4 + $0x20] sm:$0xff] %v662
  %727 = vst [vmem:[#allocation4 + $0x28] sm:$0xff] %v663
  %728 = vst [vmem:[#allocation4 + $0x30] sm:$0xff] %v664
  %729 = vst [vmem:[#allocation4 + $0x38] sm:$0xff] %v665
  %730 = vst [vmem:[#allocation4 + $0x40] sm:$0xff] %v666
  %731 = vst [vmem:[#allocation4 + $0x48] sm:$0xff] %v667
  %732 = vst [vmem:[#allocation4 + $0x50] sm:$0xff] %v668
  %733 = vst [vmem:[#allocation4 + $0x58] sm:$0xff] %v669
  %734 = vst [vmem:[#allocation4 + $0x60] sm:$0xff] %v670
  %735 = vst [vmem:[#allocation4 + $0x68] sm:$0xff] %v671
  %736 = vst [vmem:[#allocation4 + $0x70] sm:$0xff] %v672
  %737 = vst [vmem:[#allocation4 + $0x78] sm:$0xff] %v673
  %738 = vst [vmem:[#allocation4 + $0x80] sm:$0xff] %v674
  %739 = vst [vmem:[#allocation4 + $0x88] sm:$0xff] %v675
  %740 = vst [vmem:[#allocation4 + $0x90] sm:$0xff] %v676
  %741 = vst [vmem:[#allocation4 + $0x98] sm:$0xff] %v677
  %742 = vst [vmem:[#allocation4 + $0xa0] sm:$0xff] %v678
  %743 = vst [vmem:[#allocation4 + $0xa8] sm:$0xff] %v679
  %744 = vst [vmem:[#allocation4 + $0xb0] sm:$0xff] %v680
  %745 = vst [vmem:[#allocation4 + $0xb8] sm:$0xff] %v681
  %746 = vst [vmem:[#allocation4 + $0xc0] sm:$0xff] %v682
  %747 = vst [vmem:[#allocation4 + $0xc8] sm:$0xff] %v683
  %748 = vst [vmem:[#allocation4 + $0xd0] sm:$0xff] %v684
  %749 = vst [vmem:[#allocation4 + $0xd8] sm:$0xff] %v685
  %750 = vst [vmem:[#allocation4 + $0xe0] sm:$0xff] %v686
  %751 = vst [vmem:[#allocation4 + $0xe8] sm:$0xff] %v687
  %752 = vst [vmem:[#allocation4 + $0xf0] sm:$0xff] %v688
  %753 = vst [vmem:[#allocation4 + $0xf8] sm:$0xff] %v689
  %v754 = vld [vmem:[#allocation2] sm:$0xff]
  %v755 = vld [vmem:[#allocation2 + $0x8] sm:$0xff]
  %v756 = vpack.c.bf16 %v755, %v754
  %v757 = vld [vmem:[%s2] sm:$0xff]
  %v758 = vld [vmem:[%s2 + $0x8] sm:$0xff]
  %v759 = vld [vmem:[%s2 + $0x10] sm:$0xff]
  %v760 = vld [vmem:[%s2 + $0x18] sm:$0xff]
  %v761 = vld [vmem:[%s2 + $0x20] sm:$0xff]
  %v762 = vld [vmem:[%s2 + $0x28] sm:$0xff]
  %v763 = vld [vmem:[%s2 + $0x30] sm:$0xff]
  %v764 = vld [vmem:[%s2 + $0x38] sm:$0xff]
  %v765 = vld [vmem:[%s2 + $0x40] sm:$0xff]
  %v766 = vld [vmem:[%s2 + $0x48] sm:$0xff]
  %v767 = vld [vmem:[%s2 + $0x50] sm:$0xff]
  %v768 = vld [vmem:[%s2 + $0x58] sm:$0xff]
  %v769 = vld [vmem:[%s2 + $0x60] sm:$0xff]
  %v770 = vld [vmem:[%s2 + $0x68] sm:$0xff]
  %v771 = vld [vmem:[%s2 + $0x70] sm:$0xff]
  %v772 = vld [vmem:[%s2 + $0x78] sm:$0xff]
  %v773 = vld [vmem:[%s2 + $0x80] sm:$0xff]
  %v774 = vld [vmem:[%s2 + $0x88] sm:$0xff]
  %v775 = vld [vmem:[%s2 + $0x90] sm:$0xff]
  %v776 = vld [vmem:[%s2 + $0x98] sm:$0xff]
  %v777 = vld [vmem:[%s2 + $0xa0] sm:$0xff]
  %v778 = vld [vmem:[%s2 + $0xa8] sm:$0xff]
  %v779 = vld [vmem:[%s2 + $0xb0] sm:$0xff]
  %v780 = vld [vmem:[%s2 + $0xb8] sm:$0xff]
  %v781 = vld [vmem:[%s2 + $0xc0] sm:$0xff]
  %v782 = vld [vmem:[%s2 + $0xc8] sm:$0xff]
  %v783 = vld [vmem:[%s2 + $0xd0] sm:$0xff]
  %v784 = vld [vmem:[%s2 + $0xd8] sm:$0xff]
  %v785 = vld [vmem:[%s2 + $0xe0] sm:$0xff]
  %v786 = vld [vmem:[%s2 + $0xe8] sm:$0xff]
  %v787 = vld [vmem:[%s2 + $0xf0] sm:$0xff]
  %v788 = vld [vmem:[%s2 + $0xf8] sm:$0xff]
  %v789 = vld [vmem:[#allocation4] sm:$0xff]
  %v790 = vld [vmem:[#allocation4 + $0x8] sm:$0xff]
  %v791 = vld [vmem:[#allocation4 + $0x10] sm:$0xff]
  %v792 = vld [vmem:[#allocation4 + $0x18] sm:$0xff]
  %v793 = vunpack.c.l.bf16 %v789
  %v794 = vunpack.c.h.bf16 %v789
  %v795 = vunpack.c.l.bf16 %v790
  %v796 = vunpack.c.h.bf16 %v790
  %v797 = vunpack.c.l.bf16 %v791
  %v798 = vunpack.c.h.bf16 %v791
  %v799 = vunpack.c.l.bf16 %v792
  %v800 = vunpack.c.h.bf16 %v792
  %v833 = vunpack.c.l.b16 %v757
  %v834 = vunpack.c.h.b16 %v757
  %v835 = vunpack.c.l.b16 %v758
  %v836 = vunpack.c.h.b16 %v758
  %v837 = vunpack.c.l.b16 %v759
  %v838 = vunpack.c.h.b16 %v759
  %v839 = vunpack.c.l.b16 %v760
  %v840 = vunpack.c.h.b16 %v760
  %v841 = vunpack.c.l.b16 %v761
  %v842 = vunpack.c.h.b16 %v761
  %v843 = vunpack.c.l.b16 %v762
  %v844 = vunpack.c.h.b16 %v762
  %v845 = vunpack.c.l.b16 %v763
  %v846 = vunpack.c.h.b16 %v763
  %v847 = vunpack.c.l.b16 %v764
  %v848 = vunpack.c.h.b16 %v764
  %v849 = vunpack.c.l.b16 %v765
  %v850 = vunpack.c.h.b16 %v765
  %v851 = vunpack.c.l.b16 %v766
  %v852 = vunpack.c.h.b16 %v766
  %v853 = vunpack.c.l.b16 %v767
  %v854 = vunpack.c.h.b16 %v767
  %v855 = vunpack.c.l.b16 %v768
  %v856 = vunpack.c.h.b16 %v768
  %v857 = vunpack.c.l.b16 %v769
  %v858 = vunpack.c.h.b16 %v769
  %v859 = vunpack.c.l.b16 %v770
  %v860 = vunpack.c.h.b16 %v770
  %v861 = vunpack.c.l.b16 %v771
  %v862 = vunpack.c.h.b16 %v771
  %v863 = vunpack.c.l.b16 %v772
  %v864 = vunpack.c.h.b16 %v772
  %v865 = vunpack.c.l.b16 %v773
  %v866 = vunpack.c.h.b16 %v773
  %v867 = vunpack.c.l.b16 %v774
  %v868 = vunpack.c.h.b16 %v774
  %v869 = vunpack.c.l.b16 %v775
  %v870 = vunpack.c.h.b16 %v775
  %v871 = vunpack.c.l.b16 %v776
  %v872 = vunpack.c.h.b16 %v776
  %v873 = vunpack.c.l.b16 %v777
  %v874 = vunpack.c.h.b16 %v777
  %v875 = vunpack.c.l.b16 %v778
  %v876 = vunpack.c.h.b16 %v778
  %v877 = vunpack.c.l.b16 %v779
  %v878 = vunpack.c.h.b16 %v779
  %v879 = vunpack.c.l.b16 %v780
  %v880 = vunpack.c.h.b16 %v780
  %v881 = vunpack.c.l.b16 %v781
  %v882 = vunpack.c.h.b16 %v781
  %v883 = vunpack.c.l.b16 %v782
  %v884 = vunpack.c.h.b16 %v782
  %v885 = vunpack.c.l.b16 %v783
  %v886 = vunpack.c.h.b16 %v783
  %v887 = vunpack.c.l.b16 %v784
  %v888 = vunpack.c.h.b16 %v784
  %v889 = vunpack.c.l.b16 %v785
  %v890 = vunpack.c.h.b16 %v785
  %v891 = vunpack.c.l.b16 %v786
  %v892 = vunpack.c.h.b16 %v786
  %v893 = vunpack.c.l.b16 %v787
  %v894 = vunpack.c.h.b16 %v787
  %v895 = vunpack.c.l.b16 %v788
  %v896 = vunpack.c.h.b16 %v788
  %v897 = vpack.c.b16 %v837, %v833
  %v898 = vpack.c.b16 %v838, %v834
  %v899 = vpack.c.b16 %v839, %v835
  %v900 = vpack.c.b16 %v840, %v836
  %v901 = vpack.c.b16 %v845, %v841
  %v902 = vpack.c.b16 %v846, %v842
  %v903 = vpack.c.b16 %v847, %v843
  %v904 = vpack.c.b16 %v848, %v844
  %v905 = vpack.c.b16 %v853, %v849
  %v906 = vpack.c.b16 %v854, %v850
  %v907 = vpack.c.b16 %v855, %v851
  %v908 = vpack.c.b16 %v856, %v852
  %v909 = vpack.c.b16 %v861, %v857
  %v910 = vpack.c.b16 %v862, %v858
  %v911 = vpack.c.b16 %v863, %v859
  %v912 = vpack.c.b16 %v864, %v860
  %v913 = vpack.c.b16 %v869, %v865
  %v914 = vpack.c.b16 %v870, %v866
  %v915 = vpack.c.b16 %v871, %v867
  %v916 = vpack.c.b16 %v872, %v868
  %v917 = vpack.c.b16 %v877, %v873
  %v918 = vpack.c.b16 %v878, %v874
  %v919 = vpack.c.b16 %v879, %v875
  %v920 = vpack.c.b16 %v880, %v876
  %v921 = vpack.c.b16 %v885, %v881
  %v922 = vpack.c.b16 %v886, %v882
  %v923 = vpack.c.b16 %v887, %v883
  %v924 = vpack.c.b16 %v888, %v884
  %v925 = vpack.c.b16 %v893, %v889
  %v926 = vpack.c.b16 %v894, %v890
  %v927 = vpack.c.b16 %v895, %v891
  %v928 = vpack.c.b16 %v896, %v892
  %961 = vmatprep.subr.bf16.mxu0 %v926
  %962 = vmatpush1.bf16.msra.mxu0 %v925
  %963 = vmatprep.subr.bf16.mxu0 %v922
  %964 = vmatpush1.bf16.msra.mxu0 %v921
  %965 = vmatprep.subr.bf16.mxu0 %v918
  %966 = vmatpush1.bf16.msra.mxu0 %v917
  %967 = vmatprep.subr.bf16.mxu0 %v914
  %968 = vmatpush1.bf16.msra.mxu0 %v913
  %969 = vmatprep.subr.bf16.mxu0 %v910
  %970 = vmatpush1.bf16.msra.mxu0 %v909
  %971 = vmatprep.subr.bf16.mxu0 %v906
  %972 = vmatpush1.bf16.msra.mxu0 %v905
  %973 = vmatprep.subr.bf16.mxu0 %v902
  %974 = vmatpush1.bf16.msra.mxu0 %v901
  %975 = vmatprep.subr.bf16.mxu0 %v898
  %976 = vmatpush1.bf16.msra.mxu0 %v897
  %977 = vmatprep.subr.bf16.mxu0 0
  %978 = vmatpush2.bf16.msra.mxu0 0
  %979 = vmatprep.subr.bf16.mxu0 0
  %980 = vmatpush2.bf16.msra.mxu0 0
  %981 = vmatprep.subr.bf16.mxu0 0
  %982 = vmatpush2.bf16.msra.mxu0 0
  %983 = vmatprep.subr.bf16.mxu0 0
  %984 = vmatpush2.bf16.msra.mxu0 0
  %985 = vmatprep.subr.bf16.mxu0 0
  %986 = vmatpush2.bf16.msra.mxu0 0
  %987 = vmatprep.subr.bf16.mxu0 0
  %988 = vmatpush2.bf16.msra.mxu0 0
  %989 = vmatprep.subr.bf16.mxu0 0
  %990 = vmatpush2.bf16.msra.mxu0 0
  %991 = vmatprep.subr.bf16.mxu0 0
  %992 = vmatpush2.bf16.msra.mxu0 0
  %993 = vmatprep.mubr.bf16.mxu0 0
  %994 = vmatmul.mubr.bf16.gmra.mxu0 %v756
  %v995 = vpop.f32.mrf.mxu0
  %v996 = vadd.f32 %v793, %v995
  %v997 = vpop.f32.mrf.mxu0
  %v998 = vadd.f32 %v794, %v997
  %v999 = vpop.f32.mrf.mxu0
  %v1000 = vadd.f32 %v797, %v999
  %v1001 = vpop.f32.mrf.mxu0
  %v1002 = vadd.f32 %v798, %v1001
  %1003 = vdwg.mxu0
  %1004 = vmatprep.subr.bf16.mxu0 %v928
  %1005 = vmatpush1.bf16.msra.mxu0 %v927
  %1006 = vmatprep.subr.bf16.mxu0 %v924
  %1007 = vmatpush1.bf16.msra.mxu0 %v923
  %1008 = vmatprep.subr.bf16.mxu0 %v920
  %1009 = vmatpush1.bf16.msra.mxu0 %v919
  %1010 = vmatprep.subr.bf16.mxu0 %v916
  %1011 = vmatpush1.bf16.msra.mxu0 %v915
  %1012 = vmatprep.subr.bf16.mxu0 %v912
  %1013 = vmatpush1.bf16.msra.mxu0 %v911
  %1014 = vmatprep.subr.bf16.mxu0 %v908
  %1015 = vmatpush1.bf16.msra.mxu0 %v907
  %1016 = vmatprep.subr.bf16.mxu0 %v904
  %1017 = vmatpush1.bf16.msra.mxu0 %v903
  %1018 = vmatprep.subr.bf16.mxu0 %v900
  %1019 = vmatpush1.bf16.msra.mxu0 %v899
  %1020 = vmatprep.subr.bf16.mxu0 0
  %1021 = vmatpush2.bf16.msra.mxu0 0
  %1022 = vmatprep.subr.bf16.mxu0 0
  %1023 = vmatpush2.bf16.msra.mxu0 0
  %1024 = vmatprep.subr.bf16.mxu0 0
  %1025 = vmatpush2.bf16.msra.mxu0 0
  %1026 = vmatprep.subr.bf16.mxu0 0
  %1027 = vmatpush2.bf16.msra.mxu0 0
  %1028 = vmatprep.subr.bf16.mxu0 0
  %1029 = vmatpush2.bf16.msra.mxu0 0
  %1030 = vmatprep.subr.bf16.mxu0 0
  %1031 = vmatpush2.bf16.msra.mxu0 0
  %1032 = vmatprep.subr.bf16.mxu0 0
  %1033 = vmatpush2.bf16.msra.mxu0 0
  %1034 = vmatprep.subr.bf16.mxu0 0
  %1035 = vmatpush2.bf16.msra.mxu0 0
  %1036 = vmatprep.mubr.bf16.mxu0 0
  %1037 = vmatmul.mubr.bf16.gmra.mxu0 %v756
  %v1038 = vpop.f32.mrf.mxu0
  %v1039 = vadd.f32 %v795, %v1038
  %v1040 = vpop.f32.mrf.mxu0
  %v1041 = vadd.f32 %v796, %v1040
  %v1042 = vpop.f32.mrf.mxu0
  %v1043 = vadd.f32 %v799, %v1042
  %v1044 = vpop.f32.mrf.mxu0
  %v1045 = vadd.f32 %v800, %v1044
  %1046 = vdwg.mxu0
  %v1047 = vxor.u32 %v996, 2147483648
  %v1048 = vxor.u32 %v1000, 2147483648
  %v1049 = vmul.f32 %v1047, 1.442695
  %v1050 = vpow.pop %v1049
  %v1051 = vmul.f32 %v1048, 1.442695
  %v1052 = vpow.pop %v1051
  %v1053 = vadd.f32 %v1050, 1.0
  %v1054 = vadd.f32 %v1052, 1.0
  %v1055 = vrcp.pop %v1053
  %v1056 = vmul.f32 1.0, %v1055
  %v1057 = vrcp.pop %v1054
  %v1058 = vmul.f32 1.0, %v1057
  %v1059 = vtanh.pop %v1039
  %v1060 = vtanh.pop %v1043
  %v1061 = vmul.f32 %v1056, %v1059
  %v1062 = vmul.f32 %v1058, %v1060
  %v1063 = vxor.u32 %v998, 2147483648
  %v1064 = vxor.u32 %v1002, 2147483648
  %v1065 = vmul.f32 %v1063, 1.442695
  %v1066 = vpow.pop %v1065
  %v1067 = vmul.f32 %v1064, 1.442695
  %v1068 = vpow.pop %v1067
  %v1069 = vadd.f32 %v1066, 1.0
  %v1070 = vadd.f32 %v1068, 1.0
  %v1071 = vrcp.pop %v1069
  %v1072 = vmul.f32 1.0, %v1071
  %v1073 = vrcp.pop %v1070
  %v1074 = vmul.f32 1.0, %v1073
  %v1075 = vld [vmem:[#allocation3] sm:$0xff]
  %v1076 = vld [vmem:[#allocation3 + $0x8] sm:$0xff]
  %v1077 = vmul.f32 %v1072, %v1075
  %v1078 = vmul.f32 %v1074, %v1076
  %v1079 = vadd.f32 %v1077, %v1061
  %v1080 = vadd.f32 %v1078, %v1062
  %v1081 = vxor.u32 %v1041, 2147483648
  %v1082 = vxor.u32 %v1045, 2147483648
  %v1083 = vmul.f32 %v1081, 1.442695
  %v1084 = vpow.pop %v1083
  %v1085 = vmul.f32 %v1082, 1.442695
  %v1086 = vpow.pop %v1085
  %v1087 = vadd.f32 %v1084, 1.0
  %v1088 = vadd.f32 %v1086, 1.0
  %v1089 = vrcp.pop %v1087
  %v1090 = vmul.f32 1.0, %v1089
  %v1091 = vrcp.pop %v1088
  %v1092 = vmul.f32 1.0, %v1091
  %v1093 = vtanh.pop %v1079
  %v1094 = vtanh.pop %v1080
  %v1095 = vmul.f32 %v1090, %v1093
  %v1096 = vmul.f32 %v1092, %v1094
  %1097 = vst [vmem:[#allocation3] sm:$0xff] %v1079
  %1098 = vst [vmem:[#allocation3 + $0x8] sm:$0xff] %v1080
  %1099 = vst [vmem:[#allocation2] sm:$0xff] %v1095
  %1100 = vst [vmem:[#allocation2 + $0x8] sm:$0xff] %v1096
  %v1101 = vpack.c.bf16 %v1096, %v1095
  %v1103 = vunpack.c.l.b16 %v1101
  %v1104 = vunpack.c.h.b16 %v1101
  %v1105 = vpack.c.b16 %v1103, %v1103
  %v1106 = vpack.c.b16 %v1104, %v1104
  %1109 = vst [vmem:[%s4] sm:$0xf] %v1105
  %1110 = vst [vmem:[%s4 + $0x4] sm:$0xf] %v1106
  %v1111 = vld [vmem:[#allocation2] sm:$0xff]
  %v1112 = vld [vmem:[#allocation2 + $0x8] sm:$0xff]
  %v1113 = vpack.c.bf16 %v1112, %v1111
  %v1114 = vld [vmem:[%s2] sm:$0xff]
  %v1115 = vld [vmem:[%s2 + $0x8] sm:$0xff]
  %v1116 = vld [vmem:[%s2 + $0x10] sm:$0xff]
  %v1117 = vld [vmem:[%s2 + $0x18] sm:$0xff]
  %v1118 = vld [vmem:[%s2 + $0x20] sm:$0xff]
  %v1119 = vld [vmem:[%s2 + $0x28] sm:$0xff]
  %v1120 = vld [vmem:[%s2 + $0x30] sm:$0xff]
  %v1121 = vld [vmem:[%s2 + $0x38] sm:$0xff]
  %v1122 = vld [vmem:[%s2 + $0x40] sm:$0xff]
  %v1123 = vld [vmem:[%s2 + $0x48] sm:$0xff]
  %v1124 = vld [vmem:[%s2 + $0x50] sm:$0xff]
  %v1125 = vld [vmem:[%s2 + $0x58] sm:$0xff]
  %v1126 = vld [vmem:[%s2 + $0x60] sm:$0xff]
  %v1127 = vld [vmem:[%s2 + $0x68] sm:$0xff]
  %v1128 = vld [vmem:[%s2 + $0x70] sm:$0xff]
  %v1129 = vld [vmem:[%s2 + $0x78] sm:$0xff]
  %v1130 = vld [vmem:[%s2 + $0x80] sm:$0xff]
  %v1131 = vld [vmem:[%s2 + $0x88] sm:$0xff]
  %v1132 = vld [vmem:[%s2 + $0x90] sm:$0xff]
  %v1133 = vld [vmem:[%s2 + $0x98] sm:$0xff]
  %v1134 = vld [vmem:[%s2 + $0xa0] sm:$0xff]
  %v1135 = vld [vmem:[%s2 + $0xa8] sm:$0xff]
  %v1136 = vld [vmem:[%s2 + $0xb0] sm:$0xff]
  %v1137 = vld [vmem:[%s2 + $0xb8] sm:$0xff]
  %v1138 = vld [vmem:[%s2 + $0xc0] sm:$0xff]
  %v1139 = vld [vmem:[%s2 + $0xc8] sm:$0xff]
  %v1140 = vld [vmem:[%s2 + $0xd0] sm:$0xff]
  %v1141 = vld [vmem:[%s2 + $0xd8] sm:$0xff]
  %v1142 = vld [vmem:[%s2 + $0xe0] sm:$0xff]
  %v1143 = vld [vmem:[%s2 + $0xe8] sm:$0xff]
  %v1144 = vld [vmem:[%s2 + $0xf0] sm:$0xff]
  %v1145 = vld [vmem:[%s2 + $0xf8] sm:$0xff]
  %s1146 = scalar_lea.vmem [#allocation4], 32
  %v1147 = vld [vmem:[%s1146] sm:$0xff]
  %v1148 = vld [vmem:[%s1146 + $0x8] sm:$0xff]
  %v1149 = vld [vmem:[%s1146 + $0x10] sm:$0xff]
  %v1150 = vld [vmem:[%s1146 + $0x18] sm:$0xff]
  %v1151 = vunpack.c.l.bf16 %v1147
  %v1152 = vunpack.c.h.bf16 %v1147
  %v1153 = vunpack.c.l.bf16 %v1148
  %v1154 = vunpack.c.h.bf16 %v1148
  %v1155 = vunpack.c.l.bf16 %v1149
  %v1156 = vunpack.c.h.bf16 %v1149
  %v1157 = vunpack.c.l.bf16 %v1150
  %v1158 = vunpack.c.h.bf16 %v1150
  %v1191 = vunpack.c.l.b16 %v1114
  %v1192 = vunpack.c.h.b16 %v1114
  %v1193 = vunpack.c.l.b16 %v1115
  %v1194 = vunpack.c.h.b16 %v1115
  %v1195 = vunpack.c.l.b16 %v1116
  %v1196 = vunpack.c.h.b16 %v1116
  %v1197 = vunpack.c.l.b16 %v1117
  %v1198 = vunpack.c.h.b16 %v1117
  %v1199 = vunpack.c.l.b16 %v1118
  %v1200 = vunpack.c.h.b16 %v1118
  %v1201 = vunpack.c.l.b16 %v1119
  %v1202 = vunpack.c.h.b16 %v1119
  %v1203 = vunpack.c.l.b16 %v1120
  %v1204 = vunpack.c.h.b16 %v1120
  %v1205 = vunpack.c.l.b16 %v1121
  %v1206 = vunpack.c.h.b16 %v1121
  %v1207 = vunpack.c.l.b16 %v1122
  %v1208 = vunpack.c.h.b16 %v1122
  %v1209 = vunpack.c.l.b16 %v1123
  %v1210 = vunpack.c.h.b16 %v1123
  %v1211 = vunpack.c.l.b16 %v1124
  %v1212 = vunpack.c.h.b16 %v1124
  %v1213 = vunpack.c.l.b16 %v1125
  %v1214 = vunpack.c.h.b16 %v1125
  %v1215 = vunpack.c.l.b16 %v1126
  %v1216 = vunpack.c.h.b16 %v1126
  %v1217 = vunpack.c.l.b16 %v1127
  %v1218 = vunpack.c.h.b16 %v1127
  %v1219 = vunpack.c.l.b16 %v1128
  %v1220 = vunpack.c.h.b16 %v1128
  %v1221 = vunpack.c.l.b16 %v1129
  %v1222 = vunpack.c.h.b16 %v1129
  %v1223 = vunpack.c.l.b16 %v1130
  %v1224 = vunpack.c.h.b16 %v1130
  %v1225 = vunpack.c.l.b16 %v1131
  %v1226 = vunpack.c.h.b16 %v1131
  %v1227 = vunpack.c.l.b16 %v1132
  %v1228 = vunpack.c.h.b16 %v1132
  %v1229 = vunpack.c.l.b16 %v1133
  %v1230 = vunpack.c.h.b16 %v1133
  %v1231 = vunpack.c.l.b16 %v1134
  %v1232 = vunpack.c.h.b16 %v1134
  %v1233 = vunpack.c.l.b16 %v1135
  %v1234 = vunpack.c.h.b16 %v1135
  %v1235 = vunpack.c.l.b16 %v1136
  %v1236 = vunpack.c.h.b16 %v1136
  %v1237 = vunpack.c.l.b16 %v1137
  %v1238 = vunpack.c.h.b16 %v1137
  %v1239 = vunpack.c.l.b16 %v1138
  %v1240 = vunpack.c.h.b16 %v1138
  %v1241 = vunpack.c.l.b16 %v1139
  %v1242 = vunpack.c.h.b16 %v1139
  %v1243 = vunpack.c.l.b16 %v1140
  %v1244 = vunpack.c.h.b16 %v1140
  %v1245 = vunpack.c.l.b16 %v1141
  %v1246 = vunpack.c.h.b16 %v1141
  %v1247 = vunpack.c.l.b16 %v1142
  %v1248 = vunpack.c.h.b16 %v1142
  %v1249 = vunpack.c.l.b16 %v1143
  %v1250 = vunpack.c.h.b16 %v1143
  %v1251 = vunpack.c.l.b16 %v1144
  %v1252 = vunpack.c.h.b16 %v1144
  %v1253 = vunpack.c.l.b16 %v1145
  %v1254 = vunpack.c.h.b16 %v1145
  %v1255 = vpack.c.b16 %v1195, %v1191
  %v1256 = vpack.c.b16 %v1196, %v1192
  %v1257 = vpack.c.b16 %v1197, %v1193
  %v1258 = vpack.c.b16 %v1198, %v1194
  %v1259 = vpack.c.b16 %v1203, %v1199
  %v1260 = vpack.c.b16 %v1204, %v1200
  %v1261 = vpack.c.b16 %v1205, %v1201
  %v1262 = vpack.c.b16 %v1206, %v1202
  %v1263 = vpack.c.b16 %v1211, %v1207
  %v1264 = vpack.c.b16 %v1212, %v1208
  %v1265 = vpack.c.b16 %v1213, %v1209
  %v1266 = vpack.c.b16 %v1214, %v1210
  %v1267 = vpack.c.b16 %v1219, %v1215
  %v1268 = vpack.c.b16 %v1220, %v1216
  %v1269 = vpack.c.b16 %v1221, %v1217
  %v1270 = vpack.c.b16 %v1222, %v1218
  %v1271 = vpack.c.b16 %v1227, %v1223
  %v1272 = vpack.c.b16 %v1228, %v1224
  %v1273 = vpack.c.b16 %v1229, %v1225
  %v1274 = vpack.c.b16 %v1230, %v1226
  %v1275 = vpack.c.b16 %v1235, %v1231
  %v1276 = vpack.c.b16 %v1236, %v1232
  %v1277 = vpack.c.b16 %v1237, %v1233
  %v1278 = vpack.c.b16 %v1238, %v1234
  %v1279 = vpack.c.b16 %v1243, %v1239
  %v1280 = vpack.c.b16 %v1244, %v1240
  %v1281 = vpack.c.b16 %v1245, %v1241
  %v1282 = vpack.c.b16 %v1246, %v1242
  %v1283 = vpack.c.b16 %v1251, %v1247
  %v1284 = vpack.c.b16 %v1252, %v1248
  %v1285 = vpack.c.b16 %v1253, %v1249
  %v1286 = vpack.c.b16 %v1254, %v1250
  %1319 = vmatprep.subr.bf16.mxu0 %v1284
  %1320 = vmatpush1.bf16.msra.mxu0 %v1283
  %1321 = vmatprep.subr.bf16.mxu0 %v1280
  %1322 = vmatpush1.bf16.msra.mxu0 %v1279
  %1323 = vmatprep.subr.bf16.mxu0 %v1276
  %1324 = vmatpush1.bf16.msra.mxu0 %v1275
  %1325 = vmatprep.subr.bf16.mxu0 %v1272
  %1326 = vmatpush1.bf16.msra.mxu0 %v1271
  %1327 = vmatprep.subr.bf16.mxu0 %v1268
  %1328 = vmatpush1.bf16.msra.mxu0 %v1267
  %1329 = vmatprep.subr.bf16.mxu0 %v1264
  %1330 = vmatpush1.bf16.msra.mxu0 %v1263
  %1331 = vmatprep.subr.bf16.mxu0 %v1260
  %1332 = vmatpush1.bf16.msra.mxu0 %v1259
  %1333 = vmatprep.subr.bf16.mxu0 %v1256
  %1334 = vmatpush1.bf16.msra.mxu0 %v1255
  %1335 = vmatprep.subr.bf16.mxu0 0
  %1336 = vmatpush2.bf16.msra.mxu0 0
  %1337 = vmatprep.subr.bf16.mxu0 0
  %1338 = vmatpush2.bf16.msra.mxu0 0
  %1339 = vmatprep.subr.bf16.mxu0 0
  %1340 = vmatpush2.bf16.msra.mxu0 0
  %1341 = vmatprep.subr.bf16.mxu0 0
  %1342 = vmatpush2.bf16.msra.mxu0 0
  %1343 = vmatprep.subr.bf16.mxu0 0
  %1344 = vmatpush2.bf16.msra.mxu0 0
  %1345 = vmatprep.subr.bf16.mxu0 0
  %1346 = vmatpush2.bf16.msra.mxu0 0
  %1347 = vmatprep.subr.bf16.mxu0 0
  %1348 = vmatpush2.bf16.msra.mxu0 0
  %1349 = vmatprep.subr.bf16.mxu0 0
  %1350 = vmatpush2.bf16.msra.mxu0 0
  %1351 = vmatprep.mubr.bf16.mxu0 0
  %1352 = vmatmul.mubr.bf16.gmra.mxu0 %v1113
  %v1353 = vpop.f32.mrf.mxu0
  %v1354 = vadd.f32 %v1151, %v1353
  %v1355 = vpop.f32.mrf.mxu0
  %v1356 = vadd.f32 %v1152, %v1355
  %v1357 = vpop.f32.mrf.mxu0
  %v1358 = vadd.f32 %v1155, %v1357
  %v1359 = vpop.f32.mrf.mxu0
  %v1360 = vadd.f32 %v1156, %v1359
  %1361 = vdwg.mxu0
  %1362 = vmatprep.subr.bf16.mxu0 %v1286
  %1363 = vmatpush1.bf16.msra.mxu0 %v1285
  %1364 = vmatprep.subr.bf16.mxu0 %v1282
  %1365 = vmatpush1.bf16.msra.mxu0 %v1281
  %1366 = vmatprep.subr.bf16.mxu0 %v1278
  %1367 = vmatpush1.bf16.msra.mxu0 %v1277
  %1368 = vmatprep.subr.bf16.mxu0 %v1274
  %1369 = vmatpush1.bf16.msra.mxu0 %v1273
  %1370 = vmatprep.subr.bf16.mxu0 %v1270
  %1371 = vmatpush1.bf16.msra.mxu0 %v1269
  %1372 = vmatprep.subr.bf16.mxu0 %v1266
  %1373 = vmatpush1.bf16.msra.mxu0 %v1265
  %1374 = vmatprep.subr.bf16.mxu0 %v1262
  %1375 = vmatpush1.bf16.msra.mxu0 %v1261
  %1376 = vmatprep.subr.bf16.mxu0 %v1258
  %1377 = vmatpush1.bf16.msra.mxu0 %v1257
  %1378 = vmatprep.subr.bf16.mxu0 0
  %1379 = vmatpush2.bf16.msra.mxu0 0
  %1380 = vmatprep.subr.bf16.mxu0 0
  %1381 = vmatpush2.bf16.msra.mxu0 0
  %1382 = vmatprep.subr.bf16.mxu0 0
  %1383 = vmatpush2.bf16.msra.mxu0 0
  %1384 = vmatprep.subr.bf16.mxu0 0
  %1385 = vmatpush2.bf16.msra.mxu0 0
  %1386 = vmatprep.subr.bf16.mxu0 0
  %1387 = vmatpush2.bf16.msra.mxu0 0
  %1388 = vmatprep.subr.bf16.mxu0 0
  %1389 = vmatpush2.bf16.msra.mxu0 0
  %1390 = vmatprep.subr.bf16.mxu0 0
  %1391 = vmatpush2.bf16.msra.mxu0 0
  %1392 = vmatprep.subr.bf16.mxu0 0
  %1393 = vmatpush2.bf16.msra.mxu0 0
  %1394 = vmatprep.mubr.bf16.mxu0 0
  %1395 = vmatmul.mubr.bf16.gmra.mxu0 %v1113
  %v1396 = vpop.f32.mrf.mxu0
  %v1397 = vadd.f32 %v1153, %v1396
  %v1398 = vpop.f32.mrf.mxu0
  %v1399 = vadd.f32 %v1154, %v1398
  %v1400 = vpop.f32.mrf.mxu0
  %v1401 = vadd.f32 %v1157, %v1400
  %v1402 = vpop.f32.mrf.mxu0
  %v1403 = vadd.f32 %v1158, %v1402
  %1404 = vdwg.mxu0
  %v1405 = vxor.u32 %v1354, 2147483648
  %v1406 = vxor.u32 %v1358, 2147483648
  %v1407 = vmul.f32 %v1405, 1.442695
  %v1408 = vpow.pop %v1407
  %v1409 = vmul.f32 %v1406, 1.442695
  %v1410 = vpow.pop %v1409
  %v1411 = vadd.f32 %v1408, 1.0
  %v1412 = vadd.f32 %v1410, 1.0
  %v1413 = vrcp.pop %v1411
  %v1414 = vmul.f32 1.0, %v1413
  %v1415 = vrcp.pop %v1412
  %v1416 = vmul.f32 1.0, %v1415
  %v1417 = vtanh.pop %v1397
  %v1418 = vtanh.pop %v1401
  %v1419 = vmul.f32 %v1414, %v1417
  %v1420 = vmul.f32 %v1416, %v1418
  %v1421 = vxor.u32 %v1356, 2147483648
  %v1422 = vxor.u32 %v1360, 2147483648
  %v1423 = vmul.f32 %v1421, 1.442695
  %v1424 = vpow.pop %v1423
  %v1425 = vmul.f32 %v1422, 1.442695
  %v1426 = vpow.pop %v1425
  %v1427 = vadd.f32 %v1424, 1.0
  %v1428 = vadd.f32 %v1426, 1.0
  %v1429 = vrcp.pop %v1427
  %v1430 = vmul.f32 1.0, %v1429
  %v1431 = vrcp.pop %v1428
  %v1432 = vmul.f32 1.0, %v1431
  %v1433 = vld [vmem:[#allocation3] sm:$0xff]
  %v1434 = vld [vmem:[#allocation3 + $0x8] sm:$0xff]
  %v1435 = vmul.f32 %v1430, %v1433
  %v1436 = vmul.f32 %v1432, %v1434
  %v1437 = vadd.f32 %v1435, %v1419
  %v1438 = vadd.f32 %v1436, %v1420
  %v1439 = vxor.u32 %v1399, 2147483648
  %v1440 = vxor.u32 %v1403, 2147483648
  %v1441 = vmul.f32 %v1439, 1.442695
  %v1442 = vpow.pop %v1441
  %v1443 = vmul.f32 %v1440, 1.442695
  %v1444 = vpow.pop %v1443
  %v1445 = vadd.f32 %v1442, 1.0
  %v1446 = vadd.f32 %v1444, 1.0
  %v1447 = vrcp.pop %v1445
  %v1448 = vmul.f32 1.0, %v1447
  %v1449 = vrcp.pop %v1446
  %v1450 = vmul.f32 1.0, %v1449
  %v1451 = vtanh.pop %v1437
  %v1452 = vtanh.pop %v1438
  %v1453 = vmul.f32 %v1448, %v1451
  %v1454 = vmul.f32 %v1450, %v1452
  %1455 = vst [vmem:[#allocation3] sm:$0xff] %v1437
  %1456 = vst [vmem:[#allocation3 + $0x8] sm:$0xff] %v1438
  %1457 = vst [vmem:[#allocation2] sm:$0xff] %v1453
  %1458 = vst [vmem:[#allocation2 + $0x8] sm:$0xff] %v1454
  %v1459 = vpack.c.bf16 %v1454, %v1453
  %v1461 = vunpack.c.l.b16 %v1459
  %v1462 = vunpack.c.h.b16 %v1459
  %v1463 = vpack.c.b16 %v1461, %v1461
  %v1464 = vpack.c.b16 %v1462, %v1462
  %s1467 = scalar_lea.vmem %s4, 8
  %1468 = vst [vmem:[%s1467] sm:$0xf] %v1463
  %1469 = vst [vmem:[%s1467 + $0x4] sm:$0xf] %v1464
  %v1470 = vld [vmem:[#allocation2] sm:$0xff]
  %v1471 = vld [vmem:[#allocation2 + $0x8] sm:$0xff]
  %v1472 = vpack.c.bf16 %v1471, %v1470
  %v1473 = vld [vmem:[%s2] sm:$0xff]
  %v1474 = vld [vmem:[%s2 + $0x8] sm:$0xff]
  %v1475 = vld [vmem:[%s2 + $0x10] sm:$0xff]
  %v1476 = vld [vmem:[%s2 + $0x18] sm:$0xff]
  %v1477 = vld [vmem:[%s2 + $0x20] sm:$0xff]
  %v1478 = vld [vmem:[%s2 + $0x28] sm:$0xff]
  %v1479 = vld [vmem:[%s2 + $0x30] sm:$0xff]
  %v1480 = vld [vmem:[%s2 + $0x38] sm:$0xff]
  %v1481 = vld [vmem:[%s2 + $0x40] sm:$0xff]
  %v1482 = vld [vmem:[%s2 + $0x48] sm:$0xff]
  %v1483 = vld [vmem:[%s2 + $0x50] sm:$0xff]
  %v1484 = vld [vmem:[%s2 + $0x58] sm:$0xff]
  %v1485 = vld [vmem:[%s2 + $0x60] sm:$0xff]
  %v1486 = vld [vmem:[%s2 + $0x68] sm:$0xff]
  %v1487 = vld [vmem:[%s2 + $0x70] sm:$0xff]
  %v1488 = vld [vmem:[%s2 + $0x78] sm:$0xff]
  %v1489 = vld [vmem:[%s2 + $0x80] sm:$0xff]
  %v1490 = vld [vmem:[%s2 + $0x88] sm:$0xff]
  %v1491 = vld [vmem:[%s2 + $0x90] sm:$0xff]
  %v1492 = vld [vmem:[%s2 + $0x98] sm:$0xff]
  %v1493 = vld [vmem:[%s2 + $0xa0] sm:$0xff]
  %v1494 = vld [vmem:[%s2 + $0xa8] sm:$0xff]
  %v1495 = vld [vmem:[%s2 + $0xb0] sm:$0xff]
  %v1496 = vld [vmem:[%s2 + $0xb8] sm:$0xff]
  %v1497 = vld [vmem:[%s2 + $0xc0] sm:$0xff]
  %v1498 = vld [vmem:[%s2 + $0xc8] sm:$0xff]
  %v1499 = vld [vmem:[%s2 + $0xd0] sm:$0xff]
  %v1500 = vld [vmem:[%s2 + $0xd8] sm:$0xff]
  %v1501 = vld [vmem:[%s2 + $0xe0] sm:$0xff]
  %v1502 = vld [vmem:[%s2 + $0xe8] sm:$0xff]
  %v1503 = vld [vmem:[%s2 + $0xf0] sm:$0xff]
  %v1504 = vld [vmem:[%s2 + $0xf8] sm:$0xff]
  %s1505 = scalar_lea.vmem [#allocation4], 64
  %v1506 = vld [vmem:[%s1505] sm:$0xff]
  %v1507 = vld [vmem:[%s1505 + $0x8] sm:$0xff]
  %v1508 = vld [vmem:[%s1505 + $0x10] sm:$0xff]
  %v1509 = vld [vmem:[%s1505 + $0x18] sm:$0xff]
  %v1510 = vunpack.c.l.bf16 %v1506
  %v1511 = vunpack.c.h.bf16 %v1506
  %v1512 = vunpack.c.l.bf16 %v1507
  %v1513 = vunpack.c.h.bf16 %v1507
  %v1514 = vunpack.c.l.bf16 %v1508
  %v1515 = vunpack.c.h.bf16 %v1508
  %v1516 = vunpack.c.l.bf16 %v1509
  %v1517 = vunpack.c.h.bf16 %v1509
  %v1550 = vunpack.c.l.b16 %v1473
  %v1551 = vunpack.c.h.b16 %v1473
  %v1552 = vunpack.c.l.b16 %v1474
  %v1553 = vunpack.c.h.b16 %v1474
  %v1554 = vunpack.c.l.b16 %v1475
  %v1555 = vunpack.c.h.b16 %v1475
  %v1556 = vunpack.c.l.b16 %v1476
  %v1557 = vunpack.c.h.b16 %v1476
  %v1558 = vunpack.c.l.b16 %v1477
  %v1559 = vunpack.c.h.b16 %v1477
  %v1560 = vunpack.c.l.b16 %v1478
  %v1561 = vunpack.c.h.b16 %v1478
  %v1562 = vunpack.c.l.b16 %v1479
  %v1563 = vunpack.c.h.b16 %v1479
  %v1564 = vunpack.c.l.b16 %v1480
  %v1565 = vunpack.c.h.b16 %v1480
  %v1566 = vunpack.c.l.b16 %v1481
  %v1567 = vunpack.c.h.b16 %v1481
  %v1568 = vunpack.c.l.b16 %v1482
  %v1569 = vunpack.c.h.b16 %v1482
  %v1570 = vunpack.c.l.b16 %v1483
  %v1571 = vunpack.c.h.b16 %v1483
  %v1572 = vunpack.c.l.b16 %v1484
  %v1573 = vunpack.c.h.b16 %v1484
  %v1574 = vunpack.c.l.b16 %v1485
  %v1575 = vunpack.c.h.b16 %v1485
  %v1576 = vunpack.c.l.b16 %v1486
  %v1577 = vunpack.c.h.b16 %v1486
  %v1578 = vunpack.c.l.b16 %v1487
  %v1579 = vunpack.c.h.b16 %v1487
  %v1580 = vunpack.c.l.b16 %v1488
  %v1581 = vunpack.c.h.b16 %v1488
  %v1582 = vunpack.c.l.b16 %v1489
  %v1583 = vunpack.c.h.b16 %v1489
  %v1584 = vunpack.c.l.b16 %v1490
  %v1585 = vunpack.c.h.b16 %v1490
  %v1586 = vunpack.c.l.b16 %v1491
  %v1587 = vunpack.c.h.b16 %v1491
  %v1588 = vunpack.c.l.b16 %v1492
  %v1589 = vunpack.c.h.b16 %v1492
  %v1590 = vunpack.c.l.b16 %v1493
  %v1591 = vunpack.c.h.b16 %v1493
  %v1592 = vunpack.c.l.b16 %v1494
  %v1593 = vunpack.c.h.b16 %v1494
  %v1594 = vunpack.c.l.b16 %v1495
  %v1595 = vunpack.c.h.b16 %v1495
  %v1596 = vunpack.c.l.b16 %v1496
  %v1597 = vunpack.c.h.b16 %v1496
  %v1598 = vunpack.c.l.b16 %v1497
  %v1599 = vunpack.c.h.b16 %v1497
  %v1600 = vunpack.c.l.b16 %v1498
  %v1601 = vunpack.c.h.b16 %v1498
  %v1602 = vunpack.c.l.b16 %v1499
  %v1603 = vunpack.c.h.b16 %v1499
  %v1604 = vunpack.c.l.b16 %v1500
  %v1605 = vunpack.c.h.b16 %v1500
  %v1606 = vunpack.c.l.b16 %v1501
  %v1607 = vunpack.c.h.b16 %v1501
  %v1608 = vunpack.c.l.b16 %v1502
  %v1609 = vunpack.c.h.b16 %v1502
  %v1610 = vunpack.c.l.b16 %v1503
  %v1611 = vunpack.c.h.b16 %v1503
  %v1612 = vunpack.c.l.b16 %v1504
  %v1613 = vunpack.c.h.b16 %v1504
  %v1614 = vpack.c.b16 %v1554, %v1550
  %v1615 = vpack.c.b16 %v1555, %v1551
  %v1616 = vpack.c.b16 %v1556, %v1552
  %v1617 = vpack.c.b16 %v1557, %v1553
  %v1618 = vpack.c.b16 %v1562, %v1558
  %v1619 = vpack.c.b16 %v1563, %v1559
  %v1620 = vpack.c.b16 %v1564, %v1560
  %v1621 = vpack.c.b16 %v1565, %v1561
  %v1622 = vpack.c.b16 %v1570, %v1566
  %v1623 = vpack.c.b16 %v1571, %v1567
  %v1624 = vpack.c.b16 %v1572, %v1568
  %v1625 = vpack.c.b16 %v1573, %v1569
  %v1626 = vpack.c.b16 %v1578, %v1574
  %v1627 = vpack.c.b16 %v1579, %v1575
  %v1628 = vpack.c.b16 %v1580, %v1576
  %v1629 = vpack.c.b16 %v1581, %v1577
  %v1630 = vpack.c.b16 %v1586, %v1582
  %v1631 = vpack.c.b16 %v1587, %v1583
  %v1632 = vpack.c.b16 %v1588, %v1584
  %v1633 = vpack.c.b16 %v1589, %v1585
  %v1634 = vpack.c.b16 %v1594, %v1590
  %v1635 = vpack.c.b16 %v1595, %v1591
  %v1636 = vpack.c.b16 %v1596, %v1592
  %v1637 = vpack.c.b16 %v1597, %v1593
  %v1638 = vpack.c.b16 %v1602, %v1598
  %v1639 = vpack.c.b16 %v1603, %v1599
  %v1640 = vpack.c.b16 %v1604, %v1600
  %v1641 = vpack.c.b16 %v1605, %v1601
  %v1642 = vpack.c.b16 %v1610, %v1606
  %v1643 = vpack.c.b16 %v1611, %v1607
  %v1644 = vpack.c.b16 %v1612, %v1608
  %v1645 = vpack.c.b16 %v1613, %v1609
  %1678 = vmatprep.subr.bf16.mxu0 %v1643
  %1679 = vmatpush1.bf16.msra.mxu0 %v1642
  %1680 = vmatprep.subr.bf16.mxu0 %v1639
  %1681 = vmatpush1.bf16.msra.mxu0 %v1638
  %1682 = vmatprep.subr.bf16.mxu0 %v1635
  %1683 = vmatpush1.bf16.msra.mxu0 %v1634
  %1684 = vmatprep.subr.bf16.mxu0 %v1631
  %1685 = vmatpush1.bf16.msra.mxu0 %v1630
  %1686 = vmatprep.subr.bf16.mxu0 %v1627
  %1687 = vmatpush1.bf16.msra.mxu0 %v1626
  %1688 = vmatprep.subr.bf16.mxu0 %v1623
  %1689 = vmatpush1.bf16.msra.mxu0 %v1622
  %1690 = vmatprep.subr.bf16.mxu0 %v1619
  %1691 = vmatpush1.bf16.msra.mxu0 %v1618
  %1692 = vmatprep.subr.bf16.mxu0 %v1615
  %1693 = vmatpush1.bf16.msra.mxu0 %v1614
  %1694 = vmatprep.subr.bf16.mxu0 0
  %1695 = vmatpush2.bf16.msra.mxu0 0
  %1696 = vmatprep.subr.bf16.mxu0 0
  %1697 = vmatpush2.bf16.msra.mxu0 0
  %1698 = vmatprep.subr.bf16.mxu0 0
  %1699 = vmatpush2.bf16.msra.mxu0 0
  %1700 = vmatprep.subr.bf16.mxu0 0
  %1701 = vmatpush2.bf16.msra.mxu0 0
  %1702 = vmatprep.subr.bf16.mxu0 0
  %1703 = vmatpush2.bf16.msra.mxu0 0
  %1704 = vmatprep.subr.bf16.mxu0 0
  %1705 = vmatpush2.bf16.msra.mxu0 0
  %1706 = vmatprep.subr.bf16.mxu0 0
  %1707 = vmatpush2.bf16.msra.mxu0 0
  %1708 = vmatprep.subr.bf16.mxu0 0
  %1709 = vmatpush2.bf16.msra.mxu0 0
  %1710 = vmatprep.mubr.bf16.mxu0 0
  %1711 = vmatmul.mubr.bf16.gmra.mxu0 %v1472
  %v1712 = vpop.f32.mrf.mxu0
  %v1713 = vadd.f32 %v1510, %v1712
  %v1714 = vpop.f32.mrf.mxu0
  %v1715 = vadd.f32 %v1511, %v1714
  %v1716 = vpop.f32.mrf.mxu0
  %v1717 = vadd.f32 %v1514, %v1716
  %v1718 = vpop.f32.mrf.mxu0
  %v1719 = vadd.f32 %v1515, %v1718
  %1720 = vdwg.mxu0
  %1721 = vmatprep.subr.bf16.mxu0 %v1645
  %1722 = vmatpush1.bf16.msra.mxu0 %v1644
  %1723 = vmatprep.subr.bf16.mxu0 %v1641
  %1724 = vmatpush1.bf16.msra.mxu0 %v1640
  %1725 = vmatprep.subr.bf16.mxu0 %v1637
  %1726 = vmatpush1.bf16.msra.mxu0 %v1636
  %1727 = vmatprep.subr.bf16.mxu0 %v1633
  %1728 = vmatpush1.bf16.msra.mxu0 %v1632
  %1729 = vmatprep.subr.bf16.mxu0 %v1629
  %1730 = vmatpush1.bf16.msra.mxu0 %v1628
  %1731 = vmatprep.subr.bf16.mxu0 %v1625
  %1732 = vmatpush1.bf16.msra.mxu0 %v1624
  %1733 = vmatprep.subr.bf16.mxu0 %v1621
  %1734 = vmatpush1.bf16.msra.mxu0 %v1620
  %1735 = vmatprep.subr.bf16.mxu0 %v1617
  %1736 = vmatpush1.bf16.msra.mxu0 %v1616
  %1737 = vmatprep.subr.bf16.mxu0 0
  %1738 = vmatpush2.bf16.msra.mxu0 0
  %1739 = vmatprep.subr.bf16.mxu0 0
  %1740 = vmatpush2.bf16.msra.mxu0 0
  %1741 = vmatprep.subr.bf16.mxu0 0
  %1742 = vmatpush2.bf16.msra.mxu0 0
  %1743 = vmatprep.subr.bf16.mxu0 0
  %1744 = vmatpush2.bf16.msra.mxu0 0
  %1745 = vmatprep.subr.bf16.mxu0 0
  %1746 = vmatpush2.bf16.msra.mxu0 0
  %1747 = vmatprep.subr.bf16.mxu0 0
  %1748 = vmatpush2.bf16.msra.mxu0 0
  %1749 = vmatprep.subr.bf16.mxu0 0
  %1750 = vmatpush2.bf16.msra.mxu0 0
  %1751 = vmatprep.subr.bf16.mxu0 0
  %1752 = vmatpush2.bf16.msra.mxu0 0
  %1753 = vmatprep.mubr.bf16.mxu0 0
  %1754 = vmatmul.mubr.bf16.gmra.mxu0 %v1472
  %v1755 = vpop.f32.mrf.mxu0
  %v1756 = vadd.f32 %v1512, %v1755
  %v1757 = vpop.f32.mrf.mxu0
  %v1758 = vadd.f32 %v1513, %v1757
  %v1759 = vpop.f32.mrf.mxu0
  %v1760 = vadd.f32 %v1516, %v1759
  %v1761 = vpop.f32.mrf.mxu0
  %v1762 = vadd.f32 %v1517, %v1761
  %1763 = vdwg.mxu0
  %v1764 = vxor.u32 %v1713, 2147483648
  %v1765 = vxor.u32 %v1717, 2147483648
  %v1766 = vmul.f32 %v1764, 1.442695
  %v1767 = vpow.pop %v1766
  %v1768 = vmul.f32 %v1765, 1.442695
  %v1769 = vpow.pop %v1768
  %v1770 = vadd.f32 %v1767, 1.0
  %v1771 = vadd.f32 %v1769, 1.0
  %v1772 = vrcp.pop %v1770
  %v1773 = vmul.f32 1.0, %v1772
  %v1774 = vrcp.pop %v1771
  %v1775 = vmul.f32 1.0, %v1774
  %v1776 = vtanh.pop %v1756
  %v1777 = vtanh.pop %v1760
  %v1778 = vmul.f32 %v1773, %v1776
  %v1779 = vmul.f32 %v1775, %v1777
  %v1780 = vxor.u32 %v1715, 2147483648
  %v1781 = vxor.u32 %v1719, 2147483648
  %v1782 = vmul.f32 %v1780, 1.442695
  %v1783 = vpow.pop %v1782
  %v1784 = vmul.f32 %v1781, 1.442695
  %v1785 = vpow.pop %v1784
  %v1786 = vadd.f32 %v1783, 1.0
  %v1787 = vadd.f32 %v1785, 1.0
  %v1788 = vrcp.pop %v1786
  %v1789 = vmul.f32 1.0, %v1788
  %v1790 = vrcp.pop %v1787
  %v1791 = vmul.f32 1.0, %v1790
  %v1792 = vld [vmem:[#allocation3] sm:$0xff]
  %v1793 = vld [vmem:[#allocation3 + $0x8] sm:$0xff]
  %v1794 = vmul.f32 %v1789, %v1792
  %v1795 = vmul.f32 %v1791, %v1793
  %v1796 = vadd.f32 %v1794, %v1778
  %v1797 = vadd.f32 %v1795, %v1779
  %v1798 = vxor.u32 %v1758, 2147483648
  %v1799 = vxor.u32 %v1762, 2147483648
  %v1800 = vmul.f32 %v1798, 1.442695
  %v1801 = vpow.pop %v1800
  %v1802 = vmul.f32 %v1799, 1.442695
  %v1803 = vpow.pop %v1802
  %v1804 = vadd.f32 %v1801, 1.0
  %v1805 = vadd.f32 %v1803, 1.0
  %v1806 = vrcp.pop %v1804
  %v1807 = vmul.f32 1.0, %v1806
  %v1808 = vrcp.pop %v1805
  %v1809 = vmul.f32 1.0, %v1808
  %v1810 = vtanh.pop %v1796
  %v1811 = vtanh.pop %v1797
  %v1812 = vmul.f32 %v1807, %v1810
  %v1813 = vmul.f32 %v1809, %v1811
  %1814 = vst [vmem:[#allocation3] sm:$0xff] %v1796
  %1815 = vst [vmem:[#allocation3 + $0x8] sm:$0xff] %v1797
  %1816 = vst [vmem:[#allocation2] sm:$0xff] %v1812
  %1817 = vst [vmem:[#allocation2 + $0x8] sm:$0xff] %v1813
  %v1818 = vpack.c.bf16 %v1813, %v1812
  %v1820 = vunpack.c.l.b16 %v1818
  %v1821 = vunpack.c.h.b16 %v1818
  %v1822 = vpack.c.b16 %v1820, %v1820
  %v1823 = vpack.c.b16 %v1821, %v1821
  %s1826 = scalar_lea.vmem %s4, 16
  %1827 = vst [vmem:[%s1826] sm:$0xf] %v1822
  %1828 = vst [vmem:[%s1826 + $0x4] sm:$0xf] %v1823
  %v1829 = vld [vmem:[#allocation2] sm:$0xff]
  %v1830 = vld [vmem:[#allocation2 + $0x8] sm:$0xff]
  %v1831 = vpack.c.bf16 %v1830, %v1829
  %v1832 = vld [vmem:[%s2] sm:$0xff]
  %v1833 = vld [vmem:[%s2 + $0x8] sm:$0xff]
  %v1834 = vld [vmem:[%s2 + $0x10] sm:$0xff]
  %v1835 = vld [vmem:[%s2 + $0x18] sm:$0xff]
  %v1836 = vld [vmem:[%s2 + $0x20] sm:$0xff]
  %v1837 = vld [vmem:[%s2 + $0x28] sm:$0xff]
  %v1838 = vld [vmem:[%s2 + $0x30] sm:$0xff]
  %v1839 = vld [vmem:[%s2 + $0x38] sm:$0xff]
  %v1840 = vld [vmem:[%s2 + $0x40] sm:$0xff]
  %v1841 = vld [vmem:[%s2 + $0x48] sm:$0xff]
  %v1842 = vld [vmem:[%s2 + $0x50] sm:$0xff]
  %v1843 = vld [vmem:[%s2 + $0x58] sm:$0xff]
  %v1844 = vld [vmem:[%s2 + $0x60] sm:$0xff]
  %v1845 = vld [vmem:[%s2 + $0x68] sm:$0xff]
  %v1846 = vld [vmem:[%s2 + $0x70] sm:$0xff]
  %v1847 = vld [vmem:[%s2 + $0x78] sm:$0xff]
  %v1848 = vld [vmem:[%s2 + $0x80] sm:$0xff]
  %v1849 = vld [vmem:[%s2 + $0x88] sm:$0xff]
  %v1850 = vld [vmem:[%s2 + $0x90] sm:$0xff]
  %v1851 = vld [vmem:[%s2 + $0x98] sm:$0xff]
  %v1852 = vld [vmem:[%s2 + $0xa0] sm:$0xff]
  %v1853 = vld [vmem:[%s2 + $0xa8] sm:$0xff]
  %v1854 = vld [vmem:[%s2 + $0xb0] sm:$0xff]
  %v1855 = vld [vmem:[%s2 + $0xb8] sm:$0xff]
  %v1856 = vld [vmem:[%s2 + $0xc0] sm:$0xff]
  %v1857 = vld [vmem:[%s2 + $0xc8] sm:$0xff]
  %v1858 = vld [vmem:[%s2 + $0xd0] sm:$0xff]
  %v1859 = vld [vmem:[%s2 + $0xd8] sm:$0xff]
  %v1860 = vld [vmem:[%s2 + $0xe0] sm:$0xff]
  %v1861 = vld [vmem:[%s2 + $0xe8] sm:$0xff]
  %v1862 = vld [vmem:[%s2 + $0xf0] sm:$0xff]
  %v1863 = vld [vmem:[%s2 + $0xf8] sm:$0xff]
  %s1864 = scalar_lea.vmem [#allocation4], 96
  %v1865 = vld [vmem:[%s1864] sm:$0xff]
  %v1866 = vld [vmem:[%s1864 + $0x8] sm:$0xff]
  %v1867 = vld [vmem:[%s1864 + $0x10] sm:$0xff]
  %v1868 = vld [vmem:[%s1864 + $0x18] sm:$0xff]
  %v1869 = vunpack.c.l.bf16 %v1865
  %v1870 = vunpack.c.h.bf16 %v1865
  %v1871 = vunpack.c.l.bf16 %v1866
  %v1872 = vunpack.c.h.bf16 %v1866
  %v1873 = vunpack.c.l.bf16 %v1867
  %v1874 = vunpack.c.h.bf16 %v1867
  %v1875 = vunpack.c.l.bf16 %v1868
  %v1876 = vunpack.c.h.bf16 %v1868
  %v1909 = vunpack.c.l.b16 %v1832
  %v1910 = vunpack.c.h.b16 %v1832
  %v1911 = vunpack.c.l.b16 %v1833
  %v1912 = vunpack.c.h.b16 %v1833
  %v1913 = vunpack.c.l.b16 %v1834
  %v1914 = vunpack.c.h.b16 %v1834
  %v1915 = vunpack.c.l.b16 %v1835
  %v1916 = vunpack.c.h.b16 %v1835
  %v1917 = vunpack.c.l.b16 %v1836
  %v1918 = vunpack.c.h.b16 %v1836
  %v1919 = vunpack.c.l.b16 %v1837
  %v1920 = vunpack.c.h.b16 %v1837
  %v1921 = vunpack.c.l.b16 %v1838
  %v1922 = vunpack.c.h.b16 %v1838
  %v1923 = vunpack.c.l.b16 %v1839
  %v1924 = vunpack.c.h.b16 %v1839
  %v1925 = vunpack.c.l.b16 %v1840
  %v1926 = vunpack.c.h.b16 %v1840
  %v1927 = vunpack.c.l.b16 %v1841
  %v1928 = vunpack.c.h.b16 %v1841
  %v1929 = vunpack.c.l.b16 %v1842
  %v1930 = vunpack.c.h.b16 %v1842
  %v1931 = vunpack.c.l.b16 %v1843
  %v1932 = vunpack.c.h.b16 %v1843
  %v1933 = vunpack.c.l.b16 %v1844
  %v1934 = vunpack.c.h.b16 %v1844
  %v1935 = vunpack.c.l.b16 %v1845
  %v1936 = vunpack.c.h.b16 %v1845
  %v1937 = vunpack.c.l.b16 %v1846
  %v1938 = vunpack.c.h.b16 %v1846
  %v1939 = vunpack.c.l.b16 %v1847
  %v1940 = vunpack.c.h.b16 %v1847
  %v1941 = vunpack.c.l.b16 %v1848
  %v1942 = vunpack.c.h.b16 %v1848
  %v1943 = vunpack.c.l.b16 %v1849
  %v1944 = vunpack.c.h.b16 %v1849
  %v1945 = vunpack.c.l.b16 %v1850
  %v1946 = vunpack.c.h.b16 %v1850
  %v1947 = vunpack.c.l.b16 %v1851
  %v1948 = vunpack.c.h.b16 %v1851
  %v1949 = vunpack.c.l.b16 %v1852
  %v1950 = vunpack.c.h.b16 %v1852
  %v1951 = vunpack.c.l.b16 %v1853
  %v1952 = vunpack.c.h.b16 %v1853
  %v1953 = vunpack.c.l.b16 %v1854
  %v1954 = vunpack.c.h.b16 %v1854
  %v1955 = vunpack.c.l.b16 %v1855
  %v1956 = vunpack.c.h.b16 %v1855
  %v1957 = vunpack.c.l.b16 %v1856
  %v1958 = vunpack.c.h.b16 %v1856
  %v1959 = vunpack.c.l.b16 %v1857
  %v1960 = vunpack.c.h.b16 %v1857
  %v1961 = vunpack.c.l.b16 %v1858
  %v1962 = vunpack.c.h.b16 %v1858
  %v1963 = vunpack.c.l.b16 %v1859
  %v1964 = vunpack.c.h.b16 %v1859
  %v1965 = vunpack.c.l.b16 %v1860
  %v1966 = vunpack.c.h.b16 %v1860
  %v1967 = vunpack.c.l.b16 %v1861
  %v1968 = vunpack.c.h.b16 %v1861
  %v1969 = vunpack.c.l.b16 %v1862
  %v1970 = vunpack.c.h.b16 %v1862
  %v1971 = vunpack.c.l.b16 %v1863
  %v1972 = vunpack.c.h.b16 %v1863
  %v1973 = vpack.c.b16 %v1913, %v1909
  %v1974 = vpack.c.b16 %v1914, %v1910
  %v1975 = vpack.c.b16 %v1915, %v1911
  %v1976 = vpack.c.b16 %v1916, %v1912
  %v1977 = vpack.c.b16 %v1921, %v1917
  %v1978 = vpack.c.b16 %v1922, %v1918
  %v1979 = vpack.c.b16 %v1923, %v1919
  %v1980 = vpack.c.b16 %v1924, %v1920
  %v1981 = vpack.c.b16 %v1929, %v1925
  %v1982 = vpack.c.b16 %v1930, %v1926
  %v1983 = vpack.c.b16 %v1931, %v1927
  %v1984 = vpack.c.b16 %v1932, %v1928
  %v1985 = vpack.c.b16 %v1937, %v1933
  %v1986 = vpack.c.b16 %v1938, %v1934
  %v1987 = vpack.c.b16 %v1939, %v1935
  %v1988 = vpack.c.b16 %v1940, %v1936
  %v1989 = vpack.c.b16 %v1945, %v1941
  %v1990 = vpack.c.b16 %v1946, %v1942
  %v1991 = vpack.c.b16 %v1947, %v1943
  %v1992 = vpack.c.b16 %v1948, %v1944
  %v1993 = vpack.c.b16 %v1953, %v1949
  %v1994 = vpack.c.b16 %v1954, %v1950
  %v1995 = vpack.c.b16 %v1955, %v1951
  %v1996 = vpack.c.b16 %v1956, %v1952
  %v1997 = vpack.c.b16 %v1961, %v1957
  %v1998 = vpack.c.b16 %v1962, %v1958
  %v1999 = vpack.c.b16 %v1963, %v1959
  %v2000 = vpack.c.b16 %v1964, %v1960
  %v2001 = vpack.c.b16 %v1969, %v1965
  %v2002 = vpack.c.b16 %v1970, %v1966
  %v2003 = vpack.c.b16 %v1971, %v1967
  %v2004 = vpack.c.b16 %v1972, %v1968
  %2037 = vmatprep.subr.bf16.mxu0 %v2002
  %2038 = vmatpush1.bf16.msra.mxu0 %v2001
  %2039 = vmatprep.subr.bf16.mxu0 %v1998
  %2040 = vmatpush1.bf16.msra.mxu0 %v1997
  %2041 = vmatprep.subr.bf16.mxu0 %v1994
  %2042 = vmatpush1.bf16.msra.mxu0 %v1993
  %2043 = vmatprep.subr.bf16.mxu0 %v1990
  %2044 = vmatpush1.bf16.msra.mxu0 %v1989
  %2045 = vmatprep.subr.bf16.mxu0 %v1986
  %2046 = vmatpush1.bf16.msra.mxu0 %v1985
  %2047 = vmatprep.subr.bf16.mxu0 %v1982
  %2048 = vmatpush1.bf16.msra.mxu0 %v1981
  %2049 = vmatprep.subr.bf16.mxu0 %v1978
  %2050 = vmatpush1.bf16.msra.mxu0 %v1977
  %2051 = vmatprep.subr.bf16.mxu0 %v1974
  %2052 = vmatpush1.bf16.msra.mxu0 %v1973
  %2053 = vmatprep.subr.bf16.mxu0 0
  %2054 = vmatpush2.bf16.msra.mxu0 0
  %2055 = vmatprep.subr.bf16.mxu0 0
  %2056 = vmatpush2.bf16.msra.mxu0 0
  %2057 = vmatprep.subr.bf16.mxu0 0
  %2058 = vmatpush2.bf16.msra.mxu0 0
  %2059 = vmatprep.subr.bf16.mxu0 0
  %2060 = vmatpush2.bf16.msra.mxu0 0
  %2061 = vmatprep.subr.bf16.mxu0 0
  %2062 = vmatpush2.bf16.msra.mxu0 0
  %2063 = vmatprep.subr.bf16.mxu0 0
  %2064 = vmatpush2.bf16.msra.mxu0 0
  %2065 = vmatprep.subr.bf16.mxu0 0
  %2066 = vmatpush2.bf16.msra.mxu0 0
  %2067 = vmatprep.subr.bf16.mxu0 0
  %2068 = vmatpush2.bf16.msra.mxu0 0
  %2069 = vmatprep.mubr.bf16.mxu0 0
  %2070 = vmatmul.mubr.bf16.gmra.mxu0 %v1831
  %v2071 = vpop.f32.mrf.mxu0
  %v2072 = vadd.f32 %v1869, %v2071
  %v2073 = vpop.f32.mrf.mxu0
  %v2074 = vadd.f32 %v1870, %v2073
  %v2075 = vpop.f32.mrf.mxu0
  %v2076 = vadd.f32 %v1873, %v2075
  %v2077 = vpop.f32.mrf.mxu0
  %v2078 = vadd.f32 %v1874, %v2077
  %2079 = vdwg.mxu0
  %2080 = vmatprep.subr.bf16.mxu0 %v2004
  %2081 = vmatpush1.bf16.msra.mxu0 %v2003
  %2082 = vmatprep.subr.bf16.mxu0 %v2000
  %2083 = vmatpush1.bf16.msra.mxu0 %v1999
  %2084 = vmatprep.subr.bf16.mxu0 %v1996
  %2085 = vmatpush1.bf16.msra.mxu0 %v1995
  %2086 = vmatprep.subr.bf16.mxu0 %v1992
  %2087 = vmatpush1.bf16.msra.mxu0 %v1991
  %2088 = vmatprep.subr.bf16.mxu0 %v1988
  %2089 = vmatpush1.bf16.msra.mxu0 %v1987
  %2090 = vmatprep.subr.bf16.mxu0 %v1984
  %2091 = vmatpush1.bf16.msra.mxu0 %v1983
  %2092 = vmatprep.subr.bf16.mxu0 %v1980
  %2093 = vmatpush1.bf16.msra.mxu0 %v1979
  %2094 = vmatprep.subr.bf16.mxu0 %v1976
  %2095 = vmatpush1.bf16.msra.mxu0 %v1975
  %2096 = vmatprep.subr.bf16.mxu0 0
  %2097 = vmatpush2.bf16.msra.mxu0 0
  %2098 = vmatprep.subr.bf16.mxu0 0
  %2099 = vmatpush2.bf16.msra.mxu0 0
  %2100 = vmatprep.subr.bf16.mxu0 0
  %2101 = vmatpush2.bf16.msra.mxu0 0
  %2102 = vmatprep.subr.bf16.mxu0 0
  %2103 = vmatpush2.bf16.msra.mxu0 0
  %2104 = vmatprep.subr.bf16.mxu0 0
  %2105 = vmatpush2.bf16.msra.mxu0 0
  %2106 = vmatprep.subr.bf16.mxu0 0
  %2107 = vmatpush2.bf16.msra.mxu0 0
  %2108 = vmatprep.subr.bf16.mxu0 0
  %2109 = vmatpush2.bf16.msra.mxu0 0
  %2110 = vmatprep.subr.bf16.mxu0 0
  %2111 = vmatpush2.bf16.msra.mxu0 0
  %2112 = vmatprep.mubr.bf16.mxu0 0
  %2113 = vmatmul.mubr.bf16.gmra.mxu0 %v1831
  %v2114 = vpop.f32.mrf.mxu0
  %v2115 = vadd.f32 %v1871, %v2114
  %v2116 = vpop.f32.mrf.mxu0
  %v2117 = vadd.f32 %v1872, %v2116
  %v2118 = vpop.f32.mrf.mxu0
  %v2119 = vadd.f32 %v1875, %v2118
  %v2120 = vpop.f32.mrf.mxu0
  %v2121 = vadd.f32 %v1876, %v2120
  %2122 = vdwg.mxu0
  %v2123 = vxor.u32 %v2072, 2147483648
  %v2124 = vxor.u32 %v2076, 2147483648
  %v2125 = vmul.f32 %v2123, 1.442695
  %v2126 = vpow.pop %v2125
  %v2127 = vmul.f32 %v2124, 1.442695
  %v2128 = vpow.pop %v2127
  %v2129 = vadd.f32 %v2126, 1.0
  %v2130 = vadd.f32 %v2128, 1.0
  %v2131 = vrcp.pop %v2129
  %v2132 = vmul.f32 1.0, %v2131
  %v2133 = vrcp.pop %v2130
  %v2134 = vmul.f32 1.0, %v2133
  %v2135 = vtanh.pop %v2115
  %v2136 = vtanh.pop %v2119
  %v2137 = vmul.f32 %v2132, %v2135
  %v2138 = vmul.f32 %v2134, %v2136
  %v2139 = vxor.u32 %v2074, 2147483648
  %v2140 = vxor.u32 %v2078, 2147483648
  %v2141 = vmul.f32 %v2139, 1.442695
  %v2142 = vpow.pop %v2141
  %v2143 = vmul.f32 %v2140, 1.442695
  %v2144 = vpow.pop %v2143
  %v2145 = vadd.f32 %v2142, 1.0
  %v2146 = vadd.f32 %v2144, 1.0
  %v2147 = vrcp.pop %v2145
  %v2148 = vmul.f32 1.0, %v2147
  %v2149 = vrcp.pop %v2146
  %v2150 = vmul.f32 1.0, %v2149
  %v2151 = vld [vmem:[#allocation3] sm:$0xff]
  %v2152 = vld [vmem:[#allocation3 + $0x8] sm:$0xff]
  %v2153 = vmul.f32 %v2148, %v2151
  %v2154 = vmul.f32 %v2150, %v2152
  %v2155 = vadd.f32 %v2153, %v2137
  %v2156 = vadd.f32 %v2154, %v2138
  %v2157 = vxor.u32 %v2117, 2147483648
  %v2158 = vxor.u32 %v2121, 2147483648
  %v2159 = vmul.f32 %v2157, 1.442695
  %v2160 = vpow.pop %v2159
  %v2161 = vmul.f32 %v2158, 1.442695
  %v2162 = vpow.pop %v2161
  %v2163 = vadd.f32 %v2160, 1.0
  %v2164 = vadd.f32 %v2162, 1.0
  %v2165 = vrcp.pop %v2163
  %v2166 = vmul.f32 1.0, %v2165
  %v2167 = vrcp.pop %v2164
  %v2168 = vmul.f32 1.0, %v2167
  %v2169 = vtanh.pop %v2155
  %v2170 = vtanh.pop %v2156
  %v2171 = vmul.f32 %v2166, %v2169
  %v2172 = vmul.f32 %v2168, %v2170
  %2173 = vst [vmem:[#allocation3] sm:$0xff] %v2155
  %2174 = vst [vmem:[#allocation3 + $0x8] sm:$0xff] %v2156
  %2175 = vst [vmem:[#allocation2] sm:$0xff] %v2171
  %2176 = vst [vmem:[#allocation2 + $0x8] sm:$0xff] %v2172
  %v2177 = vpack.c.bf16 %v2172, %v2171
  %v2179 = vunpack.c.l.b16 %v2177
  %v2180 = vunpack.c.h.b16 %v2177
  %v2181 = vpack.c.b16 %v2179, %v2179
  %v2182 = vpack.c.b16 %v2180, %v2180
  %s2185 = scalar_lea.vmem %s4, 24
  %2186 = vst [vmem:[%s2185] sm:$0xf] %v2181
  %2187 = vst [vmem:[%s2185 + $0x4] sm:$0xf] %v2182
  %v2188 = vld [vmem:[#allocation2] sm:$0xff]
  %v2189 = vld [vmem:[#allocation2 + $0x8] sm:$0xff]
  %v2190 = vpack.c.bf16 %v2189, %v2188
  %v2191 = vld [vmem:[%s2] sm:$0xff]
  %v2192 = vld [vmem:[%s2 + $0x8] sm:$0xff]
  %v2193 = vld [vmem:[%s2 + $0x10] sm:$0xff]
  %v2194 = vld [vmem:[%s2 + $0x18] sm:$0xff]
  %v2195 = vld [vmem:[%s2 + $0x20] sm:$0xff]
  %v2196 = vld [vmem:[%s2 + $0x28] sm:$0xff]
  %v2197 = vld [vmem:[%s2 + $0x30] sm:$0xff]
  %v2198 = vld [vmem:[%s2 + $0x38] sm:$0xff]
  %v2199 = vld [vmem:[%s2 + $0x40] sm:$0xff]
  %v2200 = vld [vmem:[%s2 + $0x48] sm:$0xff]
  %v2201 = vld [vmem:[%s2 + $0x50] sm:$0xff]
  %v2202 = vld [vmem:[%s2 + $0x58] sm:$0xff]
  %v2203 = vld [vmem:[%s2 + $0x60] sm:$0xff]
  %v2204 = vld [vmem:[%s2 + $0x68] sm:$0xff]
  %v2205 = vld [vmem:[%s2 + $0x70] sm:$0xff]
  %v2206 = vld [vmem:[%s2 + $0x78] sm:$0xff]
  %v2207 = vld [vmem:[%s2 + $0x80] sm:$0xff]
  %v2208 = vld [vmem:[%s2 + $0x88] sm:$0xff]
  %v2209 = vld [vmem:[%s2 + $0x90] sm:$0xff]
  %v2210 = vld [vmem:[%s2 + $0x98] sm:$0xff]
  %v2211 = vld [vmem:[%s2 + $0xa0] sm:$0xff]
  %v2212 = vld [vmem:[%s2 + $0xa8] sm:$0xff]
  %v2213 = vld [vmem:[%s2 + $0xb0] sm:$0xff]
  %v2214 = vld [vmem:[%s2 + $0xb8] sm:$0xff]
  %v2215 = vld [vmem:[%s2 + $0xc0] sm:$0xff]
  %v2216 = vld [vmem:[%s2 + $0xc8] sm:$0xff]
  %v2217 = vld [vmem:[%s2 + $0xd0] sm:$0xff]
  %v2218 = vld [vmem:[%s2 + $0xd8] sm:$0xff]
  %v2219 = vld [vmem:[%s2 + $0xe0] sm:$0xff]
  %v2220 = vld [vmem:[%s2 + $0xe8] sm:$0xff]
  %v2221 = vld [vmem:[%s2 + $0xf0] sm:$0xff]
  %v2222 = vld [vmem:[%s2 + $0xf8] sm:$0xff]
  %s2223 = scalar_lea.vmem [#allocation4], 128
  %v2224 = vld [vmem:[%s2223] sm:$0xff]
  %v2225 = vld [vmem:[%s2223 + $0x8] sm:$0xff]
  %v2226 = vld [vmem:[%s2223 + $0x10] sm:$0xff]
  %v2227 = vld [vmem:[%s2223 + $0x18] sm:$0xff]
  %v2228 = vunpack.c.l.bf16 %v2224
  %v2229 = vunpack.c.h.bf16 %v2224
  %v2230 = vunpack.c.l.bf16 %v2225
  %v2231 = vunpack.c.h.bf16 %v2225
  %v2232 = vunpack.c.l.bf16 %v2226
  %v2233 = vunpack.c.h.bf16 %v2226
  %v2234 = vunpack.c.l.bf16 %v2227
  %v2235 = vunpack.c.h.bf16 %v2227
  %v2268 = vunpack.c.l.b16 %v2191
  %v2269 = vunpack.c.h.b16 %v2191
  %v2270 = vunpack.c.l.b16 %v2192
  %v2271 = vunpack.c.h.b16 %v2192
  %v2272 = vunpack.c.l.b16 %v2193
  %v2273 = vunpack.c.h.b16 %v2193
  %v2274 = vunpack.c.l.b16 %v2194
  %v2275 = vunpack.c.h.b16 %v2194
  %v2276 = vunpack.c.l.b16 %v2195
  %v2277 = vunpack.c.h.b16 %v2195
  %v2278 = vunpack.c.l.b16 %v2196
  %v2279 = vunpack.c.h.b16 %v2196
  %v2280 = vunpack.c.l.b16 %v2197
  %v2281 = vunpack.c.h.b16 %v2197
  %v2282 = vunpack.c.l.b16 %v2198
  %v2283 = vunpack.c.h.b16 %v2198
  %v2284 = vunpack.c.l.b16 %v2199
  %v2285 = vunpack.c.h.b16 %v2199
  %v2286 = vunpack.c.l.b16 %v2200
  %v2287 = vunpack.c.h.b16 %v2200
  %v2288 = vunpack.c.l.b16 %v2201
  %v2289 = vunpack.c.h.b16 %v2201
  %v2290 = vunpack.c.l.b16 %v2202
  %v2291 = vunpack.c.h.b16 %v2202
  %v2292 = vunpack.c.l.b16 %v2203
  %v2293 = vunpack.c.h.b16 %v2203
  %v2294 = vunpack.c.l.b16 %v2204
  %v2295 = vunpack.c.h.b16 %v2204
  %v2296 = vunpack.c.l.b16 %v2205
  %v2297 = vunpack.c.h.b16 %v2205
  %v2298 = vunpack.c.l.b16 %v2206
  %v2299 = vunpack.c.h.b16 %v2206
  %v2300 = vunpack.c.l.b16 %v2207
  %v2301 = vunpack.c.h.b16 %v2207
  %v2302 = vunpack.c.l.b16 %v2208
  %v2303 = vunpack.c.h.b16 %v2208
  %v2304 = vunpack.c.l.b16 %v2209
  %v2305 = vunpack.c.h.b16 %v2209
  %v2306 = vunpack.c.l.b16 %v2210
  %v2307 = vunpack.c.h.b16 %v2210
  %v2308 = vunpack.c.l.b16 %v2211
  %v2309 = vunpack.c.h.b16 %v2211
  %v2310 = vunpack.c.l.b16 %v2212
  %v2311 = vunpack.c.h.b16 %v2212
  %v2312 = vunpack.c.l.b16 %v2213
  %v2313 = vunpack.c.h.b16 %v2213
  %v2314 = vunpack.c.l.b16 %v2214
  %v2315 = vunpack.c.h.b16 %v2214
  %v2316 = vunpack.c.l.b16 %v2215
  %v2317 = vunpack.c.h.b16 %v2215
  %v2318 = vunpack.c.l.b16 %v2216
  %v2319 = vunpack.c.h.b16 %v2216
  %v2320 = vunpack.c.l.b16 %v2217
  %v2321 = vunpack.c.h.b16 %v2217
  %v2322 = vunpack.c.l.b16 %v2218
  %v2323 = vunpack.c.h.b16 %v2218
  %v2324 = vunpack.c.l.b16 %v2219
  %v2325 = vunpack.c.h.b16 %v2219
  %v2326 = vunpack.c.l.b16 %v2220
  %v2327 = vunpack.c.h.b16 %v2220
  %v2328 = vunpack.c.l.b16 %v2221
  %v2329 = vunpack.c.h.b16 %v2221
  %v2330 = vunpack.c.l.b16 %v2222
  %v2331 = vunpack.c.h.b16 %v2222
  %v2332 = vpack.c.b16 %v2272, %v2268
  %v2333 = vpack.c.b16 %v2273, %v2269
  %v2334 = vpack.c.b16 %v2274, %v2270
  %v2335 = vpack.c.b16 %v2275, %v2271
  %v2336 = vpack.c.b16 %v2280, %v2276
  %v2337 = vpack.c.b16 %v2281, %v2277
  %v2338 = vpack.c.b16 %v2282, %v2278
  %v2339 = vpack.c.b16 %v2283, %v2279
  %v2340 = vpack.c.b16 %v2288, %v2284
  %v2341 = vpack.c.b16 %v2289, %v2285
  %v2342 = vpack.c.b16 %v2290, %v2286
  %v2343 = vpack.c.b16 %v2291, %v2287
  %v2344 = vpack.c.b16 %v2296, %v2292
  %v2345 = vpack.c.b16 %v2297, %v2293
  %v2346 = vpack.c.b16 %v2298, %v2294
  %v2347 = vpack.c.b16 %v2299, %v2295
  %v2348 = vpack.c.b16 %v2304, %v2300
  %v2349 = vpack.c.b16 %v2305, %v2301
  %v2350 = vpack.c.b16 %v2306, %v2302
  %v2351 = vpack.c.b16 %v2307, %v2303
  %v2352 = vpack.c.b16 %v2312, %v2308
  %v2353 = vpack.c.b16 %v2313, %v2309
  %v2354 = vpack.c.b16 %v2314, %v2310
  %v2355 = vpack.c.b16 %v2315, %v2311
  %v2356 = vpack.c.b16 %v2320, %v2316
  %v2357 = vpack.c.b16 %v2321, %v2317
  %v2358 = vpack.c.b16 %v2322, %v2318
  %v2359 = vpack.c.b16 %v2323, %v2319
  %v2360 = vpack.c.b16 %v2328, %v2324
  %v2361 = vpack.c.b16 %v2329, %v2325
  %v2362 = vpack.c.b16 %v2330, %v2326
  %v2363 = vpack.c.b16 %v2331, %v2327
  %2396 = vmatprep.subr.bf16.mxu0 %v2361
  %2397 = vmatpush1.bf16.msra.mxu0 %v2360
  %2398 = vmatprep.subr.bf16.mxu0 %v2357
  %2399 = vmatpush1.bf16.msra.mxu0 %v2356
  %2400 = vmatprep.subr.bf16.mxu0 %v2353
  %2401 = vmatpush1.bf16.msra.mxu0 %v2352
  %2402 = vmatprep.subr.bf16.mxu0 %v2349
  %2403 = vmatpush1.bf16.msra.mxu0 %v2348
  %2404 = vmatprep.subr.bf16.mxu0 %v2345
  %2405 = vmatpush1.bf16.msra.mxu0 %v2344
  %2406 = vmatprep.subr.bf16.mxu0 %v2341
  %2407 = vmatpush1.bf16.msra.mxu0 %v2340
  %2408 = vmatprep.subr.bf16.mxu0 %v2337
  %2409 = vmatpush1.bf16.msra.mxu0 %v2336
  %2410 = vmatprep.subr.bf16.mxu0 %v2333
  %2411 = vmatpush1.bf16.msra.mxu0 %v2332
  %2412 = vmatprep.subr.bf16.mxu0 0
  %2413 = vmatpush2.bf16.msra.mxu0 0
  %2414 = vmatprep.subr.bf16.mxu0 0
  %2415 = vmatpush2.bf16.msra.mxu0 0
  %2416 = vmatprep.subr.bf16.mxu0 0
  %2417 = vmatpush2.bf16.msra.mxu0 0
  %2418 = vmatprep.subr.bf16.mxu0 0
  %2419 = vmatpush2.bf16.msra.mxu0 0
  %2420 = vmatprep.subr.bf16.mxu0 0
  %2421 = vmatpush2.bf16.msra.mxu0 0
  %2422 = vmatprep.subr.bf16.mxu0 0
  %2423 = vmatpush2.bf16.msra.mxu0 0
  %2424 = vmatprep.subr.bf16.mxu0 0
  %2425 = vmatpush2.bf16.msra.mxu0 0
  %2426 = vmatprep.subr.bf16.mxu0 0
  %2427 = vmatpush2.bf16.msra.mxu0 0
  %2428 = vmatprep.mubr.bf16.mxu0 0
  %2429 = vmatmul.mubr.bf16.gmra.mxu0 %v2190
  %v2430 = vpop.f32.mrf.mxu0
  %v2431 = vadd.f32 %v2228, %v2430
  %v2432 = vpop.f32.mrf.mxu0
  %v2433 = vadd.f32 %v2229, %v2432
  %v2434 = vpop.f32.mrf.mxu0
  %v2435 = vadd.f32 %v2232, %v2434
  %v2436 = vpop.f32.mrf.mxu0
  %v2437 = vadd.f32 %v2233, %v2436
  %2438 = vdwg.mxu0
  %2439 = vmatprep.subr.bf16.mxu0 %v2363
  %2440 = vmatpush1.bf16.msra.mxu0 %v2362
  %2441 = vmatprep.subr.bf16.mxu0 %v2359
  %2442 = vmatpush1.bf16.msra.mxu0 %v2358
  %2443 = vmatprep.subr.bf16.mxu0 %v2355
  %2444 = vmatpush1.bf16.msra.mxu0 %v2354
  %2445 = vmatprep.subr.bf16.mxu0 %v2351
  %2446 = vmatpush1.bf16.msra.mxu0 %v2350
  %2447 = vmatprep.subr.bf16.mxu0 %v2347
  %2448 = vmatpush1.bf16.msra.mxu0 %v2346
  %2449 = vmatprep.subr.bf16.mxu0 %v2343
  %2450 = vmatpush1.bf16.msra.mxu0 %v2342
  %2451 = vmatprep.subr.bf16.mxu0 %v2339
  %2452 = vmatpush1.bf16.msra.mxu0 %v2338
  %2453 = vmatprep.subr.bf16.mxu0 %v2335
  %2454 = vmatpush1.bf16.msra.mxu0 %v2334
  %2455 = vmatprep.subr.bf16.mxu0 0
  %2456 = vmatpush2.bf16.msra.mxu0 0
  %2457 = vmatprep.subr.bf16.mxu0 0
  %2458 = vmatpush2.bf16.msra.mxu0 0
  %2459 = vmatprep.subr.bf16.mxu0 0
  %2460 = vmatpush2.bf16.msra.mxu0 0
  %2461 = vmatprep.subr.bf16.mxu0 0
  %2462 = vmatpush2.bf16.msra.mxu0 0
  %2463 = vmatprep.subr.bf16.mxu0 0
  %2464 = vmatpush2.bf16.msra.mxu0 0
  %2465 = vmatprep.subr.bf16.mxu0 0
  %2466 = vmatpush2.bf16.msra.mxu0 0
  %2467 = vmatprep.subr.bf16.mxu0 0
  %2468 = vmatpush2.bf16.msra.mxu0 0
  %2469 = vmatprep.subr.bf16.mxu0 0
  %2470 = vmatpush2.bf16.msra.mxu0 0
  %2471 = vmatprep.mubr.bf16.mxu0 0
  %2472 = vmatmul.mubr.bf16.gmra.mxu0 %v2190
  %v2473 = vpop.f32.mrf.mxu0
  %v2474 = vadd.f32 %v2230, %v2473
  %v2475 = vpop.f32.mrf.mxu0
  %v2476 = vadd.f32 %v2231, %v2475
  %v2477 = vpop.f32.mrf.mxu0
  %v2478 = vadd.f32 %v2234, %v2477
  %v2479 = vpop.f32.mrf.mxu0
  %v2480 = vadd.f32 %v2235, %v2479
  %2481 = vdwg.mxu0
  %v2482 = vxor.u32 %v2431, 2147483648
  %v2483 = vxor.u32 %v2435, 2147483648
  %v2484 = vmul.f32 %v2482, 1.442695
  %v2485 = vpow.pop %v2484
  %v2486 = vmul.f32 %v2483, 1.442695
  %v2487 = vpow.pop %v2486
  %v2488 = vadd.f32 %v2485, 1.0
  %v2489 = vadd.f32 %v2487, 1.0
  %v2490 = vrcp.pop %v2488
  %v2491 = vmul.f32 1.0, %v2490
  %v2492 = vrcp.pop %v2489
  %v2493 = vmul.f32 1.0, %v2492
  %v2494 = vtanh.pop %v2474
  %v2495 = vtanh.pop %v2478
  %v2496 = vmul.f32 %v2491, %v2494
  %v2497 = vmul.f32 %v2493, %v2495
  %v2498 = vxor.u32 %v2433, 2147483648
  %v2499 = vxor.u32 %v2437, 2147483648
  %v2500 = vmul.f32 %v2498, 1.442695
  %v2501 = vpow.pop %v2500
  %v2502 = vmul.f32 %v2499, 1.442695
  %v2503 = vpow.pop %v2502
  %v2504 = vadd.f32 %v2501, 1.0
  %v2505 = vadd.f32 %v2503, 1.0
  %v2506 = vrcp.pop %v2504
  %v2507 = vmul.f32 1.0, %v2506
  %v2508 = vrcp.pop %v2505
  %v2509 = vmul.f32 1.0, %v2508
  %v2510 = vld [vmem:[#allocation3] sm:$0xff]
  %v2511 = vld [vmem:[#allocation3 + $0x8] sm:$0xff]
  %v2512 = vmul.f32 %v2507, %v2510
  %v2513 = vmul.f32 %v2509, %v2511
  %v2514 = vadd.f32 %v2512, %v2496
  %v2515 = vadd.f32 %v2513, %v2497
  %v2516 = vxor.u32 %v2476, 2147483648
  %v2517 = vxor.u32 %v2480, 2147483648
  %v2518 = vmul.f32 %v2516, 1.442695
  %v2519 = vpow.pop %v2518
  %v2520 = vmul.f32 %v2517, 1.442695
  %v2521 = vpow.pop %v2520
  %v2522 = vadd.f32 %v2519, 1.0
  %v2523 = vadd.f32 %v2521, 1.0
  %v2524 = vrcp.pop %v2522
  %v2525 = vmul.f32 1.0, %v2524
  %v2526 = vrcp.pop %v2523
  %v2527 = vmul.f32 1.0, %v2526
  %v2528 = vtanh.pop %v2514
  %v2529 = vtanh.pop %v2515
  %v2530 = vmul.f32 %v2525, %v2528
  %v2531 = vmul.f32 %v2527, %v2529
  %2532 = vst [vmem:[#allocation3] sm:$0xff] %v2514
  %2533 = vst [vmem:[#allocation3 + $0x8] sm:$0xff] %v2515
  %2534 = vst [vmem:[#allocation2] sm:$0xff] %v2530
  %2535 = vst [vmem:[#allocation2 + $0x8] sm:$0xff] %v2531
  %v2536 = vpack.c.bf16 %v2531, %v2530
  %v2538 = vunpack.c.l.b16 %v2536
  %v2539 = vunpack.c.h.b16 %v2536
  %v2540 = vpack.c.b16 %v2538, %v2538
  %v2541 = vpack.c.b16 %v2539, %v2539
  %s2544 = scalar_lea.vmem %s4, 32
  %2545 = vst [vmem:[%s2544] sm:$0xf] %v2540
  %2546 = vst [vmem:[%s2544 + $0x4] sm:$0xf] %v2541
  %v2547 = vld [vmem:[#allocation2] sm:$0xff]
  %v2548 = vld [vmem:[#allocation2 + $0x8] sm:$0xff]
  %v2549 = vpack.c.bf16 %v2548, %v2547
  %v2550 = vld [vmem:[%s2] sm:$0xff]
  %v2551 = vld [vmem:[%s2 + $0x8] sm:$0xff]
  %v2552 = vld [vmem:[%s2 + $0x10] sm:$0xff]
  %v2553 = vld [vmem:[%s2 + $0x18] sm:$0xff]
  %v2554 = vld [vmem:[%s2 + $0x20] sm:$0xff]
  %v2555 = vld [vmem:[%s2 + $0x28] sm:$0xff]
  %v2556 = vld [vmem:[%s2 + $0x30] sm:$0xff]
  %v2557 = vld [vmem:[%s2 + $0x38] sm:$0xff]
  %v2558 = vld [vmem:[%s2 + $0x40] sm:$0xff]
  %v2559 = vld [vmem:[%s2 + $0x48] sm:$0xff]
  %v2560 = vld [vmem:[%s2 + $0x50] sm:$0xff]
  %v2561 = vld [vmem:[%s2 + $0x58] sm:$0xff]
  %v2562 = vld [vmem:[%s2 + $0x60] sm:$0xff]
  %v2563 = vld [vmem:[%s2 + $0x68] sm:$0xff]
  %v2564 = vld [vmem:[%s2 + $0x70] sm:$0xff]
  %v2565 = vld [vmem:[%s2 + $0x78] sm:$0xff]
  %v2566 = vld [vmem:[%s2 + $0x80] sm:$0xff]
  %v2567 = vld [vmem:[%s2 + $0x88] sm:$0xff]
  %v2568 = vld [vmem:[%s2 + $0x90] sm:$0xff]
  %v2569 = vld [vmem:[%s2 + $0x98] sm:$0xff]
  %v2570 = vld [vmem:[%s2 + $0xa0] sm:$0xff]
  %v2571 = vld [vmem:[%s2 + $0xa8] sm:$0xff]
  %v2572 = vld [vmem:[%s2 + $0xb0] sm:$0xff]
  %v2573 = vld [vmem:[%s2 + $0xb8] sm:$0xff]
  %v2574 = vld [vmem:[%s2 + $0xc0] sm:$0xff]
  %v2575 = vld [vmem:[%s2 + $0xc8] sm:$0xff]
  %v2576 = vld [vmem:[%s2 + $0xd0] sm:$0xff]
  %v2577 = vld [vmem:[%s2 + $0xd8] sm:$0xff]
  %v2578 = vld [vmem:[%s2 + $0xe0] sm:$0xff]
  %v2579 = vld [vmem:[%s2 + $0xe8] sm:$0xff]
  %v2580 = vld [vmem:[%s2 + $0xf0] sm:$0xff]
  %v2581 = vld [vmem:[%s2 + $0xf8] sm:$0xff]
  %s2582 = scalar_lea.vmem [#allocation4], 160
  %v2583 = vld [vmem:[%s2582] sm:$0xff]
  %v2584 = vld [vmem:[%s2582 + $0x8] sm:$0xff]
  %v2585 = vld [vmem:[%s2582 + $0x10] sm:$0xff]
  %v2586 = vld [vmem:[%s2582 + $0x18] sm:$0xff]
  %v2587 = vunpack.c.l.bf16 %v2583
  %v2588 = vunpack.c.h.bf16 %v2583
  %v2589 = vunpack.c.l.bf16 %v2584
  %v2590 = vunpack.c.h.bf16 %v2584
  %v2591 = vunpack.c.l.bf16 %v2585
  %v2592 = vunpack.c.h.bf16 %v2585
  %v2593 = vunpack.c.l.bf16 %v2586
  %v2594 = vunpack.c.h.bf16 %v2586
  %v2627 = vunpack.c.l.b16 %v2550
  %v2628 = vunpack.c.h.b16 %v2550
  %v2629 = vunpack.c.l.b16 %v2551
  %v2630 = vunpack.c.h.b16 %v2551
  %v2631 = vunpack.c.l.b16 %v2552
  %v2632 = vunpack.c.h.b16 %v2552
  %v2633 = vunpack.c.l.b16 %v2553
  %v2634 = vunpack.c.h.b16 %v2553
  %v2635 = vunpack.c.l.b16 %v2554
  %v2636 = vunpack.c.h.b16 %v2554
  %v2637 = vunpack.c.l.b16 %v2555
  %v2638 = vunpack.c.h.b16 %v2555
  %v2639 = vunpack.c.l.b16 %v2556
  %v2640 = vunpack.c.h.b16 %v2556
  %v2641 = vunpack.c.l.b16 %v2557
  %v2642 = vunpack.c.h.b16 %v2557
  %v2643 = vunpack.c.l.b16 %v2558
  %v2644 = vunpack.c.h.b16 %v2558
  %v2645 = vunpack.c.l.b16 %v2559
  %v2646 = vunpack.c.h.b16 %v2559
  %v2647 = vunpack.c.l.b16 %v2560
  %v2648 = vunpack.c.h.b16 %v2560
  %v2649 = vunpack.c.l.b16 %v2561
  %v2650 = vunpack.c.h.b16 %v2561
  %v2651 = vunpack.c.l.b16 %v2562
  %v2652 = vunpack.c.h.b16 %v2562
  %v2653 = vunpack.c.l.b16 %v2563
  %v2654 = vunpack.c.h.b16 %v2563
  %v2655 = vunpack.c.l.b16 %v2564
  %v2656 = vunpack.c.h.b16 %v2564
  %v2657 = vunpack.c.l.b16 %v2565
  %v2658 = vunpack.c.h.b16 %v2565
  %v2659 = vunpack.c.l.b16 %v2566
  %v2660 = vunpack.c.h.b16 %v2566
  %v2661 = vunpack.c.l.b16 %v2567
  %v2662 = vunpack.c.h.b16 %v2567
  %v2663 = vunpack.c.l.b16 %v2568
  %v2664 = vunpack.c.h.b16 %v2568
  %v2665 = vunpack.c.l.b16 %v2569
  %v2666 = vunpack.c.h.b16 %v2569
  %v2667 = vunpack.c.l.b16 %v2570
  %v2668 = vunpack.c.h.b16 %v2570
  %v2669 = vunpack.c.l.b16 %v2571
  %v2670 = vunpack.c.h.b16 %v2571
  %v2671 = vunpack.c.l.b16 %v2572
  %v2672 = vunpack.c.h.b16 %v2572
  %v2673 = vunpack.c.l.b16 %v2573
  %v2674 = vunpack.c.h.b16 %v2573
  %v2675 = vunpack.c.l.b16 %v2574
  %v2676 = vunpack.c.h.b16 %v2574
  %v2677 = vunpack.c.l.b16 %v2575
  %v2678 = vunpack.c.h.b16 %v2575
  %v2679 = vunpack.c.l.b16 %v2576
  %v2680 = vunpack.c.h.b16 %v2576
  %v2681 = vunpack.c.l.b16 %v2577
  %v2682 = vunpack.c.h.b16 %v2577
  %v2683 = vunpack.c.l.b16 %v2578
  %v2684 = vunpack.c.h.b16 %v2578
  %v2685 = vunpack.c.l.b16 %v2579
  %v2686 = vunpack.c.h.b16 %v2579
  %v2687 = vunpack.c.l.b16 %v2580
  %v2688 = vunpack.c.h.b16 %v2580
  %v2689 = vunpack.c.l.b16 %v2581
  %v2690 = vunpack.c.h.b16 %v2581
  %v2691 = vpack.c.b16 %v2631, %v2627
  %v2692 = vpack.c.b16 %v2632, %v2628
  %v2693 = vpack.c.b16 %v2633, %v2629
  %v2694 = vpack.c.b16 %v2634, %v2630
  %v2695 = vpack.c.b16 %v2639, %v2635
  %v2696 = vpack.c.b16 %v2640, %v2636
  %v2697 = vpack.c.b16 %v2641, %v2637
  %v2698 = vpack.c.b16 %v2642, %v2638
  %v2699 = vpack.c.b16 %v2647, %v2643
  %v2700 = vpack.c.b16 %v2648, %v2644
  %v2701 = vpack.c.b16 %v2649, %v2645
  %v2702 = vpack.c.b16 %v2650, %v2646
  %v2703 = vpack.c.b16 %v2655, %v2651
  %v2704 = vpack.c.b16 %v2656, %v2652
  %v2705 = vpack.c.b16 %v2657, %v2653
  %v2706 = vpack.c.b16 %v2658, %v2654
  %v2707 = vpack.c.b16 %v2663, %v2659
  %v2708 = vpack.c.b16 %v2664, %v2660
  %v2709 = vpack.c.b16 %v2665, %v2661
  %v2710 = vpack.c.b16 %v2666, %v2662
  %v2711 = vpack.c.b16 %v2671, %v2667
  %v2712 = vpack.c.b16 %v2672, %v2668
  %v2713 = vpack.c.b16 %v2673, %v2669
  %v2714 = vpack.c.b16 %v2674, %v2670
  %v2715 = vpack.c.b16 %v2679, %v2675
  %v2716 = vpack.c.b16 %v2680, %v2676
  %v2717 = vpack.c.b16 %v2681, %v2677
  %v2718 = vpack.c.b16 %v2682, %v2678
  %v2719 = vpack.c.b16 %v2687, %v2683
  %v2720 = vpack.c.b16 %v2688, %v2684
  %v2721 = vpack.c.b16 %v2689, %v2685
  %v2722 = vpack.c.b16 %v2690, %v2686
  %2755 = vmatprep.subr.bf16.mxu0 %v2720
  %2756 = vmatpush1.bf16.msra.mxu0 %v2719
  %2757 = vmatprep.subr.bf16.mxu0 %v2716
  %2758 = vmatpush1.bf16.msra.mxu0 %v2715
  %2759 = vmatprep.subr.bf16.mxu0 %v2712
  %2760 = vmatpush1.bf16.msra.mxu0 %v2711
  %2761 = vmatprep.subr.bf16.mxu0 %v2708
  %2762 = vmatpush1.bf16.msra.mxu0 %v2707
  %2763 = vmatprep.subr.bf16.mxu0 %v2704
  %2764 = vmatpush1.bf16.msra.mxu0 %v2703
  %2765 = vmatprep.subr.bf16.mxu0 %v2700
  %2766 = vmatpush1.bf16.msra.mxu0 %v2699
  %2767 = vmatprep.subr.bf16.mxu0 %v2696
  %2768 = vmatpush1.bf16.msra.mxu0 %v2695
  %2769 = vmatprep.subr.bf16.mxu0 %v2692
  %2770 = vmatpush1.bf16.msra.mxu0 %v2691
  %2771 = vmatprep.subr.bf16.mxu0 0
  %2772 = vmatpush2.bf16.msra.mxu0 0
  %2773 = vmatprep.subr.bf16.mxu0 0
  %2774 = vmatpush2.bf16.msra.mxu0 0
  %2775 = vmatprep.subr.bf16.mxu0 0
  %2776 = vmatpush2.bf16.msra.mxu0 0
  %2777 = vmatprep.subr.bf16.mxu0 0
  %2778 = vmatpush2.bf16.msra.mxu0 0
  %2779 = vmatprep.subr.bf16.mxu0 0
  %2780 = vmatpush2.bf16.msra.mxu0 0
  %2781 = vmatprep.subr.bf16.mxu0 0
  %2782 = vmatpush2.bf16.msra.mxu0 0
  %2783 = vmatprep.subr.bf16.mxu0 0
  %2784 = vmatpush2.bf16.msra.mxu0 0
  %2785 = vmatprep.subr.bf16.mxu0 0
  %2786 = vmatpush2.bf16.msra.mxu0 0
  %2787 = vmatprep.mubr.bf16.mxu0 0
  %2788 = vmatmul.mubr.bf16.gmra.mxu0 %v2549
  %v2789 = vpop.f32.mrf.mxu0
  %v2790 = vadd.f32 %v2587, %v2789
  %v2791 = vpop.f32.mrf.mxu0
  %v2792 = vadd.f32 %v2588, %v2791
  %v2793 = vpop.f32.mrf.mxu0
  %v2794 = vadd.f32 %v2591, %v2793
  %v2795 = vpop.f32.mrf.mxu0
  %v2796 = vadd.f32 %v2592, %v2795
  %2797 = vdwg.mxu0
  %2798 = vmatprep.subr.bf16.mxu0 %v2722
  %2799 = vmatpush1.bf16.msra.mxu0 %v2721
  %2800 = vmatprep.subr.bf16.mxu0 %v2718
  %2801 = vmatpush1.bf16.msra.mxu0 %v2717
  %2802 = vmatprep.subr.bf16.mxu0 %v2714
  %2803 = vmatpush1.bf16.msra.mxu0 %v2713
  %2804 = vmatprep.subr.bf16.mxu0 %v2710
  %2805 = vmatpush1.bf16.msra.mxu0 %v2709
  %2806 = vmatprep.subr.bf16.mxu0 %v2706
  %2807 = vmatpush1.bf16.msra.mxu0 %v2705
  %2808 = vmatprep.subr.bf16.mxu0 %v2702
  %2809 = vmatpush1.bf16.msra.mxu0 %v2701
  %2810 = vmatprep.subr.bf16.mxu0 %v2698
  %2811 = vmatpush1.bf16.msra.mxu0 %v2697
  %2812 = vmatprep.subr.bf16.mxu0 %v2694
  %2813 = vmatpush1.bf16.msra.mxu0 %v2693
  %2814 = vmatprep.subr.bf16.mxu0 0
  %2815 = vmatpush2.bf16.msra.mxu0 0
  %2816 = vmatprep.subr.bf16.mxu0 0
  %2817 = vmatpush2.bf16.msra.mxu0 0
  %2818 = vmatprep.subr.bf16.mxu0 0
  %2819 = vmatpush2.bf16.msra.mxu0 0
  %2820 = vmatprep.subr.bf16.mxu0 0
  %2821 = vmatpush2.bf16.msra.mxu0 0
  %2822 = vmatprep.subr.bf16.mxu0 0
  %2823 = vmatpush2.bf16.msra.mxu0 0
  %2824 = vmatprep.subr.bf16.mxu0 0
  %2825 = vmatpush2.bf16.msra.mxu0 0
  %2826 = vmatprep.subr.bf16.mxu0 0
  %2827 = vmatpush2.bf16.msra.mxu0 0
  %2828 = vmatprep.subr.bf16.mxu0 0
  %2829 = vmatpush2.bf16.msra.mxu0 0
  %2830 = vmatprep.mubr.bf16.mxu0 0
  %2831 = vmatmul.mubr.bf16.gmra.mxu0 %v2549
  %v2832 = vpop.f32.mrf.mxu0
  %v2833 = vadd.f32 %v2589, %v2832
  %v2834 = vpop.f32.mrf.mxu0
  %v2835 = vadd.f32 %v2590, %v2834
  %v2836 = vpop.f32.mrf.mxu0
  %v2837 = vadd.f32 %v2593, %v2836
  %v2838 = vpop.f32.mrf.mxu0
  %v2839 = vadd.f32 %v2594, %v2838
  %2840 = vdwg.mxu0
  %v2841 = vxor.u32 %v2790, 2147483648
  %v2842 = vxor.u32 %v2794, 2147483648
  %v2843 = vmul.f32 %v2841, 1.442695
  %v2844 = vpow.pop %v2843
  %v2845 = vmul.f32 %v2842, 1.442695
  %v2846 = vpow.pop %v2845
  %v2847 = vadd.f32 %v2844, 1.0
  %v2848 = vadd.f32 %v2846, 1.0
  %v2849 = vrcp.pop %v2847
  %v2850 = vmul.f32 1.0, %v2849
  %v2851 = vrcp.pop %v2848
  %v2852 = vmul.f32 1.0, %v2851
  %v2853 = vtanh.pop %v2833
  %v2854 = vtanh.pop %v2837
  %v2855 = vmul.f32 %v2850, %v2853
  %v2856 = vmul.f32 %v2852, %v2854
  %v2857 = vxor.u32 %v2792, 2147483648
  %v2858 = vxor.u32 %v2796, 2147483648
  %v2859 = vmul.f32 %v2857, 1.442695
  %v2860 = vpow.pop %v2859
  %v2861 = vmul.f32 %v2858, 1.442695
  %v2862 = vpow.pop %v2861
  %v2863 = vadd.f32 %v2860, 1.0
  %v2864 = vadd.f32 %v2862, 1.0
  %v2865 = vrcp.pop %v2863
  %v2866 = vmul.f32 1.0, %v2865
  %v2867 = vrcp.pop %v2864
  %v2868 = vmul.f32 1.0, %v2867
  %v2869 = vld [vmem:[#allocation3] sm:$0xff]
  %v2870 = vld [vmem:[#allocation3 + $0x8] sm:$0xff]
  %v2871 = vmul.f32 %v2866, %v2869
  %v2872 = vmul.f32 %v2868, %v2870
  %v2873 = vadd.f32 %v2871, %v2855
  %v2874 = vadd.f32 %v2872, %v2856
  %v2875 = vxor.u32 %v2835, 2147483648
  %v2876 = vxor.u32 %v2839, 2147483648
  %v2877 = vmul.f32 %v2875, 1.442695
  %v2878 = vpow.pop %v2877
  %v2879 = vmul.f32 %v2876, 1.442695
  %v2880 = vpow.pop %v2879
  %v2881 = vadd.f32 %v2878, 1.0
  %v2882 = vadd.f32 %v2880, 1.0
  %v2883 = vrcp.pop %v2881
  %v2884 = vmul.f32 1.0, %v2883
  %v2885 = vrcp.pop %v2882
  %v2886 = vmul.f32 1.0, %v2885
  %v2887 = vtanh.pop %v2873
  %v2888 = vtanh.pop %v2874
  %v2889 = vmul.f32 %v2884, %v2887
  %v2890 = vmul.f32 %v2886, %v2888
  %2891 = vst [vmem:[#allocation3] sm:$0xff] %v2873
  %2892 = vst [vmem:[#allocation3 + $0x8] sm:$0xff] %v2874
  %2893 = vst [vmem:[#allocation2] sm:$0xff] %v2889
  %2894 = vst [vmem:[#allocation2 + $0x8] sm:$0xff] %v2890
  %v2895 = vpack.c.bf16 %v2890, %v2889
  %v2897 = vunpack.c.l.b16 %v2895
  %v2898 = vunpack.c.h.b16 %v2895
  %v2899 = vpack.c.b16 %v2897, %v2897
  %v2900 = vpack.c.b16 %v2898, %v2898
  %s2903 = scalar_lea.vmem %s4, 40
  %2904 = vst [vmem:[%s2903] sm:$0xf] %v2899
  %2905 = vst [vmem:[%s2903 + $0x4] sm:$0xf] %v2900
  %v2906 = vld [vmem:[#allocation2] sm:$0xff]
  %v2907 = vld [vmem:[#allocation2 + $0x8] sm:$0xff]
  %v2908 = vpack.c.bf16 %v2907, %v2906
  %v2909 = vld [vmem:[%s2] sm:$0xff]
  %v2910 = vld [vmem:[%s2 + $0x8] sm:$0xff]
  %v2911 = vld [vmem:[%s2 + $0x10] sm:$0xff]
  %v2912 = vld [vmem:[%s2 + $0x18] sm:$0xff]
  %v2913 = vld [vmem:[%s2 + $0x20] sm:$0xff]
  %v2914 = vld [vmem:[%s2 + $0x28] sm:$0xff]
  %v2915 = vld [vmem:[%s2 + $0x30] sm:$0xff]
  %v2916 = vld [vmem:[%s2 + $0x38] sm:$0xff]
  %v2917 = vld [vmem:[%s2 + $0x40] sm:$0xff]
  %v2918 = vld [vmem:[%s2 + $0x48] sm:$0xff]
  %v2919 = vld [vmem:[%s2 + $0x50] sm:$0xff]
  %v2920 = vld [vmem:[%s2 + $0x58] sm:$0xff]
  %v2921 = vld [vmem:[%s2 + $0x60] sm:$0xff]
  %v2922 = vld [vmem:[%s2 + $0x68] sm:$0xff]
  %v2923 = vld [vmem:[%s2 + $0x70] sm:$0xff]
  %v2924 = vld [vmem:[%s2 + $0x78] sm:$0xff]
  %v2925 = vld [vmem:[%s2 + $0x80] sm:$0xff]
  %v2926 = vld [vmem:[%s2 + $0x88] sm:$0xff]
  %v2927 = vld [vmem:[%s2 + $0x90] sm:$0xff]
  %v2928 = vld [vmem:[%s2 + $0x98] sm:$0xff]
  %v2929 = vld [vmem:[%s2 + $0xa0] sm:$0xff]
  %v2930 = vld [vmem:[%s2 + $0xa8] sm:$0xff]
  %v2931 = vld [vmem:[%s2 + $0xb0] sm:$0xff]
  %v2932 = vld [vmem:[%s2 + $0xb8] sm:$0xff]
  %v2933 = vld [vmem:[%s2 + $0xc0] sm:$0xff]
  %v2934 = vld [vmem:[%s2 + $0xc8] sm:$0xff]
  %v2935 = vld [vmem:[%s2 + $0xd0] sm:$0xff]
  %v2936 = vld [vmem:[%s2 + $0xd8] sm:$0xff]
  %v2937 = vld [vmem:[%s2 + $0xe0] sm:$0xff]
  %v2938 = vld [vmem:[%s2 + $0xe8] sm:$0xff]
  %v2939 = vld [vmem:[%s2 + $0xf0] sm:$0xff]
  %v2940 = vld [vmem:[%s2 + $0xf8] sm:$0xff]
  %s2941 = scalar_lea.vmem [#allocation4], 192
  %v2942 = vld [vmem:[%s2941] sm:$0xff]
  %v2943 = vld [vmem:[%s2941 + $0x8] sm:$0xff]
  %v2944 = vld [vmem:[%s2941 + $0x10] sm:$0xff]
  %v2945 = vld [vmem:[%s2941 + $0x18] sm:$0xff]
  %v2946 = vunpack.c.l.bf16 %v2942
  %v2947 = vunpack.c.h.bf16 %v2942
  %v2948 = vunpack.c.l.bf16 %v2943
  %v2949 = vunpack.c.h.bf16 %v2943
  %v2950 = vunpack.c.l.bf16 %v2944
  %v2951 = vunpack.c.h.bf16 %v2944
  %v2952 = vunpack.c.l.bf16 %v2945
  %v2953 = vunpack.c.h.bf16 %v2945
  %v2986 = vunpack.c.l.b16 %v2909
  %v2987 = vunpack.c.h.b16 %v2909
  %v2988 = vunpack.c.l.b16 %v2910
  %v2989 = vunpack.c.h.b16 %v2910
  %v2990 = vunpack.c.l.b16 %v2911
  %v2991 = vunpack.c.h.b16 %v2911
  %v2992 = vunpack.c.l.b16 %v2912
  %v2993 = vunpack.c.h.b16 %v2912
  %v2994 = vunpack.c.l.b16 %v2913
  %v2995 = vunpack.c.h.b16 %v2913
  %v2996 = vunpack.c.l.b16 %v2914
  %v2997 = vunpack.c.h.b16 %v2914
  %v2998 = vunpack.c.l.b16 %v2915
  %v2999 = vunpack.c.h.b16 %v2915
  %v3000 = vunpack.c.l.b16 %v2916
  %v3001 = vunpack.c.h.b16 %v2916
  %v3002 = vunpack.c.l.b16 %v2917
  %v3003 = vunpack.c.h.b16 %v2917
  %v3004 = vunpack.c.l.b16 %v2918
  %v3005 = vunpack.c.h.b16 %v2918
  %v3006 = vunpack.c.l.b16 %v2919
  %v3007 = vunpack.c.h.b16 %v2919
  %v3008 = vunpack.c.l.b16 %v2920
  %v3009 = vunpack.c.h.b16 %v2920
  %v3010 = vunpack.c.l.b16 %v2921
  %v3011 = vunpack.c.h.b16 %v2921
  %v3012 = vunpack.c.l.b16 %v2922
  %v3013 = vunpack.c.h.b16 %v2922
  %v3014 = vunpack.c.l.b16 %v2923
  %v3015 = vunpack.c.h.b16 %v2923
  %v3016 = vunpack.c.l.b16 %v2924
  %v3017 = vunpack.c.h.b16 %v2924
  %v3018 = vunpack.c.l.b16 %v2925
  %v3019 = vunpack.c.h.b16 %v2925
  %v3020 = vunpack.c.l.b16 %v2926
  %v3021 = vunpack.c.h.b16 %v2926
  %v3022 = vunpack.c.l.b16 %v2927
  %v3023 = vunpack.c.h.b16 %v2927
  %v3024 = vunpack.c.l.b16 %v2928
  %v3025 = vunpack.c.h.b16 %v2928
  %v3026 = vunpack.c.l.b16 %v2929
  %v3027 = vunpack.c.h.b16 %v2929
  %v3028 = vunpack.c.l.b16 %v2930
  %v3029 = vunpack.c.h.b16 %v2930
  %v3030 = vunpack.c.l.b16 %v2931
  %v3031 = vunpack.c.h.b16 %v2931
  %v3032 = vunpack.c.l.b16 %v2932
  %v3033 = vunpack.c.h.b16 %v2932
  %v3034 = vunpack.c.l.b16 %v2933
  %v3035 = vunpack.c.h.b16 %v2933
  %v3036 = vunpack.c.l.b16 %v2934
  %v3037 = vunpack.c.h.b16 %v2934
  %v3038 = vunpack.c.l.b16 %v2935
  %v3039 = vunpack.c.h.b16 %v2935
  %v3040 = vunpack.c.l.b16 %v2936
  %v3041 = vunpack.c.h.b16 %v2936
  %v3042 = vunpack.c.l.b16 %v2937
  %v3043 = vunpack.c.h.b16 %v2937
  %v3044 = vunpack.c.l.b16 %v2938
  %v3045 = vunpack.c.h.b16 %v2938
  %v3046 = vunpack.c.l.b16 %v2939
  %v3047 = vunpack.c.h.b16 %v2939
  %v3048 = vunpack.c.l.b16 %v2940
  %v3049 = vunpack.c.h.b16 %v2940
  %v3050 = vpack.c.b16 %v2990, %v2986
  %v3051 = vpack.c.b16 %v2991, %v2987
  %v3052 = vpack.c.b16 %v2992, %v2988
  %v3053 = vpack.c.b16 %v2993, %v2989
  %v3054 = vpack.c.b16 %v2998, %v2994
  %v3055 = vpack.c.b16 %v2999, %v2995
  %v3056 = vpack.c.b16 %v3000, %v2996
  %v3057 = vpack.c.b16 %v3001, %v2997
  %v3058 = vpack.c.b16 %v3006, %v3002
  %v3059 = vpack.c.b16 %v3007, %v3003
  %v3060 = vpack.c.b16 %v3008, %v3004
  %v3061 = vpack.c.b16 %v3009, %v3005
  %v3062 = vpack.c.b16 %v3014, %v3010
  %v3063 = vpack.c.b16 %v3015, %v3011
  %v3064 = vpack.c.b16 %v3016, %v3012
  %v3065 = vpack.c.b16 %v3017, %v3013
  %v3066 = vpack.c.b16 %v3022, %v3018
  %v3067 = vpack.c.b16 %v3023, %v3019
  %v3068 = vpack.c.b16 %v3024, %v3020
  %v3069 = vpack.c.b16 %v3025, %v3021
  %v3070 = vpack.c.b16 %v3030, %v3026
  %v3071 = vpack.c.b16 %v3031, %v3027
  %v3072 = vpack.c.b16 %v3032, %v3028
  %v3073 = vpack.c.b16 %v3033, %v3029
  %v3074 = vpack.c.b16 %v3038, %v3034
  %v3075 = vpack.c.b16 %v3039, %v3035
  %v3076 = vpack.c.b16 %v3040, %v3036
  %v3077 = vpack.c.b16 %v3041, %v3037
  %v3078 = vpack.c.b16 %v3046, %v3042
  %v3079 = vpack.c.b16 %v3047, %v3043
  %v3080 = vpack.c.b16 %v3048, %v3044
  %v3081 = vpack.c.b16 %v3049, %v3045
  %3114 = vmatprep.subr.bf16.mxu0 %v3079
  %3115 = vmatpush1.bf16.msra.mxu0 %v3078
  %3116 = vmatprep.subr.bf16.mxu0 %v3075
  %3117 = vmatpush1.bf16.msra.mxu0 %v3074
  %3118 = vmatprep.subr.bf16.mxu0 %v3071
  %3119 = vmatpush1.bf16.msra.mxu0 %v3070
  %3120 = vmatprep.subr.bf16.mxu0 %v3067
  %3121 = vmatpush1.bf16.msra.mxu0 %v3066
  %3122 = vmatprep.subr.bf16.mxu0 %v3063
  %3123 = vmatpush1.bf16.msra.mxu0 %v3062
  %3124 = vmatprep.subr.bf16.mxu0 %v3059
  %3125 = vmatpush1.bf16.msra.mxu0 %v3058
  %3126 = vmatprep.subr.bf16.mxu0 %v3055
  %3127 = vmatpush1.bf16.msra.mxu0 %v3054
  %3128 = vmatprep.subr.bf16.mxu0 %v3051
  %3129 = vmatpush1.bf16.msra.mxu0 %v3050
  %3130 = vmatprep.subr.bf16.mxu0 0
  %3131 = vmatpush2.bf16.msra.mxu0 0
  %3132 = vmatprep.subr.bf16.mxu0 0
  %3133 = vmatpush2.bf16.msra.mxu0 0
  %3134 = vmatprep.subr.bf16.mxu0 0
  %3135 = vmatpush2.bf16.msra.mxu0 0
  %3136 = vmatprep.subr.bf16.mxu0 0
  %3137 = vmatpush2.bf16.msra.mxu0 0
  %3138 = vmatprep.subr.bf16.mxu0 0
  %3139 = vmatpush2.bf16.msra.mxu0 0
  %3140 = vmatprep.subr.bf16.mxu0 0
  %3141 = vmatpush2.bf16.msra.mxu0 0
  %3142 = vmatprep.subr.bf16.mxu0 0
  %3143 = vmatpush2.bf16.msra.mxu0 0
  %3144 = vmatprep.subr.bf16.mxu0 0
  %3145 = vmatpush2.bf16.msra.mxu0 0
  %3146 = vmatprep.mubr.bf16.mxu0 0
  %3147 = vmatmul.mubr.bf16.gmra.mxu0 %v2908
  %v3148 = vpop.f32.mrf.mxu0
  %v3149 = vadd.f32 %v2946, %v3148
  %v3150 = vpop.f32.mrf.mxu0
  %v3151 = vadd.f32 %v2947, %v3150
  %v3152 = vpop.f32.mrf.mxu0
  %v3153 = vadd.f32 %v2950, %v3152
  %v3154 = vpop.f32.mrf.mxu0
  %v3155 = vadd.f32 %v2951, %v3154
  %3156 = vdwg.mxu0
  %3157 = vmatprep.subr.bf16.mxu0 %v3081
  %3158 = vmatpush1.bf16.msra.mxu0 %v3080
  %3159 = vmatprep.subr.bf16.mxu0 %v3077
  %3160 = vmatpush1.bf16.msra.mxu0 %v3076
  %3161 = vmatprep.subr.bf16.mxu0 %v3073
  %3162 = vmatpush1.bf16.msra.mxu0 %v3072
  %3163 = vmatprep.subr.bf16.mxu0 %v3069
  %3164 = vmatpush1.bf16.msra.mxu0 %v3068
  %3165 = vmatprep.subr.bf16.mxu0 %v3065
  %3166 = vmatpush1.bf16.msra.mxu0 %v3064
  %3167 = vmatprep.subr.bf16.mxu0 %v3061
  %3168 = vmatpush1.bf16.msra.mxu0 %v3060
  %3169 = vmatprep.subr.bf16.mxu0 %v3057
  %3170 = vmatpush1.bf16.msra.mxu0 %v3056
  %3171 = vmatprep.subr.bf16.mxu0 %v3053
  %3172 = vmatpush1.bf16.msra.mxu0 %v3052
  %3173 = vmatprep.subr.bf16.mxu0 0
  %3174 = vmatpush2.bf16.msra.mxu0 0
  %3175 = vmatprep.subr.bf16.mxu0 0
  %3176 = vmatpush2.bf16.msra.mxu0 0
  %3177 = vmatprep.subr.bf16.mxu0 0
  %3178 = vmatpush2.bf16.msra.mxu0 0
  %3179 = vmatprep.subr.bf16.mxu0 0
  %3180 = vmatpush2.bf16.msra.mxu0 0
  %3181 = vmatprep.subr.bf16.mxu0 0
  %3182 = vmatpush2.bf16.msra.mxu0 0
  %3183 = vmatprep.subr.bf16.mxu0 0
  %3184 = vmatpush2.bf16.msra.mxu0 0
  %3185 = vmatprep.subr.bf16.mxu0 0
  %3186 = vmatpush2.bf16.msra.mxu0 0
  %3187 = vmatprep.subr.bf16.mxu0 0
  %3188 = vmatpush2.bf16.msra.mxu0 0
  %3189 = vmatprep.mubr.bf16.mxu0 0
  %3190 = vmatmul.mubr.bf16.gmra.mxu0 %v2908
  %v3191 = vpop.f32.mrf.mxu0
  %v3192 = vadd.f32 %v2948, %v3191
  %v3193 = vpop.f32.mrf.mxu0
  %v3194 = vadd.f32 %v2949, %v3193
  %v3195 = vpop.f32.mrf.mxu0
  %v3196 = vadd.f32 %v2952, %v3195
  %v3197 = vpop.f32.mrf.mxu0
  %v3198 = vadd.f32 %v2953, %v3197
  %3199 = vdwg.mxu0
  %v3200 = vxor.u32 %v3149, 2147483648
  %v3201 = vxor.u32 %v3153, 2147483648
  %v3202 = vmul.f32 %v3200, 1.442695
  %v3203 = vpow.pop %v3202
  %v3204 = vmul.f32 %v3201, 1.442695
  %v3205 = vpow.pop %v3204
  %v3206 = vadd.f32 %v3203, 1.0
  %v3207 = vadd.f32 %v3205, 1.0
  %v3208 = vrcp.pop %v3206
  %v3209 = vmul.f32 1.0, %v3208
  %v3210 = vrcp.pop %v3207
  %v3211 = vmul.f32 1.0, %v3210
  %v3212 = vtanh.pop %v3192
  %v3213 = vtanh.pop %v3196
  %v3214 = vmul.f32 %v3209, %v3212
  %v3215 = vmul.f32 %v3211, %v3213
  %v3216 = vxor.u32 %v3151, 2147483648
  %v3217 = vxor.u32 %v3155, 2147483648
  %v3218 = vmul.f32 %v3216, 1.442695
  %v3219 = vpow.pop %v3218
  %v3220 = vmul.f32 %v3217, 1.442695
  %v3221 = vpow.pop %v3220
  %v3222 = vadd.f32 %v3219, 1.0
  %v3223 = vadd.f32 %v3221, 1.0
  %v3224 = vrcp.pop %v3222
  %v3225 = vmul.f32 1.0, %v3224
  %v3226 = vrcp.pop %v3223
  %v3227 = vmul.f32 1.0, %v3226
  %v3228 = vld [vmem:[#allocation3] sm:$0xff]
  %v3229 = vld [vmem:[#allocation3 + $0x8] sm:$0xff]
  %v3230 = vmul.f32 %v3225, %v3228
  %v3231 = vmul.f32 %v3227, %v3229
  %v3232 = vadd.f32 %v3230, %v3214
  %v3233 = vadd.f32 %v3231, %v3215
  %v3234 = vxor.u32 %v3194, 2147483648
  %v3235 = vxor.u32 %v3198, 2147483648
  %v3236 = vmul.f32 %v3234, 1.442695
  %v3237 = vpow.pop %v3236
  %v3238 = vmul.f32 %v3235, 1.442695
  %v3239 = vpow.pop %v3238
  %v3240 = vadd.f32 %v3237, 1.0
  %v3241 = vadd.f32 %v3239, 1.0
  %v3242 = vrcp.pop %v3240
  %v3243 = vmul.f32 1.0, %v3242
  %v3244 = vrcp.pop %v3241
  %v3245 = vmul.f32 1.0, %v3244
  %v3246 = vtanh.pop %v3232
  %v3247 = vtanh.pop %v3233
  %v3248 = vmul.f32 %v3243, %v3246
  %v3249 = vmul.f32 %v3245, %v3247
  %3250 = vst [vmem:[#allocation3] sm:$0xff] %v3232
  %3251 = vst [vmem:[#allocation3 + $0x8] sm:$0xff] %v3233
  %3252 = vst [vmem:[#allocation2] sm:$0xff] %v3248
  %3253 = vst [vmem:[#allocation2 + $0x8] sm:$0xff] %v3249
  %v3254 = vpack.c.bf16 %v3249, %v3248
  %v3256 = vunpack.c.l.b16 %v3254
  %v3257 = vunpack.c.h.b16 %v3254
  %v3258 = vpack.c.b16 %v3256, %v3256
  %v3259 = vpack.c.b16 %v3257, %v3257
  %s3262 = scalar_lea.vmem %s4, 48
  %3263 = vst [vmem:[%s3262] sm:$0xf] %v3258
  %3264 = vst [vmem:[%s3262 + $0x4] sm:$0xf] %v3259
  %v3265 = vld [vmem:[#allocation2] sm:$0xff]
  %v3266 = vld [vmem:[#allocation2 + $0x8] sm:$0xff]
  %v3267 = vpack.c.bf16 %v3266, %v3265
  %v3268 = vld [vmem:[%s2] sm:$0xff]
  %v3269 = vld [vmem:[%s2 + $0x8] sm:$0xff]
  %v3270 = vld [vmem:[%s2 + $0x10] sm:$0xff]
  %v3271 = vld [vmem:[%s2 + $0x18] sm:$0xff]
  %v3272 = vld [vmem:[%s2 + $0x20] sm:$0xff]
  %v3273 = vld [vmem:[%s2 + $0x28] sm:$0xff]
  %v3274 = vld [vmem:[%s2 + $0x30] sm:$0xff]
  %v3275 = vld [vmem:[%s2 + $0x38] sm:$0xff]
  %v3276 = vld [vmem:[%s2 + $0x40] sm:$0xff]
  %v3277 = vld [vmem:[%s2 + $0x48] sm:$0xff]
  %v3278 = vld [vmem:[%s2 + $0x50] sm:$0xff]
  %v3279 = vld [vmem:[%s2 + $0x58] sm:$0xff]
  %v3280 = vld [vmem:[%s2 + $0x60] sm:$0xff]
  %v3281 = vld [vmem:[%s2 + $0x68] sm:$0xff]
  %v3282 = vld [vmem:[%s2 + $0x70] sm:$0xff]
  %v3283 = vld [vmem:[%s2 + $0x78] sm:$0xff]
  %v3284 = vld [vmem:[%s2 + $0x80] sm:$0xff]
  %v3285 = vld [vmem:[%s2 + $0x88] sm:$0xff]
  %v3286 = vld [vmem:[%s2 + $0x90] sm:$0xff]
  %v3287 = vld [vmem:[%s2 + $0x98] sm:$0xff]
  %v3288 = vld [vmem:[%s2 + $0xa0] sm:$0xff]
  %v3289 = vld [vmem:[%s2 + $0xa8] sm:$0xff]
  %v3290 = vld [vmem:[%s2 + $0xb0] sm:$0xff]
  %v3291 = vld [vmem:[%s2 + $0xb8] sm:$0xff]
  %v3292 = vld [vmem:[%s2 + $0xc0] sm:$0xff]
  %v3293 = vld [vmem:[%s2 + $0xc8] sm:$0xff]
  %v3294 = vld [vmem:[%s2 + $0xd0] sm:$0xff]
  %v3295 = vld [vmem:[%s2 + $0xd8] sm:$0xff]
  %v3296 = vld [vmem:[%s2 + $0xe0] sm:$0xff]
  %v3297 = vld [vmem:[%s2 + $0xe8] sm:$0xff]
  %v3298 = vld [vmem:[%s2 + $0xf0] sm:$0xff]
  %v3299 = vld [vmem:[%s2 + $0xf8] sm:$0xff]
  %s3300 = scalar_lea.vmem [#allocation4], 224
  %v3301 = vld [vmem:[%s3300] sm:$0xff]
  %v3302 = vld [vmem:[%s3300 + $0x8] sm:$0xff]
  %v3303 = vld [vmem:[%s3300 + $0x10] sm:$0xff]
  %v3304 = vld [vmem:[%s3300 + $0x18] sm:$0xff]
  %v3305 = vunpack.c.l.bf16 %v3301
  %v3306 = vunpack.c.h.bf16 %v3301
  %v3307 = vunpack.c.l.bf16 %v3302
  %v3308 = vunpack.c.h.bf16 %v3302
  %v3309 = vunpack.c.l.bf16 %v3303
  %v3310 = vunpack.c.h.bf16 %v3303
  %v3311 = vunpack.c.l.bf16 %v3304
  %v3312 = vunpack.c.h.bf16 %v3304
  %v3345 = vunpack.c.l.b16 %v3268
  %v3346 = vunpack.c.h.b16 %v3268
  %v3347 = vunpack.c.l.b16 %v3269
  %v3348 = vunpack.c.h.b16 %v3269
  %v3349 = vunpack.c.l.b16 %v3270
  %v3350 = vunpack.c.h.b16 %v3270
  %v3351 = vunpack.c.l.b16 %v3271
  %v3352 = vunpack.c.h.b16 %v3271
  %v3353 = vunpack.c.l.b16 %v3272
  %v3354 = vunpack.c.h.b16 %v3272
  %v3355 = vunpack.c.l.b16 %v3273
  %v3356 = vunpack.c.h.b16 %v3273
  %v3357 = vunpack.c.l.b16 %v3274
  %v3358 = vunpack.c.h.b16 %v3274
  %v3359 = vunpack.c.l.b16 %v3275
  %v3360 = vunpack.c.h.b16 %v3275
  %v3361 = vunpack.c.l.b16 %v3276
  %v3362 = vunpack.c.h.b16 %v3276
  %v3363 = vunpack.c.l.b16 %v3277
  %v3364 = vunpack.c.h.b16 %v3277
  %v3365 = vunpack.c.l.b16 %v3278
  %v3366 = vunpack.c.h.b16 %v3278
  %v3367 = vunpack.c.l.b16 %v3279
  %v3368 = vunpack.c.h.b16 %v3279
  %v3369 = vunpack.c.l.b16 %v3280
  %v3370 = vunpack.c.h.b16 %v3280
  %v3371 = vunpack.c.l.b16 %v3281
  %v3372 = vunpack.c.h.b16 %v3281
  %v3373 = vunpack.c.l.b16 %v3282
  %v3374 = vunpack.c.h.b16 %v3282
  %v3375 = vunpack.c.l.b16 %v3283
  %v3376 = vunpack.c.h.b16 %v3283
  %v3377 = vunpack.c.l.b16 %v3284
  %v3378 = vunpack.c.h.b16 %v3284
  %v3379 = vunpack.c.l.b16 %v3285
  %v3380 = vunpack.c.h.b16 %v3285
  %v3381 = vunpack.c.l.b16 %v3286
  %v3382 = vunpack.c.h.b16 %v3286
  %v3383 = vunpack.c.l.b16 %v3287
  %v3384 = vunpack.c.h.b16 %v3287
  %v3385 = vunpack.c.l.b16 %v3288
  %v3386 = vunpack.c.h.b16 %v3288
  %v3387 = vunpack.c.l.b16 %v3289
  %v3388 = vunpack.c.h.b16 %v3289
  %v3389 = vunpack.c.l.b16 %v3290
  %v3390 = vunpack.c.h.b16 %v3290
  %v3391 = vunpack.c.l.b16 %v3291
  %v3392 = vunpack.c.h.b16 %v3291
  %v3393 = vunpack.c.l.b16 %v3292
  %v3394 = vunpack.c.h.b16 %v3292
  %v3395 = vunpack.c.l.b16 %v3293
  %v3396 = vunpack.c.h.b16 %v3293
  %v3397 = vunpack.c.l.b16 %v3294
  %v3398 = vunpack.c.h.b16 %v3294
  %v3399 = vunpack.c.l.b16 %v3295
  %v3400 = vunpack.c.h.b16 %v3295
  %v3401 = vunpack.c.l.b16 %v3296
  %v3402 = vunpack.c.h.b16 %v3296
  %v3403 = vunpack.c.l.b16 %v3297
  %v3404 = vunpack.c.h.b16 %v3297
  %v3405 = vunpack.c.l.b16 %v3298
  %v3406 = vunpack.c.h.b16 %v3298
  %v3407 = vunpack.c.l.b16 %v3299
  %v3408 = vunpack.c.h.b16 %v3299
  %v3409 = vpack.c.b16 %v3349, %v3345
  %v3410 = vpack.c.b16 %v3350, %v3346
  %v3411 = vpack.c.b16 %v3351, %v3347
  %v3412 = vpack.c.b16 %v3352, %v3348
  %v3413 = vpack.c.b16 %v3357, %v3353
  %v3414 = vpack.c.b16 %v3358, %v3354
  %v3415 = vpack.c.b16 %v3359, %v3355
  %v3416 = vpack.c.b16 %v3360, %v3356
  %v3417 = vpack.c.b16 %v3365, %v3361
  %v3418 = vpack.c.b16 %v3366, %v3362
  %v3419 = vpack.c.b16 %v3367, %v3363
  %v3420 = vpack.c.b16 %v3368, %v3364
  %v3421 = vpack.c.b16 %v3373, %v3369
  %v3422 = vpack.c.b16 %v3374, %v3370
  %v3423 = vpack.c.b16 %v3375, %v3371
  %v3424 = vpack.c.b16 %v3376, %v3372
  %v3425 = vpack.c.b16 %v3381, %v3377
  %v3426 = vpack.c.b16 %v3382, %v3378
  %v3427 = vpack.c.b16 %v3383, %v3379
  %v3428 = vpack.c.b16 %v3384, %v3380
  %v3429 = vpack.c.b16 %v3389, %v3385
  %v3430 = vpack.c.b16 %v3390, %v3386
  %v3431 = vpack.c.b16 %v3391, %v3387
  %v3432 = vpack.c.b16 %v3392, %v3388
  %v3433 = vpack.c.b16 %v3397, %v3393
  %v3434 = vpack.c.b16 %v3398, %v3394
  %v3435 = vpack.c.b16 %v3399, %v3395
  %v3436 = vpack.c.b16 %v3400, %v3396
  %v3437 = vpack.c.b16 %v3405, %v3401
  %v3438 = vpack.c.b16 %v3406, %v3402
  %v3439 = vpack.c.b16 %v3407, %v3403
  %v3440 = vpack.c.b16 %v3408, %v3404
  %3473 = vmatprep.subr.bf16.mxu0 %v3438
  %3474 = vmatpush1.bf16.msra.mxu0 %v3437
  %3475 = vmatprep.subr.bf16.mxu0 %v3434
  %3476 = vmatpush1.bf16.msra.mxu0 %v3433
  %3477 = vmatprep.subr.bf16.mxu0 %v3430
  %3478 = vmatpush1.bf16.msra.mxu0 %v3429
  %3479 = vmatprep.subr.bf16.mxu0 %v3426
  %3480 = vmatpush1.bf16.msra.mxu0 %v3425
  %3481 = vmatprep.subr.bf16.mxu0 %v3422
  %3482 = vmatpush1.bf16.msra.mxu0 %v3421
  %3483 = vmatprep.subr.bf16.mxu0 %v3418
  %3484 = vmatpush1.bf16.msra.mxu0 %v3417
  %3485 = vmatprep.subr.bf16.mxu0 %v3414
  %3486 = vmatpush1.bf16.msra.mxu0 %v3413
  %3487 = vmatprep.subr.bf16.mxu0 %v3410
  %3488 = vmatpush1.bf16.msra.mxu0 %v3409
  %3489 = vmatprep.subr.bf16.mxu0 0
  %3490 = vmatpush2.bf16.msra.mxu0 0
  %3491 = vmatprep.subr.bf16.mxu0 0
  %3492 = vmatpush2.bf16.msra.mxu0 0
  %3493 = vmatprep.subr.bf16.mxu0 0
  %3494 = vmatpush2.bf16.msra.mxu0 0
  %3495 = vmatprep.subr.bf16.mxu0 0
  %3496 = vmatpush2.bf16.msra.mxu0 0
  %3497 = vmatprep.subr.bf16.mxu0 0
  %3498 = vmatpush2.bf16.msra.mxu0 0
  %3499 = vmatprep.subr.bf16.mxu0 0
  %3500 = vmatpush2.bf16.msra.mxu0 0
  %3501 = vmatprep.subr.bf16.mxu0 0
  %3502 = vmatpush2.bf16.msra.mxu0 0
  %3503 = vmatprep.subr.bf16.mxu0 0
  %3504 = vmatpush2.bf16.msra.mxu0 0
  %3505 = vmatprep.mubr.bf16.mxu0 0
  %3506 = vmatmul.mubr.bf16.gmra.mxu0 %v3267
  %v3507 = vpop.f32.mrf.mxu0
  %v3508 = vadd.f32 %v3305, %v3507
  %v3509 = vpop.f32.mrf.mxu0
  %v3510 = vadd.f32 %v3306, %v3509
  %v3511 = vpop.f32.mrf.mxu0
  %v3512 = vadd.f32 %v3309, %v3511
  %v3513 = vpop.f32.mrf.mxu0
  %v3514 = vadd.f32 %v3310, %v3513
  %3515 = vdwg.mxu0
  %3516 = vmatprep.subr.bf16.mxu0 %v3440
  %3517 = vmatpush1.bf16.msra.mxu0 %v3439
  %3518 = vmatprep.subr.bf16.mxu0 %v3436
  %3519 = vmatpush1.bf16.msra.mxu0 %v3435
  %3520 = vmatprep.subr.bf16.mxu0 %v3432
  %3521 = vmatpush1.bf16.msra.mxu0 %v3431
  %3522 = vmatprep.subr.bf16.mxu0 %v3428
  %3523 = vmatpush1.bf16.msra.mxu0 %v3427
  %3524 = vmatprep.subr.bf16.mxu0 %v3424
  %3525 = vmatpush1.bf16.msra.mxu0 %v3423
  %3526 = vmatprep.subr.bf16.mxu0 %v3420
  %3527 = vmatpush1.bf16.msra.mxu0 %v3419
  %3528 = vmatprep.subr.bf16.mxu0 %v3416
  %3529 = vmatpush1.bf16.msra.mxu0 %v3415
  %3530 = vmatprep.subr.bf16.mxu0 %v3412
  %3531 = vmatpush1.bf16.msra.mxu0 %v3411
  %3532 = vmatprep.subr.bf16.mxu0 0
  %3533 = vmatpush2.bf16.msra.mxu0 0
  %3534 = vmatprep.subr.bf16.mxu0 0
  %3535 = vmatpush2.bf16.msra.mxu0 0
  %3536 = vmatprep.subr.bf16.mxu0 0
  %3537 = vmatpush2.bf16.msra.mxu0 0
  %3538 = vmatprep.subr.bf16.mxu0 0
  %3539 = vmatpush2.bf16.msra.mxu0 0
  %3540 = vmatprep.subr.bf16.mxu0 0
  %3541 = vmatpush2.bf16.msra.mxu0 0
  %3542 = vmatprep.subr.bf16.mxu0 0
  %3543 = vmatpush2.bf16.msra.mxu0 0
  %3544 = vmatprep.subr.bf16.mxu0 0
  %3545 = vmatpush2.bf16.msra.mxu0 0
  %3546 = vmatprep.subr.bf16.mxu0 0
  %3547 = vmatpush2.bf16.msra.mxu0 0
  %3548 = vmatprep.mubr.bf16.mxu0 0
  %3549 = vmatmul.mubr.bf16.gmra.mxu0 %v3267
  %v3550 = vpop.f32.mrf.mxu0
  %v3551 = vadd.f32 %v3307, %v3550
  %v3552 = vpop.f32.mrf.mxu0
  %v3553 = vadd.f32 %v3308, %v3552
  %v3554 = vpop.f32.mrf.mxu0
  %v3555 = vadd.f32 %v3311, %v3554
  %v3556 = vpop.f32.mrf.mxu0
  %v3557 = vadd.f32 %v3312, %v3556
  %3558 = vdwg.mxu0
  %v3559 = vxor.u32 %v3508, 2147483648
  %v3560 = vxor.u32 %v3512, 2147483648
  %v3561 = vmul.f32 %v3559, 1.442695
  %v3562 = vpow.pop %v3561
  %v3563 = vmul.f32 %v3560, 1.442695
  %v3564 = vpow.pop %v3563
  %v3565 = vadd.f32 %v3562, 1.0
  %v3566 = vadd.f32 %v3564, 1.0
  %v3567 = vrcp.pop %v3565
  %v3568 = vmul.f32 1.0, %v3567
  %v3569 = vrcp.pop %v3566
  %v3570 = vmul.f32 1.0, %v3569
  %v3571 = vtanh.pop %v3551
  %v3572 = vtanh.pop %v3555
  %v3573 = vmul.f32 %v3568, %v3571
  %v3574 = vmul.f32 %v3570, %v3572
  %v3575 = vxor.u32 %v3510, 2147483648
  %v3576 = vxor.u32 %v3514, 2147483648
  %v3577 = vmul.f32 %v3575, 1.442695
  %v3578 = vpow.pop %v3577
  %v3579 = vmul.f32 %v3576, 1.442695
  %v3580 = vpow.pop %v3579
  %v3581 = vadd.f32 %v3578, 1.0
  %v3582 = vadd.f32 %v3580, 1.0
  %v3583 = vrcp.pop %v3581
  %v3584 = vmul.f32 1.0, %v3583
  %v3585 = vrcp.pop %v3582
  %v3586 = vmul.f32 1.0, %v3585
  %v3587 = vld [vmem:[#allocation3] sm:$0xff]
  %v3588 = vld [vmem:[#allocation3 + $0x8] sm:$0xff]
  %v3589 = vmul.f32 %v3584, %v3587
  %v3590 = vmul.f32 %v3586, %v3588
  %v3591 = vadd.f32 %v3589, %v3573
  %v3592 = vadd.f32 %v3590, %v3574
  %v3593 = vxor.u32 %v3553, 2147483648
  %v3594 = vxor.u32 %v3557, 2147483648
  %v3595 = vmul.f32 %v3593, 1.442695
  %v3596 = vpow.pop %v3595
  %v3597 = vmul.f32 %v3594, 1.442695
  %v3598 = vpow.pop %v3597
  %v3599 = vadd.f32 %v3596, 1.0
  %v3600 = vadd.f32 %v3598, 1.0
  %v3601 = vrcp.pop %v3599
  %v3602 = vmul.f32 1.0, %v3601
  %v3603 = vrcp.pop %v3600
  %v3604 = vmul.f32 1.0, %v3603
  %v3605 = vtanh.pop %v3591
  %v3606 = vtanh.pop %v3592
  %v3607 = vmul.f32 %v3602, %v3605
  %v3608 = vmul.f32 %v3604, %v3606
  %3609 = vst [vmem:[#allocation3] sm:$0xff] %v3591
  %3610 = vst [vmem:[#allocation3 + $0x8] sm:$0xff] %v3592
  %3611 = vst [vmem:[#allocation2] sm:$0xff] %v3607
  %3612 = vst [vmem:[#allocation2 + $0x8] sm:$0xff] %v3608
  %v3613 = vpack.c.bf16 %v3608, %v3607
  %v3615 = vunpack.c.l.b16 %v3613
  %v3616 = vunpack.c.h.b16 %v3613
  %v3617 = vpack.c.b16 %v3615, %v3615
  %v3618 = vpack.c.b16 %v3616, %v3616
  %s3621 = scalar_lea.vmem %s4, 56
  %3622 = vst [vmem:[%s3621] sm:$0xf] %v3617
  %3623 = vst [vmem:[%s3621 + $0x4] sm:$0xf] %v3618
  // Predicated region
  $region22: #{lstm_nn_forward.3} parent=0 // pred_check
    _
  $region23: #{lstm_nn_forward.3} parent=0 // pred_check_branch
    %3625 = sbr.rel (0) target = $region25
  $region24: #{lstm_nn_forward.3} parent=0 // pred_region
    _
  $region25: #{lstm_nn_forward.3} parent=0 // pred_fallthru
    _
  // Predicated region
  $region26: #{lstm_nn_forward.3} parent=0 // pred_check
    _
  $region27: #{lstm_nn_forward.3} parent=0 // pred_check_branch
    %3627 = sbr.rel (0) target = $region29
  $region28: #{lstm_nn_forward.3} parent=0 // pred_region
    _
  $region29: #{lstm_nn_forward.3} parent=0 // pred_fallthru
    _

</llo_original>
